<compile_context>
chip_gen: v6e
topology: v6e:2x2x1
jax: 0.10.0
libtpu: 0.0.40
codegen_flags: <defaults>
</compile_context>

<pallas_src>
import functools
import numpy as np
import jax
import jax.numpy as jnp
from jax.experimental import pallas as pl
from jax.experimental.pallas import tpu as pltpu


# ---------------------------------------------------------------------------
# Fused kernel: edge projection + edge-modulated attention + masked softmax +
# scores @ V + head concat + Oh projection, for one (batch, query-tile) step.
# ---------------------------------------------------------------------------
def _mha_edges_kernel(qs_ref, kx_ref, e_ref, am_ref, pm_ref,
                      we_ref, be_ref, sel_ref, woh_ref, boh_ref,
                      out_ref, scores_ref,
                      att_sc,
                      *, n_head, dim_head, tq, mxu_head_reduce):
    e = e_ref[0]                                               # (Tq, N, D) compute dtype
    n_keys = e.shape[1]
    d = e.shape[2]

    # Edge projection for this query tile, all heads at once.  This is the
    # dominant MXU matmul + HBM stream; its operands are in the compute dtype
    # (bf16 by default) and it accumulates in f32.
    ee = (jnp.dot(e.reshape(tq * n_keys, d), we_ref[...],
                  preferred_element_type=jnp.float32)
          + be_ref[...])                                       # (Tq*N, D) f32

    q_tile = qs_ref[0]                                         # (Tq, D) f32, pre-scaled by 1/sqrt(Dh)
    k_full = kx_ref[0]                                         # (N, D)  f32  (V == K)
    am = am_ref[0, 0]                                          # (Tq, N) f32, additive
    pm = pm_ref[0, 0]                                          # (1, N)  f32, multiplicative

    # One full-lane-width triple product (no per-head slicing of q/k/e).
    prod = (q_tile[:, None, :] * k_full[None, :, :]
            * ee.reshape(tq, n_keys, d))                       # (Tq, N, D) f32

    if mxu_head_reduce:
        # Per-head reduction over dim_head lanes as a single MXU matmul against
        # the block-indicator matrix, then a last-two-dims transpose so the
        # softmax runs lane-dense over keys for all heads at once.
        logits = jnp.dot(prod.reshape(tq * n_keys, d).astype(sel_ref.dtype),
                         sel_ref[...],
                         preferred_element_type=jnp.float32)   # (Tq*N, H)
        logits = logits.reshape(tq, n_keys, n_head)
        logits = jnp.swapaxes(logits, 1, 2)                    # (Tq, H, N)

        s = am[:, None, :] + logits                            # (Tq, H, N) f32
        s_max = jnp.max(s, axis=-1, keepdims=True)
        p = jnp.exp(s - s_max)
        denom = jnp.sum(p, axis=-1, keepdims=True)
        sc3 = p * (pl.reciprocal(denom, approx=True) * pm[None, :, :])

        for h in range(n_head):                                # static, small per-head slabs
            sc_h = sc3[:, h, :]                                # (Tq, N)
            scores_ref[0, h] = sc_h.astype(scores_ref.dtype)
            kh = k_full[:, h * dim_head:(h + 1) * dim_head]    # (N, Dh), V == K
            att_sc[:, h * dim_head:(h + 1) * dim_head] = jnp.dot(
                sc_h, kh, preferred_element_type=jnp.float32)
    else:
        # Conservative fallback: per-head lane-range slice of the (already
        # full-width) product and a minor-axis vector reduce.
        for h in range(n_head):
            ph = prod[:, :, h * dim_head:(h + 1) * dim_head]   # (Tq, N, Dh)
            s = am + jnp.sum(ph, axis=-1)                      # (Tq, N)
            s_max = jnp.max(s, axis=-1, keepdims=True)
            p = jnp.exp(s - s_max)
            denom = jnp.sum(p, axis=-1, keepdims=True)
            sc_h = p * (pl.reciprocal(denom, approx=True) * pm)
            scores_ref[0, h] = sc_h.astype(scores_ref.dtype)
            kh = k_full[:, h * dim_head:(h + 1) * dim_head]
            att_sc[:, h * dim_head:(h + 1) * dim_head] = jnp.dot(
                sc_h, kh, preferred_element_type=jnp.float32)

    # Single deep-contraction Oh projection (hoisted out of the head loop),
    # lane-dense (Tq, D) output store.
    out_ref[0] = (jnp.dot(att_sc[...], woh_ref[...],
                          preferred_element_type=jnp.float32)
                  + boh_ref[...])


# ---------------------------------------------------------------------------
# VMEM-aware tile / limit selection (v5e/v6e: 128 MiB, v7x: 64 MiB).
# ---------------------------------------------------------------------------
def _vmem_capacity_bytes():
    try:
        return int(pltpu.get_tpu_info().vmem_capacity_bytes)
    except Exception:
        return 64 * 1024 * 1024   # conservative: v7x per-TensorCore VMEM


def _estimate_vmem_bytes(tq, N, D, n_head, e_itemsize, scores_itemsize):
    f32 = 4
    b = 0
    b += 2 * tq * N * D * e_itemsize                 # e tile, double-buffered
    b += 2 * n_head * tq * N * scores_itemsize       # scores tile
    b += 2 * tq * D * f32 * 2                        # qs tile + out tile
    b += 2 * N * D * f32                             # kx (resident per batch)
    b += 2 * (tq * N + N) * f32                      # masks
    b += 2 * (D * D * e_itemsize + D * D * f32       # We + Woh
              + 3 * D * f32 + D * n_head * e_itemsize)
    b += tq * D * f32                                # att scratch
    b += 2 * tq * N * D * f32                        # in-kernel temps: ee + prod
    b += 3 * n_head * tq * N * f32                   # logits / p / scores temps
    return b


def _choose_query_tile(N, D, n_head, e_itemsize, scores_itemsize, budget):
    cands = [t for t in range(8, min(N, 512) + 1, 8) if N % t == 0]
    if not cands:
        return N                                      # tq == N (full dim, (8,128)-rule safe)
    best = cands[0]
    for t in cands:
        if _estimate_vmem_bytes(t, N, D, n_head, e_itemsize, scores_itemsize) <= budget:
            best = t
    return best


# ---------------------------------------------------------------------------
# Wrapper.
# ---------------------------------------------------------------------------
def mha_edges_forward(params, x, e, attention_mask, padding_mask, n_head, *,
                      tq=None, compute_dtype=jnp.bfloat16,
                      scores_dtype=jnp.float32):
    B, N, D = x.shape
    Dh = D // n_head
    f32 = jnp.float32

    x = x.astype(f32)
    # Q/K projections hoisted to XLA (negligible vs the edge projection).
    # 1/sqrt(dim_head) is folded into Q; V == K per the reference module.
    inv_sqrt = np.float32(1.0 / np.sqrt(Dh))
    qs = (x @ params["Wq"].astype(f32) + params["bq"].astype(f32)) * inv_sqrt
    kx = x @ params["Wk"].astype(f32) + params["bk"].astype(f32)

    # Masks kept at their broadcast shapes -- never materialized at (B,H,N,N).
    am = jnp.broadcast_to(attention_mask, (B, 1, N, N)).astype(f32)
    pm = jnp.broadcast_to(padding_mask, (B, 1, 1, N)).astype(f32)

    # MXU operands of the dominant edge projection in the compute dtype;
    # biases / masks / softmax / accumulators remain f32.
    e_c = e.astype(compute_dtype)
    we = params["We"].astype(compute_dtype)
    be = params["be"].reshape(1, D).astype(f32)
    woh = params["Woh"].astype(f32)
    boh = params["boh"].reshape(1, D).astype(f32)

    # Block-indicator "head selector": sel[d, h] = 1 iff d belongs to head h.
    sel = (jnp.arange(D)[:, None] // Dh
           == jnp.arange(n_head)[None, :]).astype(compute_dtype)

    e_isz = jnp.dtype(compute_dtype).itemsize
    s_isz = jnp.dtype(scores_dtype).itemsize
    vmem_cap = _vmem_capacity_bytes()
    vmem_limit = max(32 * 1024 * 1024, min(int(0.75 * vmem_cap), 110 * 1024 * 1024))
    if tq is None:
        tq = _choose_query_tile(N, D, n_head, e_isz, s_isz, int(0.7 * vmem_limit))
    assert N % tq == 0, "query tile must divide N"
    n_qt = N // tq

    grid = (B, n_qt)
    in_specs = [
        pl.BlockSpec((1, tq, D), lambda b, q: (b, q, 0)),           # qs (query tile)
        pl.BlockSpec((1, N, D), lambda b, q: (b, 0, 0)),            # kx (resident per batch)
        pl.BlockSpec((1, tq, N, D), lambda b, q: (b, q, 0, 0)),     # e query tile
        pl.BlockSpec((1, 1, tq, N), lambda b, q: (b, 0, q, 0)),     # attention mask
        pl.BlockSpec((1, 1, 1, N), lambda b, q: (b, 0, 0, 0)),      # padding mask
        pl.BlockSpec((D, D), lambda b, q: (0, 0)),                  # We
        pl.BlockSpec((1, D), lambda b, q: (0, 0)),                  # be
        pl.BlockSpec((D, n_head), lambda b, q: (0, 0)),             # head selector
        pl.BlockSpec((D, D), lambda b, q: (0, 0)),                  # Woh
        pl.BlockSpec((1, D), lambda b, q: (0, 0)),                  # boh
    ]
    out_specs = [
        pl.BlockSpec((1, tq, D), lambda b, q: (b, q, 0)),            # out (lane-dense D)
        pl.BlockSpec((1, n_head, tq, N), lambda b, q: (b, 0, q, 0)), # scores
    ]
    out_shape = [
        jax.ShapeDtypeStruct((B, N, D), jnp.float32),
        jax.ShapeDtypeStruct((B, n_head, N, N), scores_dtype),
    ]
    scratch_shapes = [pltpu.VMEM((tq, D), jnp.float32)]              # concat(att_h) buffer
    compiler_params = pltpu.CompilerParams(
        dimension_semantics=("parallel", "parallel"),                # both axes independent
        vmem_limit_bytes=vmem_limit)

    def _run(mxu_head_reduce):
        kernel = functools.partial(_mha_edges_kernel,
                                   n_head=n_head, dim_head=Dh, tq=tq,
                                   mxu_head_reduce=mxu_head_reduce)
        out, scores = pl.pallas_call(
            kernel,
            grid=grid,
            in_specs=in_specs,
            out_specs=out_specs,
            out_shape=out_shape,
            scratch_shapes=scratch_shapes,
            compiler_params=compiler_params,
        )(qs, kx, e_c, am, pm, we, be, sel, woh, boh)
        jax.block_until_ready((out, scores))
        return out, scores

    try:
        out, scores = _run(True)      # MXU head-reduction path (preferred)
    except Exception:
        out, scores = _run(False)     # conservative vector-reduce fallback

    # out_dropout: eval mode -> identity
    return out, scores


# ---------------------------------------------------------------------------
# Pure-JAX reference (mirrors the PyTorch forward exactly) for validation.
# ---------------------------------------------------------------------------
def reference_forward(params, x, e, attention_mask, padding_mask, n_head):
    B, N, D = x.shape
    Dh = D // n_head

    def lin(t, w, b):
        return t @ w + b

    Qx = lin(x, params["Wq"], params["bq"]).reshape(B, N, n_head, Dh).transpose(0, 2, 1, 3)
    Kx = lin(x, params["Wk"], params["bk"]).reshape(B, N, n_head, Dh).transpose(0, 2, 1, 3)
    Vx = Kx  # module uses self.K(x) for V
    Ee = lin(e, params["We"], params["be"]).reshape(B, N, N, n_head, Dh).transpose(0, 3, 1, 2, 4)
    inter = Qx[:, :, :, None, :] * Kx[:, :, None, :, :] * Ee / np.sqrt(Dh)
    s = attention_mask + inter.sum(-1)
    scores = jax.nn.softmax(s, axis=-1) * padding_mask
    att = jnp.einsum('bhqk,bhkd->bhqd', scores, Vx)
    att = att.transpose(0, 2, 1, 3).reshape(B, N, D)
    out = att @ params["Woh"] + params["boh"]
    return out, scores


if __name__ == "__main__":
    B, N = 2, 8
    n_hidden, n_head = 32, 4

    key = jax.random.PRNGKey(0)
    keys = jax.random.split(key, 12)

    def init(k, shape, scale=0.1):
        return (scale * jax.random.normal(k, shape)).astype(jnp.float32)

    params = {
        "Wq": init(keys[0], (n_hidden, n_hidden)),
        "bq": init(keys[1], (n_hidden,)),
        "Wk": init(keys[2], (n_hidden, n_hidden)),
        "bk": init(keys[3], (n_hidden,)),
        "We": init(keys[4], (n_hidden, n_hidden)),
        "be": init(keys[5], (n_hidden,)),
        "Woh": init(keys[6], (n_hidden, n_hidden)),
        "boh": init(keys[7], (n_hidden,)),
    }

    x = init(keys[8], (B, N, n_hidden), scale=1.0)
    e = init(keys[9], (B, N, N, n_hidden), scale=1.0)

    # additive attention mask: 0 for valid, -1e9 for masked
    valid = (jax.random.uniform(keys[10], (B, 1, N, N)) > 0.1).astype(jnp.float32)
    attention_mask = (1.0 - valid) * (-1e9)
    # multiplicative padding mask over key positions
    padding_mask = (jax.random.uniform(keys[11], (B, 1, 1, N)) > 0.2).astype(jnp.float32)

    ref_out, ref_scores = reference_forward(params, x, e, attention_mask,
                                            padding_mask, n_head)

    # 1) strict check with f32 MXU operands
    out32, scores32 = mha_edges_forward(params, x, e, attention_mask, padding_mask,
                                        n_head, compute_dtype=jnp.float32)
    np.testing.assert_allclose(np.asarray(scores32), np.asarray(ref_scores),
                               rtol=5e-3, atol=5e-3)
    np.testing.assert_allclose(np.asarray(out32), np.asarray(ref_out),
                               rtol=5e-3, atol=5e-3)

    # 2) performance configuration: bf16 MXU operands, f32 accumulation
    out16, scores16 = mha_edges_forward(params, x, e, attention_mask, padding_mask,
                                        n_head, compute_dtype=jnp.bfloat16)
    np.testing.assert_allclose(np.asarray(scores16), np.asarray(ref_scores),
                               rtol=5e-2, atol=5e-2)
    np.testing.assert_allclose(np.asarray(out16), np.asarray(ref_out),
                               rtol=5e-2, atol=5e-2)

    print("KERNEL_OK")
</pallas_src>

<mosaic_0001>
module attributes {stable_mosaic.version = 11 : i64} {
  func.func @_mha_edges_kernel(%arg0: i32, %arg1: i32, %arg2: memref<1x8x32xf32, #tpu.memory_space<vmem>>, %arg3: memref<1x8x32xf32, #tpu.memory_space<vmem>>, %arg4: memref<1x8x8x32xf32, #tpu.memory_space<vmem>>, %arg5: memref<1x1x8x8xf32, #tpu.memory_space<vmem>>, %arg6: memref<1x1x1x8xf32, #tpu.memory_space<vmem>>, %arg7: memref<32x32xf32, #tpu.memory_space<vmem>>, %arg8: memref<1x32xf32, #tpu.memory_space<vmem>>, %arg9: memref<32x4xf32, #tpu.memory_space<vmem>>, %arg10: memref<32x32xf32, #tpu.memory_space<vmem>>, %arg11: memref<1x32xf32, #tpu.memory_space<vmem>>, %arg12: memref<1x8x32xf32, #tpu.memory_space<vmem>>, %arg13: memref<1x4x8x8xf32, #tpu.memory_space<vmem>>, %arg14: memref<8x32xf32, #tpu.memory_space<vmem>>) attributes {dimension_semantics = [#tpu.dimension_semantics<parallel>, #tpu.dimension_semantics<parallel>], iteration_bounds = array<i64: 2, 1>, scalar_prefetch = 0 : i64, scratch_operands = 1 : i64, tpu.core_type = #tpu.core_type<tc>, window_params = [{transform_indices = @transform_0, window_bounds = array<i64: 1, 8, 32>}, {transform_indices = @transform_1, window_bounds = array<i64: 1, 8, 32>}, {transform_indices = @transform_2, window_bounds = array<i64: 1, 8, 8, 32>}, {transform_indices = @transform_3, window_bounds = array<i64: 1, 1, 8, 8>}, {transform_indices = @transform_4, window_bounds = array<i64: 1, 1, 1, 8>}, {pipeline_mode = #tpu.pipeline_mode<synchronous>, transform_indices = @transform_5, window_bounds = array<i64: 32, 32>}, {pipeline_mode = #tpu.pipeline_mode<synchronous>, transform_indices = @transform_6, window_bounds = array<i64: 1, 32>}, {pipeline_mode = #tpu.pipeline_mode<synchronous>, transform_indices = @transform_7, window_bounds = array<i64: 32, 4>}, {pipeline_mode = #tpu.pipeline_mode<synchronous>, transform_indices = @transform_8, window_bounds = array<i64: 32, 32>}, {pipeline_mode = #tpu.pipeline_mode<synchronous>, transform_indices = @transform_9, window_bounds = array<i64: 1, 32>}, {transform_indices = @transform_10, window_bounds = array<i64: 1, 8, 32>}, {transform_indices = @transform_11, window_bounds = array<i64: 1, 4, 8, 8>}]} {
    %c0 = arith.constant 0 : index
    %c0_0 = arith.constant 0 : index
    %c0_1 = arith.constant 0 : index
    %c0_2 = arith.constant 0 : index
    %0 = vector.load %arg4[%c0, %c0_0, %c0_1, %c0_2] : memref<1x8x8x32xf32, #tpu.memory_space<vmem>>, vector<1x8x8x32xf32>
    %1 = vector.shape_cast %0 : vector<1x8x8x32xf32> to vector<8x8x32xf32>
    %2 = vector.shape_cast %1 : vector<8x8x32xf32> to vector<64x32xf32>
    %c0_3 = arith.constant 0 : index
    %c0_4 = arith.constant 0 : index
    %3 = vector.load %arg7[%c0_3, %c0_4] : memref<32x32xf32, #tpu.memory_space<vmem>>, vector<32x32xf32>
    %cst = arith.constant dense<0.000000e+00> : vector<64x32xf32>
    %4 = tpu.matmul %2, %3, %cst {dimension_numbers = #tpu.dot_dimension_numbers<[1], [0], [0], [1], [0, 0, 1, 1], [], []>} : vector<64x32xf32>, vector<32x32xf32>, vector<64x32xf32> -> vector<64x32xf32>
    %c0_5 = arith.constant 0 : index
    %c0_6 = arith.constant 0 : index
    %5 = vector.load %arg8[%c0_5, %c0_6] : memref<1x32xf32, #tpu.memory_space<vmem>>, vector<1x32xf32>
    %6 = vector.broadcast %5 : vector<1x32xf32> to vector<64x32xf32>
    %7 = arith.addf %4, %6 : vector<64x32xf32>
    %c0_7 = arith.constant 0 : index
    %c0_8 = arith.constant 0 : index
    %c0_9 = arith.constant 0 : index
    %8 = vector.load %arg2[%c0_7, %c0_8, %c0_9] : memref<1x8x32xf32, #tpu.memory_space<vmem>>, vector<1x8x32xf32>
    %9 = vector.shape_cast %8 : vector<1x8x32xf32> to vector<8x32xf32>
    %c0_10 = arith.constant 0 : index
    %c0_11 = arith.constant 0 : index
    %c0_12 = arith.constant 0 : index
    %10 = vector.load %arg3[%c0_10, %c0_11, %c0_12] : memref<1x8x32xf32, #tpu.memory_space<vmem>>, vector<1x8x32xf32>
    %11 = vector.shape_cast %10 : vector<1x8x32xf32> to vector<8x32xf32>
    %c0_13 = arith.constant 0 : index
    %c0_14 = arith.constant 0 : index
    %c0_15 = arith.constant 0 : index
    %c0_16 = arith.constant 0 : index
    %12 = vector.load %arg5[%c0_13, %c0_14, %c0_15, %c0_16] : memref<1x1x8x8xf32, #tpu.memory_space<vmem>>, vector<1x1x8x8xf32>
    %13 = vector.shape_cast %12 : vector<1x1x8x8xf32> to vector<8x8xf32>
    %c0_17 = arith.constant 0 : index
    %c0_18 = arith.constant 0 : index
    %c0_19 = arith.constant 0 : index
    %c0_20 = arith.constant 0 : index
    %14 = vector.load %arg6[%c0_17, %c0_18, %c0_19, %c0_20] : memref<1x1x1x8xf32, #tpu.memory_space<vmem>>, vector<1x1x1x8xf32>
    %15 = vector.shape_cast %14 : vector<1x1x1x8xf32> to vector<1x8xf32>
    %16 = vector.shape_cast %9 : vector<8x32xf32> to vector<8x1x32xf32>
    %17 = vector.shape_cast %11 : vector<8x32xf32> to vector<1x8x32xf32>
    %18 = vector.broadcast %16 : vector<8x1x32xf32> to vector<8x8x32xf32>
    %19 = vector.broadcast %17 : vector<1x8x32xf32> to vector<8x8x32xf32>
    %20 = arith.mulf %18, %19 : vector<8x8x32xf32>
    %21 = vector.shape_cast %7 : vector<64x32xf32> to vector<8x8x32xf32>
    %22 = arith.mulf %20, %21 : vector<8x8x32xf32>
    %23 = vector.shape_cast %22 : vector<8x8x32xf32> to vector<64x32xf32>
    %c0_21 = arith.constant 0 : index
    %c0_22 = arith.constant 0 : index
    %24 = vector.load %arg9[%c0_21, %c0_22] : memref<32x4xf32, #tpu.memory_space<vmem>>, vector<32x4xf32>
    %cst_23 = arith.constant dense<0.000000e+00> : vector<64x4xf32>
    %25 = tpu.matmul %23, %24, %cst_23 {dimension_numbers = #tpu.dot_dimension_numbers<[1], [0], [0], [1], [0, 0, 1, 1], [], []>} : vector<64x32xf32>, vector<32x4xf32>, vector<64x4xf32> -> vector<64x4xf32>
    %26 = vector.shape_cast %25 : vector<64x4xf32> to vector<8x8x4xf32>
    %27 = tpu.transpose %26, [0, 2, 1] : vector<8x8x4xf32> -> vector<8x4x8xf32>
    %28 = vector.shape_cast %13 : vector<8x8xf32> to vector<8x1x8xf32>
    %29 = vector.broadcast %28 : vector<8x1x8xf32> to vector<8x4x8xf32>
    %30 = arith.addf %29, %27 : vector<8x4x8xf32>
    %cst_24 = arith.constant dense<0xFF800000> : vector<8x4xf32>
    %31 = vector.multi_reduction <maximumf>, %30, %cst_24 [2] : vector<8x4x8xf32> to vector<8x4xf32>
    %32 = vector.shape_cast %31 : vector<8x4xf32> to vector<8x4x1xf32>
    %33 = vector.broadcast %32 : vector<8x4x1xf32> to vector<8x4x8xf32>
    %34 = arith.subf %30, %33 : vector<8x4x8xf32>
    %35 = math.exp %34 : vector<8x4x8xf32>
    %cst_25 = arith.constant dense<0.000000e+00> : vector<8x4xf32>
    %36 = vector.multi_reduction <add>, %35, %cst_25 [2] : vector<8x4x8xf32> to vector<8x4xf32>
    %37 = vector.shape_cast %36 : vector<8x4xf32> to vector<8x4x1xf32>
    %38 = tpu.reciprocal %37 {approx = true} : vector<8x4x1xf32> -> vector<8x4x1xf32>
    %39 = vector.shape_cast %15 : vector<1x8xf32> to vector<1x1x8xf32>
    %40 = vector.broadcast %38 : vector<8x4x1xf32> to vector<8x4x8xf32>
    %41 = vector.broadcast %39 : vector<1x1x8xf32> to vector<8x4x8xf32>
    %42 = arith.mulf %40, %41 : vector<8x4x8xf32>
    %43 = arith.mulf %35, %42 : vector<8x4x8xf32>
    %44 = vector.extract_strided_slice %43 {offsets = [0, 0, 0], sizes = [8, 1, 8], strides = [1, 1, 1]} : vector<8x4x8xf32> to vector<8x1x8xf32>
    %45 = vector.shape_cast %44 : vector<8x1x8xf32> to vector<8x8xf32>
    %c0_26 = arith.constant 0 : index
    %c0_27 = arith.constant 0 : index
    %c0_28 = arith.constant 0 : index
    %c0_29 = arith.constant 0 : index
    %46 = vector.load %arg13[%c0_26, %c0_27, %c0_28, %c0_29] : memref<1x4x8x8xf32, #tpu.memory_space<vmem>>, vector<1x1x8x8xf32>
    %47 = vector.shape_cast %46 : vector<1x1x8x8xf32> to vector<8x8xf32>
    %48 = vector.shape_cast %45 : vector<8x8xf32> to vector<1x1x8x8xf32>
    tpu.vector_store %arg13[%c0_26, %c0_27, %c0_28, %c0_29], %48 {strides = array<i32>} : memref<1x4x8x8xf32, #tpu.memory_space<vmem>>, vector<1x1x8x8xf32>,
    %49 = vector.extract_strided_slice %11 {offsets = [0, 0], sizes = [8, 8], strides = [1, 1]} : vector<8x32xf32> to vector<8x8xf32>
    %cst_30 = arith.constant dense<0.000000e+00> : vector<8x8xf32>
    %50 = tpu.matmul %45, %49, %cst_30 {dimension_numbers = #tpu.dot_dimension_numbers<[1], [0], [0], [1], [0, 0, 1, 1], [], []>} : vector<8x8xf32>, vector<8x8xf32>, vector<8x8xf32> -> vector<8x8xf32>
    %c0_31 = arith.constant 0 : index
    %c0_32 = arith.constant 0 : index
    %51 = vector.load %arg14[%c0_31, %c0_32] : memref<8x32xf32, #tpu.memory_space<vmem>>, vector<8x8xf32>
    tpu.vector_store %arg14[%c0_31, %c0_32], %50 {strides = array<i32>} : memref<8x32xf32, #tpu.memory_space<vmem>>, vector<8x8xf32>,
    %52 = vector.extract_strided_slice %43 {offsets = [0, 1, 0], sizes = [8, 1, 8], strides = [1, 1, 1]} : vector<8x4x8xf32> to vector<8x1x8xf32>
    %53 = vector.shape_cast %52 : vector<8x1x8xf32> to vector<8x8xf32>
    %c0_33 = arith.constant 0 : index
    %c1 = arith.constant 1 : index
    %c0_34 = arith.constant 0 : index
    %c0_35 = arith.constant 0 : index
    %54 = vector.load %arg13[%c0_33, %c1, %c0_34, %c0_35] : memref<1x4x8x8xf32, #tpu.memory_space<vmem>>, vector<1x1x8x8xf32>
    %55 = vector.shape_cast %54 : vector<1x1x8x8xf32> to vector<8x8xf32>
    %56 = vector.shape_cast %53 : vector<8x8xf32> to vector<1x1x8x8xf32>
    tpu.vector_store %arg13[%c0_33, %c1, %c0_34, %c0_35], %56 {strides = array<i32>} : memref<1x4x8x8xf32, #tpu.memory_space<vmem>>, vector<1x1x8x8xf32>,
    %57 = vector.extract_strided_slice %11 {offsets = [0, 8], sizes = [8, 8], strides = [1, 1]} : vector<8x32xf32> to vector<8x8xf32>
    %cst_36 = arith.constant dense<0.000000e+00> : vector<8x8xf32>
    %58 = tpu.matmul %53, %57, %cst_36 {dimension_numbers = #tpu.dot_dimension_numbers<[1], [0], [0], [1], [0, 0, 1, 1], [], []>} : vector<8x8xf32>, vector<8x8xf32>, vector<8x8xf32> -> vector<8x8xf32>
    %c0_37 = arith.constant 0 : index
    %c8 = arith.constant 8 : index
    %59 = vector.load %arg14[%c0_37, %c8] : memref<8x32xf32, #tpu.memory_space<vmem>>, vector<8x8xf32>
    tpu.vector_store %arg14[%c0_37, %c8], %58 {strides = array<i32>} : memref<8x32xf32, #tpu.memory_space<vmem>>, vector<8x8xf32>,
    %60 = vector.extract_strided_slice %43 {offsets = [0, 2, 0], sizes = [8, 1, 8], strides = [1, 1, 1]} : vector<8x4x8xf32> to vector<8x1x8xf32>
    %61 = vector.shape_cast %60 : vector<8x1x8xf32> to vector<8x8xf32>
    %c0_38 = arith.constant 0 : index
    %c2 = arith.constant 2 : index
    %c0_39 = arith.constant 0 : index
    %c0_40 = arith.constant 0 : index
    %62 = vector.load %arg13[%c0_38, %c2, %c0_39, %c0_40] : memref<1x4x8x8xf32, #tpu.memory_space<vmem>>, vector<1x1x8x8xf32>
    %63 = vector.shape_cast %62 : vector<1x1x8x8xf32> to vector<8x8xf32>
    %64 = vector.shape_cast %61 : vector<8x8xf32> to vector<1x1x8x8xf32>
    tpu.vector_store %arg13[%c0_38, %c2, %c0_39, %c0_40], %64 {strides = array<i32>} : memref<1x4x8x8xf32, #tpu.memory_space<vmem>>, vector<1x1x8x8xf32>,
    %65 = vector.extract_strided_slice %11 {offsets = [0, 16], sizes = [8, 8], strides = [1, 1]} : vector<8x32xf32> to vector<8x8xf32>
    %cst_41 = arith.constant dense<0.000000e+00> : vector<8x8xf32>
    %66 = tpu.matmul %61, %65, %cst_41 {dimension_numbers = #tpu.dot_dimension_numbers<[1], [0], [0], [1], [0, 0, 1, 1], [], []>} : vector<8x8xf32>, vector<8x8xf32>, vector<8x8xf32> -> vector<8x8xf32>
    %c0_42 = arith.constant 0 : index
    %c16 = arith.constant 16 : index
    %67 = vector.load %arg14[%c0_42, %c16] : memref<8x32xf32, #tpu.memory_space<vmem>>, vector<8x8xf32>
    tpu.vector_store %arg14[%c0_42, %c16], %66 {strides = array<i32>} : memref<8x32xf32, #tpu.memory_space<vmem>>, vector<8x8xf32>,
    %68 = vector.extract_strided_slice %43 {offsets = [0, 3, 0], sizes = [8, 1, 8], strides = [1, 1, 1]} : vector<8x4x8xf32> to vector<8x1x8xf32>
    %69 = vector.shape_cast %68 : vector<8x1x8xf32> to vector<8x8xf32>
    %c0_43 = arith.constant 0 : index
    %c3 = arith.constant 3 : index
    %c0_44 = arith.constant 0 : index
    %c0_45 = arith.constant 0 : index
    %70 = vector.load %arg13[%c0_43, %c3, %c0_44, %c0_45] : memref<1x4x8x8xf32, #tpu.memory_space<vmem>>, vector<1x1x8x8xf32>
    %71 = vector.shape_cast %70 : vector<1x1x8x8xf32> to vector<8x8xf32>
    %72 = vector.shape_cast %69 : vector<8x8xf32> to vector<1x1x8x8xf32>
    tpu.vector_store %arg13[%c0_43, %c3, %c0_44, %c0_45], %72 {strides = array<i32>} : memref<1x4x8x8xf32, #tpu.memory_space<vmem>>, vector<1x1x8x8xf32>,
    %73 = vector.extract_strided_slice %11 {offsets = [0, 24], sizes = [8, 8], strides = [1, 1]} : vector<8x32xf32> to vector<8x8xf32>
    %cst_46 = arith.constant dense<0.000000e+00> : vector<8x8xf32>
    %74 = tpu.matmul %69, %73, %cst_46 {dimension_numbers = #tpu.dot_dimension_numbers<[1], [0], [0], [1], [0, 0, 1, 1], [], []>} : vector<8x8xf32>, vector<8x8xf32>, vector<8x8xf32> -> vector<8x8xf32>
    %c0_47 = arith.constant 0 : index
    %c24 = arith.constant 24 : index
    %75 = vector.load %arg14[%c0_47, %c24] : memref<8x32xf32, #tpu.memory_space<vmem>>, vector<8x8xf32>
    tpu.vector_store %arg14[%c0_47, %c24], %74 {strides = array<i32>} : memref<8x32xf32, #tpu.memory_space<vmem>>, vector<8x8xf32>,
    %c0_48 = arith.constant 0 : index
    %c0_49 = arith.constant 0 : index
    %76 = vector.load %arg14[%c0_48, %c0_49] : memref<8x32xf32, #tpu.memory_space<vmem>>, vector<8x32xf32>
    %c0_50 = arith.constant 0 : index
    %c0_51 = arith.constant 0 : index
    %77 = vector.load %arg10[%c0_50, %c0_51] : memref<32x32xf32, #tpu.memory_space<vmem>>, vector<32x32xf32>
    %cst_52 = arith.constant dense<0.000000e+00> : vector<8x32xf32>
    %78 = tpu.matmul %76, %77, %cst_52 {dimension_numbers = #tpu.dot_dimension_numbers<[1], [0], [0], [1], [0, 0, 1, 1], [], []>} : vector<8x32xf32>, vector<32x32xf32>, vector<8x32xf32> -> vector<8x32xf32>
    %c0_53 = arith.constant 0 : index
    %c0_54 = arith.constant 0 : index
    %79 = vector.load %arg11[%c0_53, %c0_54] : memref<1x32xf32, #tpu.memory_space<vmem>>, vector<1x32xf32>
    %80 = vector.broadcast %79 : vector<1x32xf32> to vector<8x32xf32>
    %81 = arith.addf %78, %80 : vector<8x32xf32>
    %c0_55 = arith.constant 0 : index
    %c0_56 = arith.constant 0 : index
    %c0_57 = arith.constant 0 : index
    %82 = vector.load %arg12[%c0_55, %c0_56, %c0_57] : memref<1x8x32xf32, #tpu.memory_space<vmem>>, vector<1x8x32xf32>
    %83 = vector.shape_cast %82 : vector<1x8x32xf32> to vector<8x32xf32>
    %84 = vector.shape_cast %81 : vector<8x32xf32> to vector<1x8x32xf32>
    tpu.vector_store %arg12[%c0_55, %c0_56, %c0_57], %84 {strides = array<i32>} : memref<1x8x32xf32, #tpu.memory_space<vmem>>, vector<1x8x32xf32>,
    return
  }
  func.func @transform_0(%arg0: i32, %arg1: i32) -> (i32, i32, i32) {
    %c0_i32 = arith.constant 0 : i32
    %c0_i32_0 = arith.constant 0 : i32
    return %arg0, %arg1, %c0_i32 : i32, i32, i32
  }
  func.func @transform_1(%arg0: i32, %arg1: i32) -> (i32, i32, i32) {
    %c0_i32 = arith.constant 0 : i32
    %c0_i32_0 = arith.constant 0 : i32
    %c0_i32_1 = arith.constant 0 : i32
    return %arg0, %c0_i32, %c0_i32_0 : i32, i32, i32
  }
  func.func @transform_2(%arg0: i32, %arg1: i32) -> (i32, i32, i32, i32) {
    %c0_i32 = arith.constant 0 : i32
    %c0_i32_0 = arith.constant 0 : i32
    %c0_i32_1 = arith.constant 0 : i32
    return %arg0, %arg1, %c0_i32, %c0_i32_0 : i32, i32, i32, i32
  }
  func.func @transform_3(%arg0: i32, %arg1: i32) -> (i32, i32, i32, i32) {
    %c0_i32 = arith.constant 0 : i32
    %c0_i32_0 = arith.constant 0 : i32
    %c0_i32_1 = arith.constant 0 : i32
    return %arg0, %c0_i32, %arg1, %c0_i32_0 : i32, i32, i32, i32
  }
  func.func @transform_4(%arg0: i32, %arg1: i32) -> (i32, i32, i32, i32) {
    %c0_i32 = arith.constant 0 : i32
    %c0_i32_0 = arith.constant 0 : i32
    %c0_i32_1 = arith.constant 0 : i32
    %c0_i32_2 = arith.constant 0 : i32
    return %arg0, %c0_i32, %c0_i32_0, %c0_i32_1 : i32, i32, i32, i32
  }
  func.func @transform_5(%arg0: i32, %arg1: i32) -> (i32, i32) {
    %c0_i32 = arith.constant 0 : i32
    %c0_i32_0 = arith.constant 0 : i32
    %c0_i32_1 = arith.constant 0 : i32
    return %c0_i32, %c0_i32_0 : i32, i32
  }
  func.func @transform_6(%arg0: i32, %arg1: i32) -> (i32, i32) {
    %c0_i32 = arith.constant 0 : i32
    %c0_i32_0 = arith.constant 0 : i32
    %c0_i32_1 = arith.constant 0 : i32
    return %c0_i32, %c0_i32_0 : i32, i32
  }
  func.func @transform_7(%arg0: i32, %arg1: i32) -> (i32, i32) {
    %c0_i32 = arith.constant 0 : i32
    %c0_i32_0 = arith.constant 0 : i32
    %c0_i32_1 = arith.constant 0 : i32
    return %c0_i32, %c0_i32_0 : i32, i32
  }
  func.func @transform_8(%arg0: i32, %arg1: i32) -> (i32, i32) {
    %c0_i32 = arith.constant 0 : i32
    %c0_i32_0 = arith.constant 0 : i32
    %c0_i32_1 = arith.constant 0 : i32
    return %c0_i32, %c0_i32_0 : i32, i32
  }
  func.func @transform_9(%arg0: i32, %arg1: i32) -> (i32, i32) {
    %c0_i32 = arith.constant 0 : i32
    %c0_i32_0 = arith.constant 0 : i32
    %c0_i32_1 = arith.constant 0 : i32
    return %c0_i32, %c0_i32_0 : i32, i32
  }
  func.func @transform_10(%arg0: i32, %arg1: i32) -> (i32, i32, i32) {
    %c0_i32 = arith.constant 0 : i32
    %c0_i32_0 = arith.constant 0 : i32
    return %arg0, %arg1, %c0_i32 : i32, i32, i32
  }
  func.func @transform_11(%arg0: i32, %arg1: i32) -> (i32, i32, i32, i32) {
    %c0_i32 = arith.constant 0 : i32
    %c0_i32_0 = arith.constant 0 : i32
    %c0_i32_1 = arith.constant 0 : i32
    return %arg0, %c0_i32, %arg1, %c0_i32_0 : i32, i32, i32, i32
  }
}

module attributes {stable_mosaic.version = 11 : i64} {
  func.func @_mha_edges_kernel(%arg0: i32, %arg1: i32, %arg2: memref<1x8x32xf32, #tpu.memory_space<vmem>>, %arg3: memref<1x8x32xf32, #tpu.memory_space<vmem>>, %arg4: memref<1x8x8x32xf32, #tpu.memory_space<vmem>>, %arg5: memref<1x1x8x8xf32, #tpu.memory_space<vmem>>, %arg6: memref<1x1x1x8xf32, #tpu.memory_space<vmem>>, %arg7: memref<32x32xf32, #tpu.memory_space<vmem>>, %arg8: memref<1x32xf32, #tpu.memory_space<vmem>>, %arg9: memref<32x4xf32, #tpu.memory_space<vmem>>, %arg10: memref<32x32xf32, #tpu.memory_space<vmem>>, %arg11: memref<1x32xf32, #tpu.memory_space<vmem>>, %arg12: memref<1x8x32xf32, #tpu.memory_space<vmem>>, %arg13: memref<1x4x8x8xf32, #tpu.memory_space<vmem>>, %arg14: memref<8x32xf32, #tpu.memory_space<vmem>>) attributes {dimension_semantics = [#tpu.dimension_semantics<parallel>, #tpu.dimension_semantics<parallel>], iteration_bounds = array<i64: 2, 1>, scalar_prefetch = 0 : i64, scratch_operands = 1 : i64, tpu.core_type = #tpu.core_type<tc>, window_params = [{transform_indices = @transform_0, window_bounds = array<i64: 1, 8, 32>}, {transform_indices = @transform_1, window_bounds = array<i64: 1, 8, 32>}, {transform_indices = @transform_2, window_bounds = array<i64: 1, 8, 8, 32>}, {transform_indices = @transform_3, window_bounds = array<i64: 1, 1, 8, 8>}, {transform_indices = @transform_4, window_bounds = array<i64: 1, 1, 1, 8>}, {pipeline_mode = #tpu.pipeline_mode<synchronous>, transform_indices = @transform_5, window_bounds = array<i64: 32, 32>}, {pipeline_mode = #tpu.pipeline_mode<synchronous>, transform_indices = @transform_6, window_bounds = array<i64: 1, 32>}, {pipeline_mode = #tpu.pipeline_mode<synchronous>, transform_indices = @transform_7, window_bounds = array<i64: 32, 4>}, {pipeline_mode = #tpu.pipeline_mode<synchronous>, transform_indices = @transform_8, window_bounds = array<i64: 32, 32>}, {pipeline_mode = #tpu.pipeline_mode<synchronous>, transform_indices = @transform_9, window_bounds = array<i64: 1, 32>}, {transform_indices = @transform_10, window_bounds = array<i64: 1, 8, 32>}, {transform_indices = @transform_11, window_bounds = array<i64: 1, 4, 8, 8>}]} {
    %c0 = arith.constant 0 : index
    %c0_0 = arith.constant 0 : index
    %c0_1 = arith.constant 0 : index
    %c0_2 = arith.constant 0 : index
    %0 = vector.load %arg4[%c0, %c0_0, %c0_1, %c0_2] : memref<1x8x8x32xf32, #tpu.memory_space<vmem>>, vector<1x8x8x32xf32>
    %1 = vector.shape_cast %0 : vector<1x8x8x32xf32> to vector<8x8x32xf32>
    %2 = vector.shape_cast %1 : vector<8x8x32xf32> to vector<64x32xf32>
    %c0_3 = arith.constant 0 : index
    %c0_4 = arith.constant 0 : index
    %3 = vector.load %arg7[%c0_3, %c0_4] : memref<32x32xf32, #tpu.memory_space<vmem>>, vector<32x32xf32>
    %cst = arith.constant dense<0.000000e+00> : vector<64x32xf32>
    %4 = tpu.matmul %2, %3, %cst {dimension_numbers = #tpu.dot_dimension_numbers<[1], [0], [0], [1], [0, 0, 1, 1], [], []>} : vector<64x32xf32>, vector<32x32xf32>, vector<64x32xf32> -> vector<64x32xf32>
    %c0_5 = arith.constant 0 : index
    %c0_6 = arith.constant 0 : index
    %5 = vector.load %arg8[%c0_5, %c0_6] : memref<1x32xf32, #tpu.memory_space<vmem>>, vector<1x32xf32>
    %6 = vector.broadcast %5 : vector<1x32xf32> to vector<64x32xf32>
    %7 = arith.addf %4, %6 : vector<64x32xf32>
    %c0_7 = arith.constant 0 : index
    %c0_8 = arith.constant 0 : index
    %c0_9 = arith.constant 0 : index
    %8 = vector.load %arg2[%c0_7, %c0_8, %c0_9] : memref<1x8x32xf32, #tpu.memory_space<vmem>>, vector<1x8x32xf32>
    %9 = vector.shape_cast %8 : vector<1x8x32xf32> to vector<8x32xf32>
    %c0_10 = arith.constant 0 : index
    %c0_11 = arith.constant 0 : index
    %c0_12 = arith.constant 0 : index
    %10 = vector.load %arg3[%c0_10, %c0_11, %c0_12] : memref<1x8x32xf32, #tpu.memory_space<vmem>>, vector<1x8x32xf32>
    %11 = vector.shape_cast %10 : vector<1x8x32xf32> to vector<8x32xf32>
    %c0_13 = arith.constant 0 : index
    %c0_14 = arith.constant 0 : index
    %c0_15 = arith.constant 0 : index
    %c0_16 = arith.constant 0 : index
    %12 = vector.load %arg5[%c0_13, %c0_14, %c0_15, %c0_16] : memref<1x1x8x8xf32, #tpu.memory_space<vmem>>, vector<1x1x8x8xf32>
    %13 = vector.shape_cast %12 : vector<1x1x8x8xf32> to vector<8x8xf32>
    %c0_17 = arith.constant 0 : index
    %c0_18 = arith.constant 0 : index
    %c0_19 = arith.constant 0 : index
    %c0_20 = arith.constant 0 : index
    %14 = vector.load %arg6[%c0_17, %c0_18, %c0_19, %c0_20] : memref<1x1x1x8xf32, #tpu.memory_space<vmem>>, vector<1x1x1x8xf32>
    %15 = vector.shape_cast %14 : vector<1x1x1x8xf32> to vector<1x8xf32>
    %16 = vector.shape_cast %9 : vector<8x32xf32> to vector<8x1x32xf32>
    %17 = vector.shape_cast %11 : vector<8x32xf32> to vector<1x8x32xf32>
    %18 = vector.broadcast %16 : vector<8x1x32xf32> to vector<8x8x32xf32>
    %19 = vector.broadcast %17 : vector<1x8x32xf32> to vector<8x8x32xf32>
    %20 = arith.mulf %18, %19 : vector<8x8x32xf32>
    %21 = vector.shape_cast %7 : vector<64x32xf32> to vector<8x8x32xf32>
    %22 = arith.mulf %20, %21 : vector<8x8x32xf32>
    %23 = vector.extract_strided_slice %22 {offsets = [0, 0, 0], sizes = [8, 8, 8], strides = [1, 1, 1]} : vector<8x8x32xf32> to vector<8x8x8xf32>
    %cst_21 = arith.constant dense<0.000000e+00> : vector<8x8xf32>
    %24 = vector.multi_reduction <add>, %23, %cst_21 [2] : vector<8x8x8xf32> to vector<8x8xf32>
    %25 = arith.addf %13, %24 : vector<8x8xf32>
    %cst_22 = arith.constant dense<0xFF800000> : vector<8xf32>
    %26 = vector.multi_reduction <maximumf>, %25, %cst_22 [1] : vector<8x8xf32> to vector<8xf32>
    %27 = vector.shape_cast %26 : vector<8xf32> to vector<8x1xf32>
    %28 = vector.broadcast %27 : vector<8x1xf32> to vector<8x8xf32>
    %29 = arith.subf %25, %28 : vector<8x8xf32>
    %30 = math.exp %29 : vector<8x8xf32>
    %cst_23 = arith.constant dense<0.000000e+00> : vector<8xf32>
    %31 = vector.multi_reduction <add>, %30, %cst_23 [1] : vector<8x8xf32> to vector<8xf32>
    %32 = vector.shape_cast %31 : vector<8xf32> to vector<8x1xf32>
    %33 = tpu.reciprocal %32 {approx = true} : vector<8x1xf32> -> vector<8x1xf32>
    %34 = vector.broadcast %33 : vector<8x1xf32> to vector<8x8xf32>
    %35 = vector.broadcast %15 : vector<1x8xf32> to vector<8x8xf32>
    %36 = arith.mulf %34, %35 : vector<8x8xf32>
    %37 = arith.mulf %30, %36 : vector<8x8xf32>
    %c0_24 = arith.constant 0 : index
    %c0_25 = arith.constant 0 : index
    %c0_26 = arith.constant 0 : index
    %c0_27 = arith.constant 0 : index
    %38 = vector.load %arg13[%c0_24, %c0_25, %c0_26, %c0_27] : memref<1x4x8x8xf32, #tpu.memory_space<vmem>>, vector<1x1x8x8xf32>
    %39 = vector.shape_cast %38 : vector<1x1x8x8xf32> to vector<8x8xf32>
    %40 = vector.shape_cast %37 : vector<8x8xf32> to vector<1x1x8x8xf32>
    tpu.vector_store %arg13[%c0_24, %c0_25, %c0_26, %c0_27], %40 {strides = array<i32>} : memref<1x4x8x8xf32, #tpu.memory_space<vmem>>, vector<1x1x8x8xf32>,
    %41 = vector.extract_strided_slice %11 {offsets = [0, 0], sizes = [8, 8], strides = [1, 1]} : vector<8x32xf32> to vector<8x8xf32>
    %cst_28 = arith.constant dense<0.000000e+00> : vector<8x8xf32>
    %42 = tpu.matmul %37, %41, %cst_28 {dimension_numbers = #tpu.dot_dimension_numbers<[1], [0], [0], [1], [0, 0, 1, 1], [], []>} : vector<8x8xf32>, vector<8x8xf32>, vector<8x8xf32> -> vector<8x8xf32>
    %c0_29 = arith.constant 0 : index
    %c0_30 = arith.constant 0 : index
    %43 = vector.load %arg14[%c0_29, %c0_30] : memref<8x32xf32, #tpu.memory_space<vmem>>, vector<8x8xf32>
    tpu.vector_store %arg14[%c0_29, %c0_30], %42 {strides = array<i32>} : memref<8x32xf32, #tpu.memory_space<vmem>>, vector<8x8xf32>,
    %44 = vector.extract_strided_slice %22 {offsets = [0, 0, 8], sizes = [8, 8, 8], strides = [1, 1, 1]} : vector<8x8x32xf32> to vector<8x8x8xf32>
    %cst_31 = arith.constant dense<0.000000e+00> : vector<8x8xf32>
    %45 = vector.multi_reduction <add>, %44, %cst_31 [2] : vector<8x8x8xf32> to vector<8x8xf32>
    %46 = arith.addf %13, %45 : vector<8x8xf32>
    %cst_32 = arith.constant dense<0xFF800000> : vector<8xf32>
    %47 = vector.multi_reduction <maximumf>, %46, %cst_32 [1] : vector<8x8xf32> to vector<8xf32>
    %48 = vector.shape_cast %47 : vector<8xf32> to vector<8x1xf32>
    %49 = vector.broadcast %48 : vector<8x1xf32> to vector<8x8xf32>
    %50 = arith.subf %46, %49 : vector<8x8xf32>
    %51 = math.exp %50 : vector<8x8xf32>
    %cst_33 = arith.constant dense<0.000000e+00> : vector<8xf32>
    %52 = vector.multi_reduction <add>, %51, %cst_33 [1] : vector<8x8xf32> to vector<8xf32>
    %53 = vector.shape_cast %52 : vector<8xf32> to vector<8x1xf32>
    %54 = tpu.reciprocal %53 {approx = true} : vector<8x1xf32> -> vector<8x1xf32>
    %55 = vector.broadcast %54 : vector<8x1xf32> to vector<8x8xf32>
    %56 = vector.broadcast %15 : vector<1x8xf32> to vector<8x8xf32>
    %57 = arith.mulf %55, %56 : vector<8x8xf32>
    %58 = arith.mulf %51, %57 : vector<8x8xf32>
    %c0_34 = arith.constant 0 : index
    %c1 = arith.constant 1 : index
    %c0_35 = arith.constant 0 : index
    %c0_36 = arith.constant 0 : index
    %59 = vector.load %arg13[%c0_34, %c1, %c0_35, %c0_36] : memref<1x4x8x8xf32, #tpu.memory_space<vmem>>, vector<1x1x8x8xf32>
    %60 = vector.shape_cast %59 : vector<1x1x8x8xf32> to vector<8x8xf32>
    %61 = vector.shape_cast %58 : vector<8x8xf32> to vector<1x1x8x8xf32>
    tpu.vector_store %arg13[%c0_34, %c1, %c0_35, %c0_36], %61 {strides = array<i32>} : memref<1x4x8x8xf32, #tpu.memory_space<vmem>>, vector<1x1x8x8xf32>,
    %62 = vector.extract_strided_slice %11 {offsets = [0, 8], sizes = [8, 8], strides = [1, 1]} : vector<8x32xf32> to vector<8x8xf32>
    %cst_37 = arith.constant dense<0.000000e+00> : vector<8x8xf32>
    %63 = tpu.matmul %58, %62, %cst_37 {dimension_numbers = #tpu.dot_dimension_numbers<[1], [0], [0], [1], [0, 0, 1, 1], [], []>} : vector<8x8xf32>, vector<8x8xf32>, vector<8x8xf32> -> vector<8x8xf32>
    %c0_38 = arith.constant 0 : index
    %c8 = arith.constant 8 : index
    %64 = vector.load %arg14[%c0_38, %c8] : memref<8x32xf32, #tpu.memory_space<vmem>>, vector<8x8xf32>
    tpu.vector_store %arg14[%c0_38, %c8], %63 {strides = array<i32>} : memref<8x32xf32, #tpu.memory_space<vmem>>, vector<8x8xf32>,
    %65 = vector.extract_strided_slice %22 {offsets = [0, 0, 16], sizes = [8, 8, 8], strides = [1, 1, 1]} : vector<8x8x32xf32> to vector<8x8x8xf32>
    %cst_39 = arith.constant dense<0.000000e+00> : vector<8x8xf32>
    %66 = vector.multi_reduction <add>, %65, %cst_39 [2] : vector<8x8x8xf32> to vector<8x8xf32>
    %67 = arith.addf %13, %66 : vector<8x8xf32>
    %cst_40 = arith.constant dense<0xFF800000> : vector<8xf32>
    %68 = vector.multi_reduction <maximumf>, %67, %cst_40 [1] : vector<8x8xf32> to vector<8xf32>
    %69 = vector.shape_cast %68 : vector<8xf32> to vector<8x1xf32>
    %70 = vector.broadcast %69 : vector<8x1xf32> to vector<8x8xf32>
    %71 = arith.subf %67, %70 : vector<8x8xf32>
    %72 = math.exp %71 : vector<8x8xf32>
    %cst_41 = arith.constant dense<0.000000e+00> : vector<8xf32>
    %73 = vector.multi_reduction <add>, %72, %cst_41 [1] : vector<8x8xf32> to vector<8xf32>
    %74 = vector.shape_cast %73 : vector<8xf32> to vector<8x1xf32>
    %75 = tpu.reciprocal %74 {approx = true} : vector<8x1xf32> -> vector<8x1xf32>
    %76 = vector.broadcast %75 : vector<8x1xf32> to vector<8x8xf32>
    %77 = vector.broadcast %15 : vector<1x8xf32> to vector<8x8xf32>
    %78 = arith.mulf %76, %77 : vector<8x8xf32>
    %79 = arith.mulf %72, %78 : vector<8x8xf32>
    %c0_42 = arith.constant 0 : index
    %c2 = arith.constant 2 : index
    %c0_43 = arith.constant 0 : index
    %c0_44 = arith.constant 0 : index
    %80 = vector.load %arg13[%c0_42, %c2, %c0_43, %c0_44] : memref<1x4x8x8xf32, #tpu.memory_space<vmem>>, vector<1x1x8x8xf32>
    %81 = vector.shape_cast %80 : vector<1x1x8x8xf32> to vector<8x8xf32>
    %82 = vector.shape_cast %79 : vector<8x8xf32> to vector<1x1x8x8xf32>
    tpu.vector_store %arg13[%c0_42, %c2, %c0_43, %c0_44], %82 {strides = array<i32>} : memref<1x4x8x8xf32, #tpu.memory_space<vmem>>, vector<1x1x8x8xf32>,
    %83 = vector.extract_strided_slice %11 {offsets = [0, 16], sizes = [8, 8], strides = [1, 1]} : vector<8x32xf32> to vector<8x8xf32>
    %cst_45 = arith.constant dense<0.000000e+00> : vector<8x8xf32>
    %84 = tpu.matmul %79, %83, %cst_45 {dimension_numbers = #tpu.dot_dimension_numbers<[1], [0], [0], [1], [0, 0, 1, 1], [], []>} : vector<8x8xf32>, vector<8x8xf32>, vector<8x8xf32> -> vector<8x8xf32>
    %c0_46 = arith.constant 0 : index
    %c16 = arith.constant 16 : index
    %85 = vector.load %arg14[%c0_46, %c16] : memref<8x32xf32, #tpu.memory_space<vmem>>, vector<8x8xf32>
    tpu.vector_store %arg14[%c0_46, %c16], %84 {strides = array<i32>} : memref<8x32xf32, #tpu.memory_space<vmem>>, vector<8x8xf32>,
    %86 = vector.extract_strided_slice %22 {offsets = [0, 0, 24], sizes = [8, 8, 8], strides = [1, 1, 1]} : vector<8x8x32xf32> to vector<8x8x8xf32>
    %cst_47 = arith.constant dense<0.000000e+00> : vector<8x8xf32>
    %87 = vector.multi_reduction <add>, %86, %cst_47 [2] : vector<8x8x8xf32> to vector<8x8xf32>
    %88 = arith.addf %13, %87 : vector<8x8xf32>
    %cst_48 = arith.constant dense<0xFF800000> : vector<8xf32>
    %89 = vector.multi_reduction <maximumf>, %88, %cst_48 [1] : vector<8x8xf32> to vector<8xf32>
    %90 = vector.shape_cast %89 : vector<8xf32> to vector<8x1xf32>
    %91 = vector.broadcast %90 : vector<8x1xf32> to vector<8x8xf32>
    %92 = arith.subf %88, %91 : vector<8x8xf32>
    %93 = math.exp %92 : vector<8x8xf32>
    %cst_49 = arith.constant dense<0.000000e+00> : vector<8xf32>
    %94 = vector.multi_reduction <add>, %93, %cst_49 [1] : vector<8x8xf32> to vector<8xf32>
    %95 = vector.shape_cast %94 : vector<8xf32> to vector<8x1xf32>
    %96 = tpu.reciprocal %95 {approx = true} : vector<8x1xf32> -> vector<8x1xf32>
    %97 = vector.broadcast %96 : vector<8x1xf32> to vector<8x8xf32>
    %98 = vector.broadcast %15 : vector<1x8xf32> to vector<8x8xf32>
    %99 = arith.mulf %97, %98 : vector<8x8xf32>
    %100 = arith.mulf %93, %99 : vector<8x8xf32>
    %c0_50 = arith.constant 0 : index
    %c3 = arith.constant 3 : index
    %c0_51 = arith.constant 0 : index
    %c0_52 = arith.constant 0 : index
    %101 = vector.load %arg13[%c0_50, %c3, %c0_51, %c0_52] : memref<1x4x8x8xf32, #tpu.memory_space<vmem>>, vector<1x1x8x8xf32>
    %102 = vector.shape_cast %101 : vector<1x1x8x8xf32> to vector<8x8xf32>
    %103 = vector.shape_cast %100 : vector<8x8xf32> to vector<1x1x8x8xf32>
    tpu.vector_store %arg13[%c0_50, %c3, %c0_51, %c0_52], %103 {strides = array<i32>} : memref<1x4x8x8xf32, #tpu.memory_space<vmem>>, vector<1x1x8x8xf32>,
    %104 = vector.extract_strided_slice %11 {offsets = [0, 24], sizes = [8, 8], strides = [1, 1]} : vector<8x32xf32> to vector<8x8xf32>
    %cst_53 = arith.constant dense<0.000000e+00> : vector<8x8xf32>
    %105 = tpu.matmul %100, %104, %cst_53 {dimension_numbers = #tpu.dot_dimension_numbers<[1], [0], [0], [1], [0, 0, 1, 1], [], []>} : vector<8x8xf32>, vector<8x8xf32>, vector<8x8xf32> -> vector<8x8xf32>
    %c0_54 = arith.constant 0 : index
    %c24 = arith.constant 24 : index
    %106 = vector.load %arg14[%c0_54, %c24] : memref<8x32xf32, #tpu.memory_space<vmem>>, vector<8x8xf32>
    tpu.vector_store %arg14[%c0_54, %c24], %105 {strides = array<i32>} : memref<8x32xf32, #tpu.memory_space<vmem>>, vector<8x8xf32>,
    %c0_55 = arith.constant 0 : index
    %c0_56 = arith.constant 0 : index
    %107 = vector.load %arg14[%c0_55, %c0_56] : memref<8x32xf32, #tpu.memory_space<vmem>>, vector<8x32xf32>
    %c0_57 = arith.constant 0 : index
    %c0_58 = arith.constant 0 : index
    %108 = vector.load %arg10[%c0_57, %c0_58] : memref<32x32xf32, #tpu.memory_space<vmem>>, vector<32x32xf32>
    %cst_59 = arith.constant dense<0.000000e+00> : vector<8x32xf32>
    %109 = tpu.matmul %107, %108, %cst_59 {dimension_numbers = #tpu.dot_dimension_numbers<[1], [0], [0], [1], [0, 0, 1, 1], [], []>} : vector<8x32xf32>, vector<32x32xf32>, vector<8x32xf32> -> vector<8x32xf32>
    %c0_60 = arith.constant 0 : index
    %c0_61 = arith.constant 0 : index
    %110 = vector.load %arg11[%c0_60, %c0_61] : memref<1x32xf32, #tpu.memory_space<vmem>>, vector<1x32xf32>
    %111 = vector.broadcast %110 : vector<1x32xf32> to vector<8x32xf32>
    %112 = arith.addf %109, %111 : vector<8x32xf32>
    %c0_62 = arith.constant 0 : index
    %c0_63 = arith.constant 0 : index
    %c0_64 = arith.constant 0 : index
    %113 = vector.load %arg12[%c0_62, %c0_63, %c0_64] : memref<1x8x32xf32, #tpu.memory_space<vmem>>, vector<1x8x32xf32>
    %114 = vector.shape_cast %113 : vector<1x8x32xf32> to vector<8x32xf32>
    %115 = vector.shape_cast %112 : vector<8x32xf32> to vector<1x8x32xf32>
    tpu.vector_store %arg12[%c0_62, %c0_63, %c0_64], %115 {strides = array<i32>} : memref<1x8x32xf32, #tpu.memory_space<vmem>>, vector<1x8x32xf32>,
    return
  }
  func.func @transform_0(%arg0: i32, %arg1: i32) -> (i32, i32, i32) {
    %c0_i32 = arith.constant 0 : i32
    %c0_i32_0 = arith.constant 0 : i32
    return %arg0, %arg1, %c0_i32 : i32, i32, i32
  }
  func.func @transform_1(%arg0: i32, %arg1: i32) -> (i32, i32, i32) {
    %c0_i32 = arith.constant 0 : i32
    %c0_i32_0 = arith.constant 0 : i32
    %c0_i32_1 = arith.constant 0 : i32
    return %arg0, %c0_i32, %c0_i32_0 : i32, i32, i32
  }
  func.func @transform_2(%arg0: i32, %arg1: i32) -> (i32, i32, i32, i32) {
    %c0_i32 = arith.constant 0 : i32
    %c0_i32_0 = arith.constant 0 : i32
    %c0_i32_1 = arith.constant 0 : i32
    return %arg0, %arg1, %c0_i32, %c0_i32_0 : i32, i32, i32, i32
  }
  func.func @transform_3(%arg0: i32, %arg1: i32) -> (i32, i32, i32, i32) {
    %c0_i32 = arith.constant 0 : i32
    %c0_i32_0 = arith.constant 0 : i32
    %c0_i32_1 = arith.constant 0 : i32
    return %arg0, %c0_i32, %arg1, %c0_i32_0 : i32, i32, i32, i32
  }
  func.func @transform_4(%arg0: i32, %arg1: i32) -> (i32, i32, i32, i32) {
    %c0_i32 = arith.constant 0 : i32
    %c0_i32_0 = arith.constant 0 : i32
    %c0_i32_1 = arith.constant 0 : i32
    %c0_i32_2 = arith.constant 0 : i32
    return %arg0, %c0_i32, %c0_i32_0, %c0_i32_1 : i32, i32, i32, i32
  }
  func.func @transform_5(%arg0: i32, %arg1: i32) -> (i32, i32) {
    %c0_i32 = arith.constant 0 : i32
    %c0_i32_0 = arith.constant 0 : i32
    %c0_i32_1 = arith.constant 0 : i32
    return %c0_i32, %c0_i32_0 : i32, i32
  }
  func.func @transform_6(%arg0: i32, %arg1: i32) -> (i32, i32) {
    %c0_i32 = arith.constant 0 : i32
    %c0_i32_0 = arith.constant 0 : i32
    %c0_i32_1 = arith.constant 0 : i32
    return %c0_i32, %c0_i32_0 : i32, i32
  }
  func.func @transform_7(%arg0: i32, %arg1: i32) -> (i32, i32) {
    %c0_i32 = arith.constant 0 : i32
    %c0_i32_0 = arith.constant 0 : i32
    %c0_i32_1 = arith.constant 0 : i32
    return %c0_i32, %c0_i32_0 : i32, i32
  }
  func.func @transform_8(%arg0: i32, %arg1: i32) -> (i32, i32) {
    %c0_i32 = arith.constant 0 : i32
    %c0_i32_0 = arith.constant 0 : i32
    %c0_i32_1 = arith.constant 0 : i32
    return %c0_i32, %c0_i32_0 : i32, i32
  }
  func.func @transform_9(%arg0: i32, %arg1: i32) -> (i32, i32) {
    %c0_i32 = arith.constant 0 : i32
    %c0_i32_0 = arith.constant 0 : i32
    %c0_i32_1 = arith.constant 0 : i32
    return %c0_i32, %c0_i32_0 : i32, i32
  }
  func.func @transform_10(%arg0: i32, %arg1: i32) -> (i32, i32, i32) {
    %c0_i32 = arith.constant 0 : i32
    %c0_i32_0 = arith.constant 0 : i32
    return %arg0, %arg1, %c0_i32 : i32, i32, i32
  }
  func.func @transform_11(%arg0: i32, %arg1: i32) -> (i32, i32, i32, i32) {
    %c0_i32 = arith.constant 0 : i32
    %c0_i32_0 = arith.constant 0 : i32
    %c0_i32_1 = arith.constant 0 : i32
    return %arg0, %c0_i32, %arg1, %c0_i32_0 : i32, i32, i32, i32
  }
}

</mosaic_0001>

<llo_original>
// kernel: tpu_custom_call.1
$region0: #{tpu_custom_call.1}
  #allocation0 [shape = 'u32[]', space=smem, size = 0x4, offset = 0x4, fixed_abs, tag = 'smem constant byte address 0x4 - core index']
  #allocation1 [shape = 'u32[144,128]{1,0:T(1,128)}', space=vmem, size = 0x12000, scoped, tag = 'internal scratch']
  #allocation2 [shape = 'f32[8,32]{1,0:T(8,128)}', space=vmem, size = 0x1000, scoped, tag = 'scratch operand']
  %s0 = inlined_call_operand.hbm [shape: f32[2,8,32], index: 0, kind: input, shape index: {}]
  %s1 = inlined_call_operand.hbm [shape: f32[2,8,32], index: 1, kind: input, shape index: {}]
  %s2 = inlined_call_operand.hbm [shape: f32[2,8,8,32], index: 2, kind: input, shape index: {}]
  %s3 = inlined_call_operand.hbm [shape: f32[2,1,8,8], index: 3, kind: input, shape index: {}]
  %s4 = inlined_call_operand.vmem [shape: f32[2,1,1,8], index: 4, kind: input, shape index: {}]
  %s5 = inlined_call_operand.vmem [shape: f32[32,32], index: 5, kind: input, shape index: {}]
  %s6 = inlined_call_operand.vmem [shape: f32[1,32], index: 6, kind: input, shape index: {}]
  %s7 = inlined_call_operand.vmem [shape: f32[32,4], index: 7, kind: input, shape index: {}]
  %s8 = inlined_call_operand.hbm [shape: f32[32,32], index: 8, kind: input, shape index: {}]
  %s9 = inlined_call_operand.vmem [shape: f32[1,32], index: 9, kind: input, shape index: {}]
  %s10 = inlined_call_operand.hbm [shape: f32[2,8,32], index: 10, kind: output, shape index: {0}]
  %s11 = inlined_call_operand.hbm [shape: f32[2,4,8,8], index: 11, kind: output, shape index: {1}]
  %12 = xla_tuple %s10, %s11
  %s13 = sld [smem:[#allocation0]]
  $region101: #{tpu_custom_call.1} parent=0
    _
  %s15 = ssub.s32 1, %s13
  %s16 = scalar_select 0, %s15, %s13
  $region1: #{tpu_custom_call.1} parent=0
    #allocation3 [shape = 'u8[8192]{0}', space=vmem, size = 0x2000, scoped, tag = 'input window, operand 0']
    #allocation4 [shape = 's32[2]{0}', space=sflag, size = 0x8, scoped, tag = 'scoped memory for tpu_custom_call.1']
    #allocation5 [shape = 's32[2]{0}', space=sflag, size = 0x8, scoped, tag = 'scoped memory for tpu_custom_call.1']
    #allocation6 [shape = 'u8[8192]{0}', space=vmem, size = 0x2000, scoped, tag = 'input window, operand 1']
    #allocation7 [shape = 's32[2]{0}', space=sflag, size = 0x8, scoped, tag = 'scoped memory for tpu_custom_call.1']
    #allocation8 [shape = 'u8[65536]{0}', space=vmem, size = 0x10000, scoped, tag = 'input window, operand 2']
    #allocation9 [shape = 'u8[8192]{0}', space=vmem, size = 0x2000, scoped, tag = 'input window, operand 3']
    #allocation10 [shape = 's32[2]{0}', space=sflag, size = 0x8, scoped, tag = 'scoped memory for tpu_custom_call.1']
    #allocation11 [shape = 'u8[16384]{0}', space=vmem, size = 0x4000, scoped, tag = 'input window, operand 8, single buffered']
    #allocation12 [shape = 'u8[8192]{0}', space=vmem, size = 0x2000, scoped, tag = 'output window, operand 0']
    #allocation13 [shape = 'u8[32768]{0}', space=vmem, size = 0x8000, scoped, tag = 'output window, operand 1']
    #allocation14 [shape = 's32[2]{0}', space=sflag, size = 0x8, scoped, tag = 'scoped memory for tpu_custom_call.1']
    %17 = vsyncpa [#allocation4], 0
    %s18 = scalar_lea.sflag [#allocation4], 1
    %19 = vsyncpa %s18, 0
    %20 = vsyncpa [#allocation7], 0
    %s21 = scalar_lea.sflag [#allocation7], 1
    %22 = vsyncpa %s21, 0
    %23 = vsyncpa [#allocation10], 0
    %s24 = scalar_lea.sflag [#allocation10], 1
    %25 = vsyncpa %s24, 0
    %26 = vsyncpa [#allocation5], 0
    %s27 = scalar_lea.sflag [#allocation5], 1
    %28 = vsyncpa %s27, 0
    %29 = vsyncpa [#allocation14], 0
    %s30 = scalar_lea.sflag [#allocation14], 1
    %31 = vsyncpa %s30, 0
    loop: start=0, step=1, limit=4
    $region2: #{tpu_custom_call.1} parent=1 // loop_pre_header
      _
    $region3: #{tpu_custom_call.1} parent=1 // loop_header
      %s33 = sphi 0, %s37
      %p34 = scmp.ge.s32.totalorder %s33, 4
      %s40 = sphi 0, %s52
      %s41 = sphi 0, %s48
      %s42 = sphi 0, %s40
      %s43 = sphi 0, %s41
      %s44 = sphi 0, %s42
      %s45 = sphi 0, %s43
      %s57 = sphi 0, %s59
      %s60 = sphi 0, %s57
      %s61 = sphi 0, %s60
      %s77 = sphi 0, %s61
      %s83 = sphi 0, %s85
      %s86 = sphi 0, %s83
      %s87 = sphi 0, %s86
      %s103 = sphi 0, %s87
      %s111 = sphi 0, %s113
      %s114 = sphi 0, %s111
      %s115 = sphi 0, %s114
      %s131 = sphi 0, %s115
      %s139 = sphi 0, %s141
      %s142 = sphi 0, %s139
      %s143 = sphi 0, %s142
      %s159 = sphi 0, %s143
      %s165 = sphi 0, %s167
      %s168 = sphi 0, %s165
      %s169 = sphi 0, %s168
      %s185 = sphi 0, %s169
      %s189 = sphi 0, %s189
      %s191 = sphi 0, %s189
      %s192 = sphi 0, %s191
      %s206 = sphi 0, %s192
      %s210 = sphi 0, %s210
      %s212 = sphi 0, %s210
      %s213 = sphi 0, %s212
      %s227 = sphi 0, %s213
      %s231 = sphi 0, %s231
      %s233 = sphi 0, %s231
      %s234 = sphi 0, %s233
      %s248 = sphi 0, %s234
      %s252 = sphi 0, %s252
      %s254 = sphi 0, %s252
      %s255 = sphi 0, %s254
      %s269 = sphi 0, %s255
      %s273 = sphi 0, %s273
      %s275 = sphi 0, %s273
      %s276 = sphi 0, %s275
      %s290 = sphi 0, %s276
      %s298 = sphi 0, %s300
      %s301 = sphi 0, %s298
      %s302 = sphi 0, %s301
      %s318 = sphi 0, %s302
      %s326 = sphi 0, %s328
      %s329 = sphi 0, %s326
      %s330 = sphi 0, %s329
      %s346 = sphi 0, %s330
    $region4: #{tpu_custom_call.1} parent=1 // loop_header_branch
      %36 = sbr.rel (%p34) target = $region8
    $region5: #{tpu_custom_call.1} parent=1 // loop_body
      %s38 = ssub.s32 %s33, 1
      %s39 = ssub.s32 %s33, 2
      %s46 = sadd.s32 1, %s41
      %p47 = scmp.ge.s32.totalorder %s46, 1
      %s48 = scalar_select %p47, 0, %s46
      %s49 = sadd.s32 1, %s40
      %s50 = scalar_select %p47, %s49, %s40
      %p51 = scmp.ge.s32.totalorder %s50, 2
      %s52 = scalar_select %p51, 0, %s50
      %s53 = ssub.s32 %s40, %s52
      %s54 = ssub.s32 %s41, %s48
      %s55 = sor.u32 %s53, %s54
      %p56 = scmp.eq.s32.totalorder %s55, 0
      %s58 = sadd.s32 %s57, 1
      %s59 = scalar_select %p56, %s57, %s58
      %p62 = pneg %p56
      %p63 = scmp.eq.s32.totalorder %s33, 1
      %p64 = por %p62, %p63
      %p65 = scmp.ne.s32.totalorder %s57, %s60
      %p66 = scmp.eq.s32.totalorder %s33, 0
      %p67 = por %p65, %p66
      %p68 = scmp.ne.s32.totalorder %s57, %s60
      %p69 = scmp.eq.s32.totalorder %s38, 1
      %p70 = por %p68, %p69
      %p71 = scmp.ne.s32.totalorder %s60, %s61
      %p72 = scmp.eq.s32.totalorder %s38, 0
      %p73 = por %p71, %p72
      %p74 = scmp.ne.s32.totalorder %s60, %s61
      %p75 = scmp.eq.s32.totalorder %s39, 1
      %p76 = por %p74, %p75
      %p78 = scmp.ne.s32.totalorder %s61, %s77
      %p79 = scmp.eq.s32.totalorder %s39, 0
      %p80 = por %p78, %p79
      %s81 = ssub.s32 %s40, %s52
      %p82 = scmp.eq.s32.totalorder %s81, 0
      %s84 = sadd.s32 %s83, 1
      %s85 = scalar_select %p82, %s83, %s84
      %p88 = pneg %p82
      %p89 = scmp.eq.s32.totalorder %s33, 1
      %p90 = por %p88, %p89
      %p91 = scmp.ne.s32.totalorder %s83, %s86
      %p92 = scmp.eq.s32.totalorder %s33, 0
      %p93 = por %p91, %p92
      %p94 = scmp.ne.s32.totalorder %s83, %s86
      %p95 = scmp.eq.s32.totalorder %s38, 1
      %p96 = por %p94, %p95
      %p97 = scmp.ne.s32.totalorder %s86, %s87
      %p98 = scmp.eq.s32.totalorder %s38, 0
      %p99 = por %p97, %p98
      %p100 = scmp.ne.s32.totalorder %s86, %s87
      %p101 = scmp.eq.s32.totalorder %s39, 1
      %p102 = por %p100, %p101
      %p104 = scmp.ne.s32.totalorder %s87, %s103
      %p105 = scmp.eq.s32.totalorder %s39, 0
      %p106 = por %p104, %p105
      %s107 = ssub.s32 %s40, %s52
      %s108 = ssub.s32 %s41, %s48
      %s109 = sor.u32 %s107, %s108
      %p110 = scmp.eq.s32.totalorder %s109, 0
      %s112 = sadd.s32 %s111, 1
      %s113 = scalar_select %p110, %s111, %s112
      %p116 = pneg %p110
      %p117 = scmp.eq.s32.totalorder %s33, 1
      %p118 = por %p116, %p117
      %p119 = scmp.ne.s32.totalorder %s111, %s114
      %p120 = scmp.eq.s32.totalorder %s33, 0
      %p121 = por %p119, %p120
      %p122 = scmp.ne.s32.totalorder %s111, %s114
      %p123 = scmp.eq.s32.totalorder %s38, 1
      %p124 = por %p122, %p123
      %p125 = scmp.ne.s32.totalorder %s114, %s115
      %p126 = scmp.eq.s32.totalorder %s38, 0
      %p127 = por %p125, %p126
      %p128 = scmp.ne.s32.totalorder %s114, %s115
      %p129 = scmp.eq.s32.totalorder %s39, 1
      %p130 = por %p128, %p129
      %p132 = scmp.ne.s32.totalorder %s115, %s131
      %p133 = scmp.eq.s32.totalorder %s39, 0
      %p134 = por %p132, %p133
      %s135 = ssub.s32 %s40, %s52
      %s136 = ssub.s32 %s41, %s48
      %s137 = sor.u32 %s135, %s136
      %p138 = scmp.eq.s32.totalorder %s137, 0
      %s140 = sadd.s32 %s139, 1
      %s141 = scalar_select %p138, %s139, %s140
      %p144 = pneg %p138
      %p145 = scmp.eq.s32.totalorder %s33, 1
      %p146 = por %p144, %p145
      %p147 = scmp.ne.s32.totalorder %s139, %s142
      %p148 = scmp.eq.s32.totalorder %s33, 0
      %p149 = por %p147, %p148
      %p150 = scmp.ne.s32.totalorder %s139, %s142
      %p151 = scmp.eq.s32.totalorder %s38, 1
      %p152 = por %p150, %p151
      %p153 = scmp.ne.s32.totalorder %s142, %s143
      %p154 = scmp.eq.s32.totalorder %s38, 0
      %p155 = por %p153, %p154
      %p156 = scmp.ne.s32.totalorder %s142, %s143
      %p157 = scmp.eq.s32.totalorder %s39, 1
      %p158 = por %p156, %p157
      %p160 = scmp.ne.s32.totalorder %s143, %s159
      %p161 = scmp.eq.s32.totalorder %s39, 0
      %p162 = por %p160, %p161
      %s163 = ssub.s32 %s40, %s52
      %p164 = scmp.eq.s32.totalorder %s163, 0
      %s166 = sadd.s32 %s165, 1
      %s167 = scalar_select %p164, %s165, %s166
      %p170 = pneg %p164
      %p171 = scmp.eq.s32.totalorder %s33, 1
      %p172 = por %p170, %p171
      %p173 = scmp.ne.s32.totalorder %s165, %s168
      %p174 = scmp.eq.s32.totalorder %s33, 0
      %p175 = por %p173, %p174
      %p176 = scmp.ne.s32.totalorder %s165, %s168
      %p177 = scmp.eq.s32.totalorder %s38, 1
      %p178 = por %p176, %p177
      %p179 = scmp.ne.s32.totalorder %s168, %s169
      %p180 = scmp.eq.s32.totalorder %s38, 0
      %p181 = por %p179, %p180
      %p182 = scmp.ne.s32.totalorder %s168, %s169
      %p183 = scmp.eq.s32.totalorder %s39, 1
      %p184 = por %p182, %p183
      %p186 = scmp.ne.s32.totalorder %s169, %s185
      %p187 = scmp.eq.s32.totalorder %s39, 0
      %p188 = por %p186, %p187
      %s190 = sadd.s32 %s189, 1
      %p193 = scmp.eq.s32.totalorder %s33, 1
      %p194 = scmp.ne.s32.totalorder %s189, %s191
      %p195 = scmp.eq.s32.totalorder %s33, 0
      %p196 = por %p194, %p195
      %p197 = scmp.ne.s32.totalorder %s189, %s191
      %p198 = scmp.eq.s32.totalorder %s38, 1
      %p199 = por %p197, %p198
      %p200 = scmp.ne.s32.totalorder %s191, %s192
      %p201 = scmp.eq.s32.totalorder %s38, 0
      %p202 = por %p200, %p201
      %p203 = scmp.ne.s32.totalorder %s191, %s192
      %p204 = scmp.eq.s32.totalorder %s39, 1
      %p205 = por %p203, %p204
      %p207 = scmp.ne.s32.totalorder %s192, %s206
      %p208 = scmp.eq.s32.totalorder %s39, 0
      %p209 = por %p207, %p208
      %s211 = sadd.s32 %s210, 1
      %p214 = scmp.eq.s32.totalorder %s33, 1
      %p215 = scmp.ne.s32.totalorder %s210, %s212
      %p216 = scmp.eq.s32.totalorder %s33, 0
      %p217 = por %p215, %p216
      %p218 = scmp.ne.s32.totalorder %s210, %s212
      %p219 = scmp.eq.s32.totalorder %s38, 1
      %p220 = por %p218, %p219
      %p221 = scmp.ne.s32.totalorder %s212, %s213
      %p222 = scmp.eq.s32.totalorder %s38, 0
      %p223 = por %p221, %p222
      %p224 = scmp.ne.s32.totalorder %s212, %s213
      %p225 = scmp.eq.s32.totalorder %s39, 1
      %p226 = por %p224, %p225
      %p228 = scmp.ne.s32.totalorder %s213, %s227
      %p229 = scmp.eq.s32.totalorder %s39, 0
      %p230 = por %p228, %p229
      %s232 = sadd.s32 %s231, 1
      %p235 = scmp.eq.s32.totalorder %s33, 1
      %p236 = scmp.ne.s32.totalorder %s231, %s233
      %p237 = scmp.eq.s32.totalorder %s33, 0
      %p238 = por %p236, %p237
      %p239 = scmp.ne.s32.totalorder %s231, %s233
      %p240 = scmp.eq.s32.totalorder %s38, 1
      %p241 = por %p239, %p240
      %p242 = scmp.ne.s32.totalorder %s233, %s234
      %p243 = scmp.eq.s32.totalorder %s38, 0
      %p244 = por %p242, %p243
      %p245 = scmp.ne.s32.totalorder %s233, %s234
      %p246 = scmp.eq.s32.totalorder %s39, 1
      %p247 = por %p245, %p246
      %p249 = scmp.ne.s32.totalorder %s234, %s248
      %p250 = scmp.eq.s32.totalorder %s39, 0
      %p251 = por %p249, %p250
      %s253 = sadd.s32 %s252, 1
      %p256 = scmp.eq.s32.totalorder %s33, 1
      %p257 = scmp.ne.s32.totalorder %s252, %s254
      %p258 = scmp.eq.s32.totalorder %s33, 0
      %p259 = por %p257, %p258
      %p260 = scmp.ne.s32.totalorder %s252, %s254
      %p261 = scmp.eq.s32.totalorder %s38, 1
      %p262 = por %p260, %p261
      %p263 = scmp.ne.s32.totalorder %s254, %s255
      %p264 = scmp.eq.s32.totalorder %s38, 0
      %p265 = por %p263, %p264
      %p266 = scmp.ne.s32.totalorder %s254, %s255
      %p267 = scmp.eq.s32.totalorder %s39, 1
      %p268 = por %p266, %p267
      %p270 = scmp.ne.s32.totalorder %s255, %s269
      %p271 = scmp.eq.s32.totalorder %s39, 0
      %p272 = por %p270, %p271
      %s274 = sadd.s32 %s273, 1
      %p277 = scmp.eq.s32.totalorder %s33, 1
      %p278 = scmp.ne.s32.totalorder %s273, %s275
      %p279 = scmp.eq.s32.totalorder %s33, 0
      %p280 = por %p278, %p279
      %p281 = scmp.ne.s32.totalorder %s273, %s275
      %p282 = scmp.eq.s32.totalorder %s38, 1
      %p283 = por %p281, %p282
      %p284 = scmp.ne.s32.totalorder %s275, %s276
      %p285 = scmp.eq.s32.totalorder %s38, 0
      %p286 = por %p284, %p285
      %p287 = scmp.ne.s32.totalorder %s275, %s276
      %p288 = scmp.eq.s32.totalorder %s39, 1
      %p289 = por %p287, %p288
      %p291 = scmp.ne.s32.totalorder %s276, %s290
      %p292 = scmp.eq.s32.totalorder %s39, 0
      %p293 = por %p291, %p292
      %s294 = ssub.s32 %s40, %s52
      %s295 = ssub.s32 %s41, %s48
      %s296 = sor.u32 %s294, %s295
      %p297 = scmp.eq.s32.totalorder %s296, 0
      %s299 = sadd.s32 %s298, 1
      %s300 = scalar_select %p297, %s298, %s299
      %p303 = pneg %p297
      %p304 = scmp.eq.s32.totalorder %s33, 1
      %p305 = por %p303, %p304
      %p306 = scmp.ne.s32.totalorder %s298, %s301
      %p307 = scmp.eq.s32.totalorder %s33, 0
      %p308 = por %p306, %p307
      %p309 = scmp.ne.s32.totalorder %s298, %s301
      %p310 = scmp.eq.s32.totalorder %s38, 1
      %p311 = por %p309, %p310
      %p312 = scmp.ne.s32.totalorder %s301, %s302
      %p313 = scmp.eq.s32.totalorder %s38, 0
      %p314 = por %p312, %p313
      %p315 = scmp.ne.s32.totalorder %s301, %s302
      %p316 = scmp.eq.s32.totalorder %s39, 1
      %p317 = por %p315, %p316
      %p319 = scmp.ne.s32.totalorder %s302, %s318
      %p320 = scmp.eq.s32.totalorder %s39, 0
      %p321 = por %p319, %p320
      %s322 = ssub.s32 %s40, %s52
      %s323 = ssub.s32 %s41, %s48
      %s324 = sor.u32 %s322, %s323
      %p325 = scmp.eq.s32.totalorder %s324, 0
      %s327 = sadd.s32 %s326, 1
      %s328 = scalar_select %p325, %s326, %s327
      %p331 = pneg %p325
      %p332 = scmp.eq.s32.totalorder %s33, 1
      %p333 = por %p331, %p332
      %p334 = scmp.ne.s32.totalorder %s326, %s329
      %p335 = scmp.eq.s32.totalorder %s33, 0
      %p336 = por %p334, %p335
      %p337 = scmp.ne.s32.totalorder %s326, %s329
      %p338 = scmp.eq.s32.totalorder %s38, 1
      %p339 = por %p337, %p338
      %p340 = scmp.ne.s32.totalorder %s329, %s330
      %p341 = scmp.eq.s32.totalorder %s38, 0
      %p342 = por %p340, %p341
      %p343 = scmp.ne.s32.totalorder %s329, %s330
      %p344 = scmp.eq.s32.totalorder %s39, 1
      %p345 = por %p343, %p344
      %p347 = scmp.ne.s32.totalorder %s330, %s346
      %p348 = scmp.eq.s32.totalorder %s39, 0
      %p349 = por %p347, %p348
      %p350 = scmp.le.s32.totalorder 1, %s33
      %p351 = scmp.lt.s32.totalorder %s33, 3
      %p352 = pnand %p350, %p351
      %p353 = pneg %p352
      // Predicated region
      $region9: #{tpu_custom_call.1} parent=5 // pred_check
        _
      $region10: #{tpu_custom_call.1} parent=5 // pred_check_branch
        %355 = sbr.rel (%p352) target = $region12
      $region11: #{tpu_custom_call.1} parent=5 // pred_region
        %s356 = ssub.s32 %s33, 1
        // Predicated region
        $region13: #{tpu_custom_call.1} parent=11 // pred_check
          %p357 = pneg %p202
        $region14: #{tpu_custom_call.1} parent=11 // pred_check_branch
          %359 = sbr.rel (%p357) target = $region16
        $region15: #{tpu_custom_call.1} parent=11 // pred_region
          _
        $region16: #{tpu_custom_call.1} parent=11 // pred_fallthru
          _
        // Predicated region
        $region17: #{tpu_custom_call.1} parent=11 // pred_check
          %p360 = pneg %p223
        $region18: #{tpu_custom_call.1} parent=11 // pred_check_branch
          %362 = sbr.rel (%p360) target = $region20
        $region19: #{tpu_custom_call.1} parent=11 // pred_region
          _
        $region20: #{tpu_custom_call.1} parent=11 // pred_fallthru
          _
        // Predicated region
        $region21: #{tpu_custom_call.1} parent=11 // pred_check
          %p363 = pneg %p244
        $region22: #{tpu_custom_call.1} parent=11 // pred_check_branch
          %365 = sbr.rel (%p363) target = $region24
        $region23: #{tpu_custom_call.1} parent=11 // pred_region
          _
        $region24: #{tpu_custom_call.1} parent=11 // pred_fallthru
          _
        // Predicated region
        $region25: #{tpu_custom_call.1} parent=11 // pred_check
          %p366 = pneg %p265
        $region26: #{tpu_custom_call.1} parent=11 // pred_check_branch
          %368 = sbr.rel (%p366) target = $region28
        $region27: #{tpu_custom_call.1} parent=11 // pred_region
          %s370 = ssub.s32 512, 512
          %371 = vsyncadd [#allocation10], %s370
          %s372 = sshll.u32 [#allocation11], 4
          %s373 = int_to_ptr.vmem [resolvable:$true] %s372
          %378 = dma.hbm_to_vmem [thread:$0]  %s8, 512, %s373, [#allocation10], 128, 128, 8
        $region28: #{tpu_custom_call.1} parent=11 // pred_fallthru
          _
        // Predicated region
        $region29: #{tpu_custom_call.1} parent=11 // pred_check
          %p379 = pneg %p286
        $region30: #{tpu_custom_call.1} parent=11 // pred_check_branch
          %381 = sbr.rel (%p379) target = $region32
        $region31: #{tpu_custom_call.1} parent=11 // pred_region
          _
        $region32: #{tpu_custom_call.1} parent=11 // pred_fallthru
          _
      $region12: #{tpu_custom_call.1} parent=5 // pred_fallthru
        _
      %p382 = scmp.lt.s32.totalorder %s33, 2
      // Predicated region
      $region33: #{tpu_custom_call.1} parent=5 // pred_check
        %p383 = pneg %p382
      $region34: #{tpu_custom_call.1} parent=5 // pred_check_branch
        %385 = sbr.rel (%p383) target = $region36
      $region35: #{tpu_custom_call.1} parent=5 // pred_region
        // Predicated region
        $region37: #{tpu_custom_call.1} parent=35 // pred_check
          %p386 = pneg %p67
        $region38: #{tpu_custom_call.1} parent=35 // pred_check_branch
          %388 = sbr.rel (%p386) target = $region40
        $region39: #{tpu_custom_call.1} parent=35 // pred_region
          %s389 = sand.u32 %s57, 1
          %s390 = scalar_lea.sflag [#allocation4], %s389
          %s391 = sand.u32 %s57, 1
          %s392 = smul.addr %s391, 8
          %s393 = scalar_lea.vmem [#allocation3], %s392
          %s395 = ssub.s32 128, 128
          %396 = vsyncadd %s390, %s395
          %s397 = sadd.s32 %s41, %s40
          %s398 = smul.addr %s397, 128
          %s399 = scalar_lea.hbm %s0, %s398
          %s401 = sshll.u32 %s393, 4
          %s402 = int_to_ptr.vmem [resolvable:$true] %s401
          %404 = dma.hbm_to_vmem [thread:$0]  %s399, 128, %s402, %s390
        $region40: #{tpu_custom_call.1} parent=35 // pred_fallthru
          _
        // Predicated region
        $region41: #{tpu_custom_call.1} parent=35 // pred_check
          %p405 = pneg %p93
        $region42: #{tpu_custom_call.1} parent=35 // pred_check_branch
          %407 = sbr.rel (%p405) target = $region44
        $region43: #{tpu_custom_call.1} parent=35 // pred_region
          %s408 = sand.u32 %s33, 1
          %s409 = scalar_lea.sflag [#allocation7], %s408
          %s410 = sand.u32 %s83, 1
          %s411 = smul.addr %s410, 8
          %s412 = scalar_lea.vmem [#allocation6], %s411
          %s414 = ssub.s32 128, 128
          %415 = vsyncadd %s409, %s414
          %s416 = smul.addr %s40, 128
          %s417 = scalar_lea.hbm %s1, %s416
          %s419 = sshll.u32 %s412, 4
          %s420 = int_to_ptr.vmem [resolvable:$true] %s419
          %422 = dma.hbm_to_vmem [thread:$0]  %s417, 128, %s420, %s409
        $region44: #{tpu_custom_call.1} parent=35 // pred_fallthru
          _
        // Predicated region
        $region45: #{tpu_custom_call.1} parent=35 // pred_check
          %p423 = pneg %p121
        $region46: #{tpu_custom_call.1} parent=35 // pred_check_branch
          %425 = sbr.rel (%p423) target = $region48
        $region47: #{tpu_custom_call.1} parent=35 // pred_region
          %s426 = sand.u32 %s33, 1
          %s427 = scalar_lea.sflag [#allocation7], %s426
          %s428 = sand.u32 %s111, 1
          %s429 = smul.addr %s428, 64
          %s430 = scalar_lea.vmem [#allocation8], %s429
          %s431 = smul.u32 8, %s41
          %s433 = ssub.s32 1024, 1024
          %434 = vsyncadd %s427, %s433
          %s435 = smul.addr %s40, 8
          %s436 = sadd.s32 %s431, %s435
          %s437 = smul.addr %s436, 128
          %s438 = scalar_lea.hbm %s2, %s437
          %s439 = sshll.u32 %s430, 4
          %s440 = int_to_ptr.vmem [resolvable:$true] %s439
          %445 = dma.hbm_to_vmem [thread:$0]  %s438, 1024, %s440, %s427, 128, 128, 8
        $region48: #{tpu_custom_call.1} parent=35 // pred_fallthru
          _
        // Predicated region
        $region49: #{tpu_custom_call.1} parent=35 // pred_check
          %p446 = pneg %p149
        $region50: #{tpu_custom_call.1} parent=35 // pred_check_branch
          %448 = sbr.rel (%p446) target = $region52
        $region51: #{tpu_custom_call.1} parent=35 // pred_region
          %s449 = sand.u32 %s33, 1
          %s450 = scalar_lea.sflag [#allocation10], %s449
          %s451 = sand.u32 %s139, 1
          %s452 = smul.addr %s451, 8
          %s453 = scalar_lea.vmem [#allocation9], %s452
          %s455 = ssub.s32 128, 128
          %456 = vsyncadd %s450, %s455
          %s457 = sadd.s32 %s41, %s40
          %s458 = smul.addr %s457, 128
          %s459 = scalar_lea.hbm %s3, %s458
          %s461 = sshll.u32 %s453, 4
          %s462 = int_to_ptr.vmem [resolvable:$true] %s461
          %464 = dma.hbm_to_vmem [thread:$0]  %s459, 128, %s462, %s450
        $region52: #{tpu_custom_call.1} parent=35 // pred_fallthru
          _
        // Predicated region
        $region53: #{tpu_custom_call.1} parent=35 // pred_check
          %p465 = pneg %p175
        $region54: #{tpu_custom_call.1} parent=35 // pred_check_branch
          %467 = sbr.rel (%p465) target = $region56
        $region55: #{tpu_custom_call.1} parent=35 // pred_region
          %p468 = scmp.lt.s32.totalorder %s40, 1
          %s469 = scalar_select %p468, %s40, 1
          %s470 = scalar_lea.vmem %s4, %s469
        $region56: #{tpu_custom_call.1} parent=35 // pred_fallthru
          _
      $region36: #{tpu_custom_call.1} parent=5 // pred_fallthru
        _
      %p471 = scmp.le.s32.totalorder 1, %s33
      %p472 = scmp.lt.s32.totalorder %s33, 3
      %p473 = pnand %p471, %p472
      %p474 = pneg %p473
      // Predicated region
      $region57: #{tpu_custom_call.1} parent=5 // pred_check
        _
      $region58: #{tpu_custom_call.1} parent=5 // pred_check_branch
        %476 = sbr.rel (%p473) target = $region60
      $region59: #{tpu_custom_call.1} parent=5 // pred_region
        %s477 = ssub.s32 %s33, 1
        %s478 = sand.u32 %s60, 1
        %s479 = scalar_lea.sflag [#allocation4], %s478
        %s480 = sand.u32 %s60, 1
        %s481 = smul.addr %s480, 8
        %s482 = scalar_lea.vmem [#allocation3], %s481
        // Predicated region
        $region61: #{tpu_custom_call.1} parent=59 // pred_check
          %p483 = pneg %p73
        $region62: #{tpu_custom_call.1} parent=59 // pred_check_branch
          %485 = sbr.rel (%p483) target = $region64
        $region63: #{tpu_custom_call.1} parent=59 // pred_region
          %486 = dma.done %s479, 128
        $region64: #{tpu_custom_call.1} parent=59 // pred_fallthru
          _
        %s487 = sand.u32 %s38, 1
        %s488 = scalar_lea.sflag [#allocation7], %s487
        %s489 = sand.u32 %s86, 1
        %s490 = smul.addr %s489, 8
        %s491 = scalar_lea.vmem [#allocation6], %s490
        // Predicated region
        $region65: #{tpu_custom_call.1} parent=59 // pred_check
          %p492 = pneg %p99
        $region66: #{tpu_custom_call.1} parent=59 // pred_check_branch
          %494 = sbr.rel (%p492) target = $region68
        $region67: #{tpu_custom_call.1} parent=59 // pred_region
          %495 = dma.done %s488, 128
        $region68: #{tpu_custom_call.1} parent=59 // pred_fallthru
          _
        %s496 = sand.u32 %s38, 1
        %s497 = scalar_lea.sflag [#allocation7], %s496
        %s498 = sand.u32 %s114, 1
        %s499 = smul.addr %s498, 64
        %s500 = scalar_lea.vmem [#allocation8], %s499
        // Predicated region
        $region69: #{tpu_custom_call.1} parent=59 // pred_check
          %p501 = pneg %p127
        $region70: #{tpu_custom_call.1} parent=59 // pred_check_branch
          %503 = sbr.rel (%p501) target = $region72
        $region71: #{tpu_custom_call.1} parent=59 // pred_region
          %504 = dma.done %s497, 1024
        $region72: #{tpu_custom_call.1} parent=59 // pred_fallthru
          _
        %s505 = sand.u32 %s38, 1
        %s506 = scalar_lea.sflag [#allocation10], %s505
        %s507 = sand.u32 %s142, 1
        %s508 = smul.addr %s507, 8
        %s509 = scalar_lea.vmem [#allocation9], %s508
        // Predicated region
        $region73: #{tpu_custom_call.1} parent=59 // pred_check
          %p510 = pneg %p155
        $region74: #{tpu_custom_call.1} parent=59 // pred_check_branch
          %512 = sbr.rel (%p510) target = $region76
        $region75: #{tpu_custom_call.1} parent=59 // pred_region
          %513 = dma.done %s506, 128
        $region76: #{tpu_custom_call.1} parent=59 // pred_fallthru
          _
        // Predicated region
        $region77: #{tpu_custom_call.1} parent=59 // pred_check
          %p514 = pneg %p265
        $region78: #{tpu_custom_call.1} parent=59 // pred_check_branch
          %516 = sbr.rel (%p514) target = $region80
        $region79: #{tpu_custom_call.1} parent=59 // pred_region
          %517 = dma.done [#allocation10], 512
        $region80: #{tpu_custom_call.1} parent=59 // pred_fallthru
          _
        %s518 = sand.u32 %s60, 1
        %s519 = scalar_lea.sflag [#allocation4], %s518
        %s520 = sand.u32 %s60, 1
        %s521 = smul.addr %s520, 8
        %s522 = scalar_lea.vmem [#allocation3], %s521
        %p523 = pneg %p73
        %p524 = pneg %p70
        %s525 = sand.u32 %s38, 1
        %s526 = scalar_lea.sflag [#allocation7], %s525
        %s527 = sand.u32 %s86, 1
        %s528 = smul.addr %s527, 8
        %s529 = scalar_lea.vmem [#allocation6], %s528
        %p530 = pneg %p99
        %p531 = pneg %p96
        %s532 = sand.u32 %s38, 1
        %s533 = scalar_lea.sflag [#allocation7], %s532
        %s534 = sand.u32 %s114, 1
        %s535 = smul.addr %s534, 64
        %s536 = scalar_lea.vmem [#allocation8], %s535
        %p537 = pneg %p127
        %p538 = pneg %p124
        %s539 = sand.u32 %s38, 1
        %s540 = scalar_lea.sflag [#allocation10], %s539
        %s541 = sand.u32 %s142, 1
        %s542 = smul.addr %s541, 8
        %s543 = scalar_lea.vmem [#allocation9], %s542
        %p544 = pneg %p155
        %p545 = pneg %p152
        %p546 = scmp.lt.s32.totalorder %s42, 1
        %s547 = scalar_select %p546, %s42, 1
        %s548 = scalar_lea.vmem %s4, %s547
        %p549 = pneg %p181
        %p550 = pneg %p178
        %p551 = pneg %p202
        %p552 = pneg %p199
        %p553 = pneg %p223
        %p554 = pneg %p220
        %p555 = pneg %p244
        %p556 = pneg %p241
        %p557 = pneg %p265
        %p558 = pneg %p262
        %p559 = pneg %p286
        %p560 = pneg %p283
        %p561 = pneg %p314
        %p562 = pneg %p311
        %s563 = sand.u32 %s301, 1
        %s564 = scalar_lea.sflag [#allocation5], %s563
        %s565 = sand.u32 %s301, 1
        %s566 = smul.addr %s565, 8
        %s567 = scalar_lea.vmem [#allocation12], %s566
        %p568 = pneg %p342
        %p569 = pneg %p339
        %s570 = sand.u32 %s329, 1
        %s571 = scalar_lea.sflag [#allocation14], %s570
        %s572 = sand.u32 %s329, 1
        %s573 = smul.addr %s572, 32
        %s574 = scalar_lea.vmem [#allocation13], %s573
        %s575 = smul.u32 8, %s43
        %p576 = scmp.lt.s32.totalorder %s42, 1
        %s577 = scalar_select %p576, %s42, 1
        %s578 = scalar_lea.vmem %s4, %s577
        %v579 = vld [vmem:[%s500] sm:$0xff]
        %v580 = vld [vmem:[%s500 + $0x8] sm:$0xff]
        %v581 = vld [vmem:[%s500 + $0x10] sm:$0xff]
        %v582 = vld [vmem:[%s500 + $0x18] sm:$0xff]
        %v583 = vld [vmem:[%s500 + $0x20] sm:$0xff]
        %v584 = vld [vmem:[%s500 + $0x28] sm:$0xff]
        %v585 = vld [vmem:[%s500 + $0x30] sm:$0xff]
        %v586 = vld [vmem:[%s500 + $0x38] sm:$0xff]
        %v587 = vld [vmem:[%s5] sm:$0xff]
        %v588 = vld [vmem:[%s5 + $0x8] sm:$0xff]
        %v589 = vld [vmem:[%s5 + $0x10] sm:$0xff]
        %v590 = vld [vmem:[%s5 + $0x18] sm:$0xff]
        %v591 = vld [vmem:[%s6] sm:$0x1]
        %v593 = vlaneseq
        %v594 = vshrl.u32 %v593, 7
        %v595 = vsub.s32 0, %v594
        %v596 = vrot.slane %v591, %v595
        %vm598 = vcmask 261120
        %v600 = vsel %vm598, %v579, 0
        %v603 = vsel %vm598, %v580, 0
        %v606 = vsel %vm598, %v581, 0
        %v609 = vsel %vm598, %v582, 0
        %v612 = vsel %vm598, %v583, 0
        %v615 = vsel %vm598, %v584, 0
        %v618 = vsel %vm598, %v585, 0
        %v621 = vsel %vm598, %v586, 0
        %623 = vmatprep.subr.mxu0 0.0
        %624 = vmatpush1.msra.mxu0 0.0
        %625 = vmatprep.subr.mxu0 0.0
        %626 = vmatpush1.msra.mxu0 0.0
        %627 = vmatprep.subr.mxu0 0.0
        %628 = vmatpush1.msra.mxu0 0.0
        %629 = vmatprep.subr.mxu0 0.0
        %630 = vmatpush1.msra.mxu0 0.0
        %631 = vmatprep.subr.mxu0 0.0
        %632 = vmatpush1.msra.mxu0 0.0
        %633 = vmatprep.subr.mxu0 0.0
        %634 = vmatpush1.msra.mxu0 0.0
        %635 = vmatprep.subr.mxu0 0.0
        %636 = vmatpush1.msra.mxu0 0.0
        %637 = vmatprep.subr.mxu0 0.0
        %638 = vmatpush1.msra.mxu0 0.0
        %639 = vmatprep.subr.mxu0 0.0
        %640 = vmatpush1.msra.mxu0 0.0
        %641 = vmatprep.subr.mxu0 0.0
        %642 = vmatpush1.msra.mxu0 0.0
        %643 = vmatprep.subr.mxu0 0.0
        %644 = vmatpush1.msra.mxu0 0.0
        %645 = vmatprep.subr.mxu0 0.0
        %646 = vmatpush1.msra.mxu0 0.0
        %647 = vmatprep.subr.mxu0 0.0
        %648 = vmatpush1.msra.mxu0 %v590
        %649 = vmatprep.subr.mxu0 0.0
        %650 = vmatpush1.msra.mxu0 %v589
        %651 = vmatprep.subr.mxu0 0.0
        %652 = vmatpush1.msra.mxu0 %v588
        %653 = vmatprep.subr.mxu0 0.0
        %654 = vmatpush1.msra.mxu0 %v587
        %655 = vmatprep.subr.mxu0 0.0
        %656 = vmatpush2.msra.mxu0 0.0
        %657 = vmatprep.subr.mxu0 0.0
        %658 = vmatpush2.msra.mxu0 0.0
        %659 = vmatprep.subr.mxu0 0.0
        %660 = vmatpush2.msra.mxu0 0.0
        %661 = vmatprep.subr.mxu0 0.0
        %662 = vmatpush2.msra.mxu0 0.0
        %663 = vmatprep.subr.mxu0 0.0
        %664 = vmatpush2.msra.mxu0 0.0
        %665 = vmatprep.subr.mxu0 0.0
        %666 = vmatpush2.msra.mxu0 0.0
        %667 = vmatprep.subr.mxu0 0.0
        %668 = vmatpush2.msra.mxu0 0.0
        %669 = vmatprep.subr.mxu0 0.0
        %670 = vmatpush2.msra.mxu0 0.0
        %671 = vmatprep.subr.mxu0 0.0
        %672 = vmatpush2.msra.mxu0 0.0
        %673 = vmatprep.subr.mxu0 0.0
        %674 = vmatpush2.msra.mxu0 0.0
        %675 = vmatprep.subr.mxu0 0.0
        %676 = vmatpush2.msra.mxu0 0.0
        %677 = vmatprep.subr.mxu0 0.0
        %678 = vmatpush2.msra.mxu0 0.0
        %679 = vmatprep.subr.mxu0 0.0
        %680 = vmatpush2.msra.mxu0 0.0
        %681 = vmatprep.subr.mxu0 0.0
        %682 = vmatpush2.msra.mxu0 0.0
        %683 = vmatprep.subr.mxu0 0.0
        %684 = vmatpush2.msra.mxu0 0.0
        %685 = vmatprep.subr.mxu0 0.0
        %686 = vmatpush2.msra.mxu0 0.0
        %687 = vmatprep.mubr.f32.mxu0 0.0
        %688 = vmatmul.mubr.f32.gmra.mxu0 %v600
        %v689 = vpop.f32.mrf.mxu0
        %v690 = vadd.f32 %v596, %v689
        %v691 = vpop.f32.mrf.mxu0
        %692 = vmatprep.mubr.f32.mxu0 0.0
        %693 = vmatmul.mubr.f32.gmra.mxu0 %v603
        %v694 = vpop.f32.mrf.mxu0
        %v695 = vadd.f32 %v596, %v694
        %v696 = vpop.f32.mrf.mxu0
        %697 = vmatprep.mubr.f32.mxu0 0.0
        %698 = vmatmul.mubr.f32.gmra.mxu0 %v606
        %v699 = vpop.f32.mrf.mxu0
        %v700 = vadd.f32 %v596, %v699
        %v701 = vpop.f32.mrf.mxu0
        %702 = vmatprep.mubr.f32.mxu0 0.0
        %703 = vmatmul.mubr.f32.gmra.mxu0 %v609
        %v704 = vpop.f32.mrf.mxu0
        %v705 = vadd.f32 %v596, %v704
        %v706 = vpop.f32.mrf.mxu0
        %707 = vmatprep.mubr.f32.mxu0 0.0
        %708 = vmatmul.mubr.f32.gmra.mxu0 %v612
        %v709 = vpop.f32.mrf.mxu0
        %v710 = vadd.f32 %v596, %v709
        %v711 = vpop.f32.mrf.mxu0
        %712 = vmatprep.mubr.f32.mxu0 0.0
        %713 = vmatmul.mubr.f32.gmra.mxu0 %v615
        %v714 = vpop.f32.mrf.mxu0
        %v715 = vadd.f32 %v596, %v714
        %v716 = vpop.f32.mrf.mxu0
        %717 = vmatprep.mubr.f32.mxu0 0.0
        %718 = vmatmul.mubr.f32.gmra.mxu0 %v618
        %v719 = vpop.f32.mrf.mxu0
        %v720 = vadd.f32 %v596, %v719
        %v721 = vpop.f32.mrf.mxu0
        %722 = vmatprep.mubr.f32.mxu0 0.0
        %723 = vmatmul.mubr.f32.gmra.mxu0 %v621
        %v724 = vpop.f32.mrf.mxu0
        %v725 = vadd.f32 %v596, %v724
        %v726 = vpop.f32.mrf.mxu0
        %727 = vdwg.mxu0
        %v728 = vld [vmem:[%s482] sm:$0xff]
        %v729 = vld [vmem:[%s491] sm:$0xff]
        %v730 = vld [vmem:[%s509] sm:$0xff]
        %v731 = vld [vmem:[%s578] sm:$0x1]
        %v733 = vcombine.high %v728, %v728
        %v735 = vunpack.c.l.s4 1966171168
        %v736 = vunpack.c.0.s8 %v735
        %v737 = vlaneseq
        %v738 = vshrl.u32 %v737, 7
        %v739 = vsub.s32 %v736, %v738
        %v740 = vrot.slane %v728, %v739
        %v742 = vunpack.c.l.s4 1966171168
        %v743 = vunpack.c.0.s8 %v742
        %v744 = vlaneseq
        %v745 = vshrl.u32 %v744, 7
        %v746 = vsub.s32 %v743, %v745
        %v747 = vrot.slane %v733, %v746
        %v748 = vcombine.high %v740, %v740
        %v749 = vcombine.high %v747, %v747
        %v751 = vunpack.c.l.s4 1966171168
        %v752 = vunpack.c.0.s8 %v751
        %v753 = vlaneseq
        %v754 = vshrl.u32 %v753, 7
        %v755 = vsub.s32 %v752, %v754
        %v756 = vrot.slane %v740, %v755
        %v758 = vunpack.c.l.s4 1966171168
        %v759 = vunpack.c.0.s8 %v758
        %v760 = vlaneseq
        %v761 = vshrl.u32 %v760, 7
        %v762 = vsub.s32 %v759, %v761
        %v763 = vrot.slane %v747, %v762
        %v765 = vunpack.c.l.s4 1966171168
        %v766 = vunpack.c.0.s8 %v765
        %v767 = vlaneseq
        %v768 = vshrl.u32 %v767, 7
        %v769 = vsub.s32 %v766, %v768
        %v770 = vrot.slane %v748, %v769
        %v772 = vunpack.c.l.s4 1966171168
        %v773 = vunpack.c.0.s8 %v772
        %v774 = vlaneseq
        %v775 = vshrl.u32 %v774, 7
        %v776 = vsub.s32 %v773, %v775
        %v777 = vrot.slane %v749, %v776
        %v778 = vcombine.high %v756, %v756
        %v779 = vcombine.high %v763, %v763
        %v780 = vcombine.high %v770, %v770
        %v781 = vcombine.high %v777, %v777
        %v782 = vlaneseq
        %v783 = vshrl.u32 %v782, 7
        %v784 = vsub.s32 0, %v783
        %v785 = vrot.slane %v756, %v784
        %v786 = vlaneseq
        %v787 = vshrl.u32 %v786, 7
        %v788 = vsub.s32 0, %v787
        %v789 = vrot.slane %v770, %v788
        %v790 = vlaneseq
        %v791 = vshrl.u32 %v790, 7
        %v792 = vsub.s32 0, %v791
        %v793 = vrot.slane %v778, %v792
        %v794 = vlaneseq
        %v795 = vshrl.u32 %v794, 7
        %v796 = vsub.s32 0, %v795
        %v797 = vrot.slane %v780, %v796
        %v798 = vlaneseq
        %v799 = vshrl.u32 %v798, 7
        %v800 = vsub.s32 0, %v799
        %v801 = vrot.slane %v763, %v800
        %v802 = vlaneseq
        %v803 = vshrl.u32 %v802, 7
        %v804 = vsub.s32 0, %v803
        %v805 = vrot.slane %v777, %v804
        %v806 = vlaneseq
        %v807 = vshrl.u32 %v806, 7
        %v808 = vsub.s32 0, %v807
        %v809 = vrot.slane %v779, %v808
        %v810 = vlaneseq
        %v811 = vshrl.u32 %v810, 7
        %v812 = vsub.s32 0, %v811
        %v813 = vrot.slane %v781, %v812
        %v822 = vmul.f32 %v785, %v729
        %v823 = vmul.f32 %v789, %v729
        %v824 = vmul.f32 %v793, %v729
        %v825 = vmul.f32 %v797, %v729
        %v826 = vmul.f32 %v801, %v729
        %v827 = vmul.f32 %v805, %v729
        %v828 = vmul.f32 %v809, %v729
        %v829 = vmul.f32 %v813, %v729
        %v830 = vmul.f32 %v822, %v690
        %v831 = vmul.f32 %v823, %v695
        %v832 = vmul.f32 %v824, %v700
        %v833 = vmul.f32 %v825, %v705
        %v834 = vmul.f32 %v826, %v710
        %v835 = vmul.f32 %v827, %v715
        %v836 = vmul.f32 %v828, %v720
        %v837 = vmul.f32 %v829, %v725
        %v838 = vld [vmem:[%s7] sm:$0xff]
        %v839 = vld [vmem:[%s7 + $0x8] sm:$0xff]
        %v840 = vld [vmem:[%s7 + $0x10] sm:$0xff]
        %v841 = vld [vmem:[%s7 + $0x18] sm:$0xff]
        %v843 = vsel %vm598, %v830, 0
        %v846 = vsel %vm598, %v831, 0
        %v849 = vsel %vm598, %v832, 0
        %v852 = vsel %vm598, %v833, 0
        %v855 = vsel %vm598, %v834, 0
        %v858 = vsel %vm598, %v835, 0
        %v861 = vsel %vm598, %v836, 0
        %v864 = vsel %vm598, %v837, 0
        %866 = vmatprep.subr.mxu0 0.0
        %867 = vmatpush1.msra.mxu0 0.0
        %868 = vmatprep.subr.mxu0 0.0
        %869 = vmatpush1.msra.mxu0 0.0
        %870 = vmatprep.subr.mxu0 0.0
        %871 = vmatpush1.msra.mxu0 0.0
        %872 = vmatprep.subr.mxu0 0.0
        %873 = vmatpush1.msra.mxu0 0.0
        %874 = vmatprep.subr.mxu0 0.0
        %875 = vmatpush1.msra.mxu0 0.0
        %876 = vmatprep.subr.mxu0 0.0
        %877 = vmatpush1.msra.mxu0 0.0
        %878 = vmatprep.subr.mxu0 0.0
        %879 = vmatpush1.msra.mxu0 0.0
        %880 = vmatprep.subr.mxu0 0.0
        %881 = vmatpush1.msra.mxu0 0.0
        %882 = vmatprep.subr.mxu0 0.0
        %883 = vmatpush1.msra.mxu0 0.0
        %884 = vmatprep.subr.mxu0 0.0
        %885 = vmatpush1.msra.mxu0 0.0
        %886 = vmatprep.subr.mxu0 0.0
        %887 = vmatpush1.msra.mxu0 0.0
        %888 = vmatprep.subr.mxu0 0.0
        %889 = vmatpush1.msra.mxu0 0.0
        %890 = vmatprep.subr.mxu0 0.0
        %891 = vmatpush1.msra.mxu0 %v841
        %892 = vmatprep.subr.mxu0 0.0
        %893 = vmatpush1.msra.mxu0 %v840
        %894 = vmatprep.subr.mxu0 0.0
        %895 = vmatpush1.msra.mxu0 %v839
        %896 = vmatprep.subr.mxu0 0.0
        %897 = vmatpush1.msra.mxu0 %v838
        %898 = vmatprep.subr.mxu0 0.0
        %899 = vmatpush2.msra.mxu0 0.0
        %900 = vmatprep.subr.mxu0 0.0
        %901 = vmatpush2.msra.mxu0 0.0
        %902 = vmatprep.subr.mxu0 0.0
        %903 = vmatpush2.msra.mxu0 0.0
        %904 = vmatprep.subr.mxu0 0.0
        %905 = vmatpush2.msra.mxu0 0.0
        %906 = vmatprep.subr.mxu0 0.0
        %907 = vmatpush2.msra.mxu0 0.0
        %908 = vmatprep.subr.mxu0 0.0
        %909 = vmatpush2.msra.mxu0 0.0
        %910 = vmatprep.subr.mxu0 0.0
        %911 = vmatpush2.msra.mxu0 0.0
        %912 = vmatprep.subr.mxu0 0.0
        %913 = vmatpush2.msra.mxu0 0.0
        %914 = vmatprep.subr.mxu0 0.0
        %915 = vmatpush2.msra.mxu0 0.0
        %916 = vmatprep.subr.mxu0 0.0
        %917 = vmatpush2.msra.mxu0 0.0
        %918 = vmatprep.subr.mxu0 0.0
        %919 = vmatpush2.msra.mxu0 0.0
        %920 = vmatprep.subr.mxu0 0.0
        %921 = vmatpush2.msra.mxu0 0.0
        %922 = vmatprep.subr.mxu0 0.0
        %923 = vmatpush2.msra.mxu0 0.0
        %924 = vmatprep.subr.mxu0 0.0
        %925 = vmatpush2.msra.mxu0 0.0
        %926 = vmatprep.subr.mxu0 0.0
        %927 = vmatpush2.msra.mxu0 0.0
        %928 = vmatprep.subr.mxu0 0.0
        %929 = vmatpush2.msra.mxu0 0.0
        %930 = vmatprep.mubr.f32.mxu0 0.0
        %931 = vmatmul.mubr.f32.gmra.mxu0 %v843
        %v932 = vpop.f32.mrf.mxu0
        %v933 = vadd.f32 0.0, %v932
        %v934 = vpop.f32.mrf.mxu0
        %935 = vmatprep.mubr.f32.mxu0 0.0
        %936 = vmatmul.mubr.f32.gmra.mxu0 %v846
        %v937 = vpop.f32.mrf.mxu0
        %v938 = vadd.f32 0.0, %v937
        %v939 = vpop.f32.mrf.mxu0
        %940 = vmatprep.mubr.f32.mxu0 0.0
        %941 = vmatmul.mubr.f32.gmra.mxu0 %v849
        %v942 = vpop.f32.mrf.mxu0
        %v943 = vadd.f32 0.0, %v942
        %v944 = vpop.f32.mrf.mxu0
        %945 = vmatprep.mubr.f32.mxu0 0.0
        %946 = vmatmul.mubr.f32.gmra.mxu0 %v852
        %v947 = vpop.f32.mrf.mxu0
        %v948 = vadd.f32 0.0, %v947
        %v949 = vpop.f32.mrf.mxu0
        %950 = vmatprep.mubr.f32.mxu0 0.0
        %951 = vmatmul.mubr.f32.gmra.mxu0 %v855
        %v952 = vpop.f32.mrf.mxu0
        %v953 = vadd.f32 0.0, %v952
        %v954 = vpop.f32.mrf.mxu0
        %955 = vmatprep.mubr.f32.mxu0 0.0
        %956 = vmatmul.mubr.f32.gmra.mxu0 %v858
        %v957 = vpop.f32.mrf.mxu0
        %v958 = vadd.f32 0.0, %v957
        %v959 = vpop.f32.mrf.mxu0
        %960 = vmatprep.mubr.f32.mxu0 0.0
        %961 = vmatmul.mubr.f32.gmra.mxu0 %v861
        %v962 = vpop.f32.mrf.mxu0
        %v963 = vadd.f32 0.0, %v962
        %v964 = vpop.f32.mrf.mxu0
        %965 = vmatprep.mubr.f32.mxu0 0.0
        %966 = vmatmul.mubr.f32.gmra.mxu0 %v864
        %v967 = vpop.f32.mrf.mxu0
        %v968 = vadd.f32 0.0, %v967
        %v969 = vpop.f32.mrf.mxu0
        %970 = vdwg.mxu0
        %971 = vxpose.xlu0.b32.start [1/16] %v933, 128
        %972 = vxpose.xlu0.b32.cont [2/16] 0.0, 128
        %973 = vxpose.xlu0.b32.cont [3/16] 0.0, 128
        %974 = vxpose.xlu0.b32.cont [4/16] 0.0, 128
        %975 = vxpose.xlu0.b32.cont [5/16] 0.0, 128
        %976 = vxpose.xlu0.b32.cont [6/16] 0.0, 128
        %977 = vxpose.xlu0.b32.cont [7/16] 0.0, 128
        %978 = vxpose.xlu0.b32.cont [8/16] 0.0, 128
        %979 = vxpose.xlu0.b32.cont [9/16] 0.0, 128
        %980 = vxpose.xlu0.b32.cont [10/16] 0.0, 128
        %981 = vxpose.xlu0.b32.cont [11/16] 0.0, 128
        %982 = vxpose.xlu0.b32.cont [12/16] 0.0, 128
        %983 = vxpose.xlu0.b32.cont [13/16] 0.0, 128
        %984 = vxpose.xlu0.b32.cont [14/16] 0.0, 128
        %985 = vxpose.xlu0.b32.cont [15/16] 0.0, 128
        %986 = vxpose.xlu0.b32.end [16/16] 0.0, 128
        %v987 = vpop.trf.xlu0
        %v988 = vpop.trf.xlu0
        %v989 = vpop.trf.xlu0
        %v990 = vpop.trf.xlu0
        %v991 = vpop.trf.xlu0
        %v992 = vpop.trf.xlu0
        %v993 = vpop.trf.xlu0
        %v994 = vpop.trf.xlu0
        %v995 = vpop.trf.xlu0
        %v996 = vpop.trf.xlu0
        %v997 = vpop.trf.xlu0
        %v998 = vpop.trf.xlu0
        %v999 = vpop.trf.xlu0
        %v1000 = vpop.trf.xlu0
        %v1001 = vpop.trf.xlu0
        %v1002 = vpop.trf.xlu0
        %1003 = vxpose.xlu0.b32.start [1/16] %v938, 128
        %1004 = vxpose.xlu0.b32.cont [2/16] 0.0, 128
        %1005 = vxpose.xlu0.b32.cont [3/16] 0.0, 128
        %1006 = vxpose.xlu0.b32.cont [4/16] 0.0, 128
        %1007 = vxpose.xlu0.b32.cont [5/16] 0.0, 128
        %1008 = vxpose.xlu0.b32.cont [6/16] 0.0, 128
        %1009 = vxpose.xlu0.b32.cont [7/16] 0.0, 128
        %1010 = vxpose.xlu0.b32.cont [8/16] 0.0, 128
        %1011 = vxpose.xlu0.b32.cont [9/16] 0.0, 128
        %1012 = vxpose.xlu0.b32.cont [10/16] 0.0, 128
        %1013 = vxpose.xlu0.b32.cont [11/16] 0.0, 128
        %1014 = vxpose.xlu0.b32.cont [12/16] 0.0, 128
        %1015 = vxpose.xlu0.b32.cont [13/16] 0.0, 128
        %1016 = vxpose.xlu0.b32.cont [14/16] 0.0, 128
        %1017 = vxpose.xlu0.b32.cont [15/16] 0.0, 128
        %1018 = vxpose.xlu0.b32.end [16/16] 0.0, 128
        %v1019 = vpop.trf.xlu0
        %v1020 = vpop.trf.xlu0
        %v1021 = vpop.trf.xlu0
        %v1022 = vpop.trf.xlu0
        %v1023 = vpop.trf.xlu0
        %v1024 = vpop.trf.xlu0
        %v1025 = vpop.trf.xlu0
        %v1026 = vpop.trf.xlu0
        %v1027 = vpop.trf.xlu0
        %v1028 = vpop.trf.xlu0
        %v1029 = vpop.trf.xlu0
        %v1030 = vpop.trf.xlu0
        %v1031 = vpop.trf.xlu0
        %v1032 = vpop.trf.xlu0
        %v1033 = vpop.trf.xlu0
        %v1034 = vpop.trf.xlu0
        %1035 = vxpose.xlu0.b32.start [1/16] %v943, 128
        %1036 = vxpose.xlu0.b32.cont [2/16] 0.0, 128
        %1037 = vxpose.xlu0.b32.cont [3/16] 0.0, 128
        %1038 = vxpose.xlu0.b32.cont [4/16] 0.0, 128
        %1039 = vxpose.xlu0.b32.cont [5/16] 0.0, 128
        %1040 = vxpose.xlu0.b32.cont [6/16] 0.0, 128
        %1041 = vxpose.xlu0.b32.cont [7/16] 0.0, 128
        %1042 = vxpose.xlu0.b32.cont [8/16] 0.0, 128
        %1043 = vxpose.xlu0.b32.cont [9/16] 0.0, 128
        %1044 = vxpose.xlu0.b32.cont [10/16] 0.0, 128
        %1045 = vxpose.xlu0.b32.cont [11/16] 0.0, 128
        %1046 = vxpose.xlu0.b32.cont [12/16] 0.0, 128
        %1047 = vxpose.xlu0.b32.cont [13/16] 0.0, 128
        %1048 = vxpose.xlu0.b32.cont [14/16] 0.0, 128
        %1049 = vxpose.xlu0.b32.cont [15/16] 0.0, 128
        %1050 = vxpose.xlu0.b32.end [16/16] 0.0, 128
        %v1051 = vpop.trf.xlu0
        %v1052 = vpop.trf.xlu0
        %v1053 = vpop.trf.xlu0
        %v1054 = vpop.trf.xlu0
        %v1055 = vpop.trf.xlu0
        %v1056 = vpop.trf.xlu0
        %v1057 = vpop.trf.xlu0
        %v1058 = vpop.trf.xlu0
        %v1059 = vpop.trf.xlu0
        %v1060 = vpop.trf.xlu0
        %v1061 = vpop.trf.xlu0
        %v1062 = vpop.trf.xlu0
        %v1063 = vpop.trf.xlu0
        %v1064 = vpop.trf.xlu0
        %v1065 = vpop.trf.xlu0
        %v1066 = vpop.trf.xlu0
        %1067 = vxpose.xlu0.b32.start [1/16] %v948, 128
        %1068 = vxpose.xlu0.b32.cont [2/16] 0.0, 128
        %1069 = vxpose.xlu0.b32.cont [3/16] 0.0, 128
        %1070 = vxpose.xlu0.b32.cont [4/16] 0.0, 128
        %1071 = vxpose.xlu0.b32.cont [5/16] 0.0, 128
        %1072 = vxpose.xlu0.b32.cont [6/16] 0.0, 128
        %1073 = vxpose.xlu0.b32.cont [7/16] 0.0, 128
        %1074 = vxpose.xlu0.b32.cont [8/16] 0.0, 128
        %1075 = vxpose.xlu0.b32.cont [9/16] 0.0, 128
        %1076 = vxpose.xlu0.b32.cont [10/16] 0.0, 128
        %1077 = vxpose.xlu0.b32.cont [11/16] 0.0, 128
        %1078 = vxpose.xlu0.b32.cont [12/16] 0.0, 128
        %1079 = vxpose.xlu0.b32.cont [13/16] 0.0, 128
        %1080 = vxpose.xlu0.b32.cont [14/16] 0.0, 128
        %1081 = vxpose.xlu0.b32.cont [15/16] 0.0, 128
        %1082 = vxpose.xlu0.b32.end [16/16] 0.0, 128
        %v1083 = vpop.trf.xlu0
        %v1084 = vpop.trf.xlu0
        %v1085 = vpop.trf.xlu0
        %v1086 = vpop.trf.xlu0
        %v1087 = vpop.trf.xlu0
        %v1088 = vpop.trf.xlu0
        %v1089 = vpop.trf.xlu0
        %v1090 = vpop.trf.xlu0
        %v1091 = vpop.trf.xlu0
        %v1092 = vpop.trf.xlu0
        %v1093 = vpop.trf.xlu0
        %v1094 = vpop.trf.xlu0
        %v1095 = vpop.trf.xlu0
        %v1096 = vpop.trf.xlu0
        %v1097 = vpop.trf.xlu0
        %v1098 = vpop.trf.xlu0
        %1099 = vxpose.xlu0.b32.start [1/16] %v953, 128
        %1100 = vxpose.xlu0.b32.cont [2/16] 0.0, 128
        %1101 = vxpose.xlu0.b32.cont [3/16] 0.0, 128
        %1102 = vxpose.xlu0.b32.cont [4/16] 0.0, 128
        %1103 = vxpose.xlu0.b32.cont [5/16] 0.0, 128
        %1104 = vxpose.xlu0.b32.cont [6/16] 0.0, 128
        %1105 = vxpose.xlu0.b32.cont [7/16] 0.0, 128
        %1106 = vxpose.xlu0.b32.cont [8/16] 0.0, 128
        %1107 = vxpose.xlu0.b32.cont [9/16] 0.0, 128
        %1108 = vxpose.xlu0.b32.cont [10/16] 0.0, 128
        %1109 = vxpose.xlu0.b32.cont [11/16] 0.0, 128
        %1110 = vxpose.xlu0.b32.cont [12/16] 0.0, 128
        %1111 = vxpose.xlu0.b32.cont [13/16] 0.0, 128
        %1112 = vxpose.xlu0.b32.cont [14/16] 0.0, 128
        %1113 = vxpose.xlu0.b32.cont [15/16] 0.0, 128
        %1114 = vxpose.xlu0.b32.end [16/16] 0.0, 128
        %v1115 = vpop.trf.xlu0
        %v1116 = vpop.trf.xlu0
        %v1117 = vpop.trf.xlu0
        %v1118 = vpop.trf.xlu0
        %v1119 = vpop.trf.xlu0
        %v1120 = vpop.trf.xlu0
        %v1121 = vpop.trf.xlu0
        %v1122 = vpop.trf.xlu0
        %v1123 = vpop.trf.xlu0
        %v1124 = vpop.trf.xlu0
        %v1125 = vpop.trf.xlu0
        %v1126 = vpop.trf.xlu0
        %v1127 = vpop.trf.xlu0
        %v1128 = vpop.trf.xlu0
        %v1129 = vpop.trf.xlu0
        %v1130 = vpop.trf.xlu0
        %1131 = vxpose.xlu0.b32.start [1/16] %v958, 128
        %1132 = vxpose.xlu0.b32.cont [2/16] 0.0, 128
        %1133 = vxpose.xlu0.b32.cont [3/16] 0.0, 128
        %1134 = vxpose.xlu0.b32.cont [4/16] 0.0, 128
        %1135 = vxpose.xlu0.b32.cont [5/16] 0.0, 128
        %1136 = vxpose.xlu0.b32.cont [6/16] 0.0, 128
        %1137 = vxpose.xlu0.b32.cont [7/16] 0.0, 128
        %1138 = vxpose.xlu0.b32.cont [8/16] 0.0, 128
        %1139 = vxpose.xlu0.b32.cont [9/16] 0.0, 128
        %1140 = vxpose.xlu0.b32.cont [10/16] 0.0, 128
        %1141 = vxpose.xlu0.b32.cont [11/16] 0.0, 128
        %1142 = vxpose.xlu0.b32.cont [12/16] 0.0, 128
        %1143 = vxpose.xlu0.b32.cont [13/16] 0.0, 128
        %1144 = vxpose.xlu0.b32.cont [14/16] 0.0, 128
        %1145 = vxpose.xlu0.b32.cont [15/16] 0.0, 128
        %1146 = vxpose.xlu0.b32.end [16/16] 0.0, 128
        %v1147 = vpop.trf.xlu0
        %v1148 = vpop.trf.xlu0
        %v1149 = vpop.trf.xlu0
        %v1150 = vpop.trf.xlu0
        %v1151 = vpop.trf.xlu0
        %v1152 = vpop.trf.xlu0
        %v1153 = vpop.trf.xlu0
        %v1154 = vpop.trf.xlu0
        %v1155 = vpop.trf.xlu0
        %v1156 = vpop.trf.xlu0
        %v1157 = vpop.trf.xlu0
        %v1158 = vpop.trf.xlu0
        %v1159 = vpop.trf.xlu0
        %v1160 = vpop.trf.xlu0
        %v1161 = vpop.trf.xlu0
        %v1162 = vpop.trf.xlu0
        %1163 = vxpose.xlu0.b32.start [1/16] %v963, 128
        %1164 = vxpose.xlu0.b32.cont [2/16] 0.0, 128
        %1165 = vxpose.xlu0.b32.cont [3/16] 0.0, 128
        %1166 = vxpose.xlu0.b32.cont [4/16] 0.0, 128
        %1167 = vxpose.xlu0.b32.cont [5/16] 0.0, 128
        %1168 = vxpose.xlu0.b32.cont [6/16] 0.0, 128
        %1169 = vxpose.xlu0.b32.cont [7/16] 0.0, 128
        %1170 = vxpose.xlu0.b32.cont [8/16] 0.0, 128
        %1171 = vxpose.xlu0.b32.cont [9/16] 0.0, 128
        %1172 = vxpose.xlu0.b32.cont [10/16] 0.0, 128
        %1173 = vxpose.xlu0.b32.cont [11/16] 0.0, 128
        %1174 = vxpose.xlu0.b32.cont [12/16] 0.0, 128
        %1175 = vxpose.xlu0.b32.cont [13/16] 0.0, 128
        %1176 = vxpose.xlu0.b32.cont [14/16] 0.0, 128
        %1177 = vxpose.xlu0.b32.cont [15/16] 0.0, 128
        %1178 = vxpose.xlu0.b32.end [16/16] 0.0, 128
        %v1179 = vpop.trf.xlu0
        %v1180 = vpop.trf.xlu0
        %v1181 = vpop.trf.xlu0
        %v1182 = vpop.trf.xlu0
        %v1183 = vpop.trf.xlu0
        %v1184 = vpop.trf.xlu0
        %v1185 = vpop.trf.xlu0
        %v1186 = vpop.trf.xlu0
        %v1187 = vpop.trf.xlu0
        %v1188 = vpop.trf.xlu0
        %v1189 = vpop.trf.xlu0
        %v1190 = vpop.trf.xlu0
        %v1191 = vpop.trf.xlu0
        %v1192 = vpop.trf.xlu0
        %v1193 = vpop.trf.xlu0
        %v1194 = vpop.trf.xlu0
        %1195 = vxpose.xlu0.b32.start [1/16] %v968, 128
        %1196 = vxpose.xlu0.b32.cont [2/16] 0.0, 128
        %1197 = vxpose.xlu0.b32.cont [3/16] 0.0, 128
        %1198 = vxpose.xlu0.b32.cont [4/16] 0.0, 128
        %1199 = vxpose.xlu0.b32.cont [5/16] 0.0, 128
        %1200 = vxpose.xlu0.b32.cont [6/16] 0.0, 128
        %1201 = vxpose.xlu0.b32.cont [7/16] 0.0, 128
        %1202 = vxpose.xlu0.b32.cont [8/16] 0.0, 128
        %1203 = vxpose.xlu0.b32.cont [9/16] 0.0, 128
        %1204 = vxpose.xlu0.b32.cont [10/16] 0.0, 128
        %1205 = vxpose.xlu0.b32.cont [11/16] 0.0, 128
        %1206 = vxpose.xlu0.b32.cont [12/16] 0.0, 128
        %1207 = vxpose.xlu0.b32.cont [13/16] 0.0, 128
        %1208 = vxpose.xlu0.b32.cont [14/16] 0.0, 128
        %1209 = vxpose.xlu0.b32.cont [15/16] 0.0, 128
        %1210 = vxpose.xlu0.b32.end [16/16] 0.0, 128
        %v1211 = vpop.trf.xlu0
        %v1212 = vpop.trf.xlu0
        %v1213 = vpop.trf.xlu0
        %v1214 = vpop.trf.xlu0
        %v1215 = vpop.trf.xlu0
        %v1216 = vpop.trf.xlu0
        %v1217 = vpop.trf.xlu0
        %v1218 = vpop.trf.xlu0
        %v1219 = vpop.trf.xlu0
        %v1220 = vpop.trf.xlu0
        %v1221 = vpop.trf.xlu0
        %v1222 = vpop.trf.xlu0
        %v1223 = vpop.trf.xlu0
        %v1224 = vpop.trf.xlu0
        %v1225 = vpop.trf.xlu0
        %v1226 = vpop.trf.xlu0
        %v1228 = vcombine.high %v730, %v730
        %v1230 = vunpack.c.l.s4 1966171168
        %v1231 = vunpack.c.0.s8 %v1230
        %v1232 = vlaneseq
        %v1233 = vshrl.u32 %v1232, 7
        %v1234 = vsub.s32 %v1231, %v1233
        %v1235 = vrot.slane %v730, %v1234
        %v1237 = vunpack.c.l.s4 1966171168
        %v1238 = vunpack.c.0.s8 %v1237
        %v1239 = vlaneseq
        %v1240 = vshrl.u32 %v1239, 7
        %v1241 = vsub.s32 %v1238, %v1240
        %v1242 = vrot.slane %v1228, %v1241
        %v1243 = vcombine.high %v1235, %v1235
        %v1244 = vcombine.high %v1242, %v1242
        %v1246 = vunpack.c.l.s4 1966171168
        %v1247 = vunpack.c.0.s8 %v1246
        %v1248 = vlaneseq
        %v1249 = vshrl.u32 %v1248, 7
        %v1250 = vsub.s32 %v1247, %v1249
        %v1251 = vrot.slane %v1235, %v1250
        %v1253 = vunpack.c.l.s4 1966171168
        %v1254 = vunpack.c.0.s8 %v1253
        %v1255 = vlaneseq
        %v1256 = vshrl.u32 %v1255, 7
        %v1257 = vsub.s32 %v1254, %v1256
        %v1258 = vrot.slane %v1242, %v1257
        %v1260 = vunpack.c.l.s4 1966171168
        %v1261 = vunpack.c.0.s8 %v1260
        %v1262 = vlaneseq
        %v1263 = vshrl.u32 %v1262, 7
        %v1264 = vsub.s32 %v1261, %v1263
        %v1265 = vrot.slane %v1243, %v1264
        %v1267 = vunpack.c.l.s4 1966171168
        %v1268 = vunpack.c.0.s8 %v1267
        %v1269 = vlaneseq
        %v1270 = vshrl.u32 %v1269, 7
        %v1271 = vsub.s32 %v1268, %v1270
        %v1272 = vrot.slane %v1244, %v1271
        %v1273 = vcombine.high %v1251, %v1251
        %v1274 = vcombine.high %v1258, %v1258
        %v1275 = vcombine.high %v1265, %v1265
        %v1276 = vcombine.high %v1272, %v1272
        %v1277 = vlaneseq
        %v1278 = vshrl.u32 %v1277, 7
        %v1279 = vsub.s32 0, %v1278
        %v1280 = vrot.slane %v1251, %v1279
        %v1281 = vlaneseq
        %v1282 = vshrl.u32 %v1281, 7
        %v1283 = vsub.s32 0, %v1282
        %v1284 = vrot.slane %v1265, %v1283
        %v1285 = vlaneseq
        %v1286 = vshrl.u32 %v1285, 7
        %v1287 = vsub.s32 0, %v1286
        %v1288 = vrot.slane %v1273, %v1287
        %v1289 = vlaneseq
        %v1290 = vshrl.u32 %v1289, 7
        %v1291 = vsub.s32 0, %v1290
        %v1292 = vrot.slane %v1275, %v1291
        %v1293 = vlaneseq
        %v1294 = vshrl.u32 %v1293, 7
        %v1295 = vsub.s32 0, %v1294
        %v1296 = vrot.slane %v1258, %v1295
        %v1297 = vlaneseq
        %v1298 = vshrl.u32 %v1297, 7
        %v1299 = vsub.s32 0, %v1298
        %v1300 = vrot.slane %v1272, %v1299
        %v1301 = vlaneseq
        %v1302 = vshrl.u32 %v1301, 7
        %v1303 = vsub.s32 0, %v1302
        %v1304 = vrot.slane %v1274, %v1303
        %v1305 = vlaneseq
        %v1306 = vshrl.u32 %v1305, 7
        %v1307 = vsub.s32 0, %v1306
        %v1308 = vrot.slane %v1276, %v1307
        %v1317 = vadd.f32 %v1280, %v987
        %v1318 = vadd.f32 %v1284, %v1019
        %v1319 = vadd.f32 %v1288, %v1051
        %v1320 = vadd.f32 %v1292, %v1083
        %v1321 = vadd.f32 %v1296, %v1115
        %v1322 = vadd.f32 %v1300, %v1147
        %v1323 = vadd.f32 %v1304, %v1179
        %v1324 = vadd.f32 %v1308, %v1211
        %vm1325 = vcmask 60416
        %v1326 = vsel %vm1325, %v1317, -inf
        %1327 = vmax.xlane.f32.xlu0 %v1326
        %v1328 = vpop.xlane.xlu0 %1327
        %v1329 = vsel %vm1325, %v1318, -inf
        %1330 = vmax.xlane.f32.xlu0 %v1329
        %v1331 = vpop.xlane.xlu0 %1330
        %v1332 = vsel %vm1325, %v1319, -inf
        %1333 = vmax.xlane.f32.xlu0 %v1332
        %v1334 = vpop.xlane.xlu0 %1333
        %v1335 = vsel %vm1325, %v1320, -inf
        %1336 = vmax.xlane.f32.xlu0 %v1335
        %v1337 = vpop.xlane.xlu0 %1336
        %v1338 = vsel %vm1325, %v1321, -inf
        %1339 = vmax.xlane.f32.xlu0 %v1338
        %v1340 = vpop.xlane.xlu0 %1339
        %v1341 = vsel %vm1325, %v1322, -inf
        %1342 = vmax.xlane.f32.xlu0 %v1341
        %v1343 = vpop.xlane.xlu0 %1342
        %v1344 = vsel %vm1325, %v1323, -inf
        %1345 = vmax.xlane.f32.xlu0 %v1344
        %v1346 = vpop.xlane.xlu0 %1345
        %v1347 = vsel %vm1325, %v1324, -inf
        %1348 = vmax.xlane.f32.xlu0 %v1347
        %v1349 = vpop.xlane.xlu0 %1348
        %v1350 = vsub.f32 %v1317, %v1328
        %v1351 = vsub.f32 %v1318, %v1331
        %v1352 = vsub.f32 %v1319, %v1334
        %v1353 = vsub.f32 %v1320, %v1337
        %v1354 = vsub.f32 %v1321, %v1340
        %v1355 = vsub.f32 %v1322, %v1343
        %v1356 = vsub.f32 %v1323, %v1346
        %v1357 = vsub.f32 %v1324, %v1349
        %v1358 = vmul.f32 %v1350, 1.442695
        %v1359 = vpow.pop %v1358
        %v1360 = vmul.f32 %v1351, 1.442695
        %v1361 = vpow.pop %v1360
        %v1362 = vmul.f32 %v1352, 1.442695
        %v1363 = vpow.pop %v1362
        %v1364 = vmul.f32 %v1353, 1.442695
        %v1365 = vpow.pop %v1364
        %v1366 = vmul.f32 %v1354, 1.442695
        %v1367 = vpow.pop %v1366
        %v1368 = vmul.f32 %v1355, 1.442695
        %v1369 = vpow.pop %v1368
        %v1370 = vmul.f32 %v1356, 1.442695
        %v1371 = vpow.pop %v1370
        %v1372 = vmul.f32 %v1357, 1.442695
        %v1373 = vpow.pop %v1372
        %v1374 = vsel %vm1325, %v1359, 0.0
        %1375 = vadd.xlane.f32.xlu0 %v1374
        %v1376 = vpop.xlane.xlu0 %1375
        %v1377 = vsel %vm1325, %v1361, 0.0
        %1378 = vadd.xlane.f32.xlu0 %v1377
        %v1379 = vpop.xlane.xlu0 %1378
        %v1380 = vsel %vm1325, %v1363, 0.0
        %1381 = vadd.xlane.f32.xlu0 %v1380
        %v1382 = vpop.xlane.xlu0 %1381
        %v1383 = vsel %vm1325, %v1365, 0.0
        %1384 = vadd.xlane.f32.xlu0 %v1383
        %v1385 = vpop.xlane.xlu0 %1384
        %v1386 = vsel %vm1325, %v1367, 0.0
        %1387 = vadd.xlane.f32.xlu0 %v1386
        %v1388 = vpop.xlane.xlu0 %1387
        %v1389 = vsel %vm1325, %v1369, 0.0
        %1390 = vadd.xlane.f32.xlu0 %v1389
        %v1391 = vpop.xlane.xlu0 %1390
        %v1392 = vsel %vm1325, %v1371, 0.0
        %1393 = vadd.xlane.f32.xlu0 %v1392
        %v1394 = vpop.xlane.xlu0 %1393
        %v1395 = vsel %vm1325, %v1373, 0.0
        %1396 = vadd.xlane.f32.xlu0 %v1395
        %v1397 = vpop.xlane.xlu0 %1396
        %v1398 = vrcp.pop %v1376
        %v1399 = vrcp.pop %v1379
        %v1400 = vrcp.pop %v1382
        %v1401 = vrcp.pop %v1385
        %v1402 = vrcp.pop %v1388
        %v1403 = vrcp.pop %v1391
        %v1404 = vrcp.pop %v1394
        %v1405 = vrcp.pop %v1397
        %v1407 = vlaneseq
        %v1408 = vshrl.u32 %v1407, 7
        %v1409 = vsub.s32 0, %v1408
        %v1410 = vrot.slane %v731, %v1409
        %v1412 = vmul.f32 %v1398, %v1410
        %v1413 = vmul.f32 %v1399, %v1410
        %v1414 = vmul.f32 %v1400, %v1410
        %v1415 = vmul.f32 %v1401, %v1410
        %v1416 = vmul.f32 %v1402, %v1410
        %v1417 = vmul.f32 %v1403, %v1410
        %v1418 = vmul.f32 %v1404, %v1410
        %v1419 = vmul.f32 %v1405, %v1410
        %v1420 = vmul.f32 %v1359, %v1412
        %v1421 = vmul.f32 %v1361, %v1413
        %v1422 = vmul.f32 %v1363, %v1414
        %v1423 = vmul.f32 %v1365, %v1415
        %v1424 = vmul.f32 %v1367, %v1416
        %v1425 = vmul.f32 %v1369, %v1417
        %v1426 = vmul.f32 %v1371, %v1418
        %v1427 = vmul.f32 %v1373, %v1419
        %v1436 = vrot.slane %v1421, 7
        %vm1437 = vcmask 1041409
        %v1438 = vsel %vm1437, %v1436, %v1420
        %v1439 = vrot.slane %v1422, 6
        %vm1440 = vcmask 1042434
        %v1441 = vsel %vm1440, %v1439, %v1438
        %v1442 = vrot.slane %v1423, 5
        %vm1443 = vcmask 1043459
        %v1444 = vsel %vm1443, %v1442, %v1441
        %v1445 = vrot.slane %v1424, 4
        %vm1446 = vcmask 1044484
        %v1447 = vsel %vm1446, %v1445, %v1444
        %v1448 = vrot.slane %v1425, 3
        %vm1449 = vcmask 1045509
        %v1450 = vsel %vm1449, %v1448, %v1447
        %v1451 = vrot.slane %v1426, 2
        %vm1452 = vcmask 1046534
        %v1453 = vsel %vm1452, %v1451, %v1450
        %v1454 = vrot.slane %v1427, 1
        %vm1455 = vcmask 1047559
        %v1456 = vsel %vm1455, %v1454, %v1453
        %vm1458 = vcmask 64512
        %1459 = vst.msk [vmem:[%s574] sm:$0xff] %vm1458, %v1456
        %v1460 = vsel %vm1458, %v1456, 0
        %1462 = vmatprep.subr.mxu0 0.0
        %1463 = vmatpush1.msra.mxu0 0.0
        %1464 = vmatprep.subr.mxu0 0.0
        %1465 = vmatpush1.msra.mxu0 0.0
        %1466 = vmatprep.subr.mxu0 0.0
        %1467 = vmatpush1.msra.mxu0 0.0
        %1468 = vmatprep.subr.mxu0 0.0
        %1469 = vmatpush1.msra.mxu0 0.0
        %1470 = vmatprep.subr.mxu0 0.0
        %1471 = vmatpush1.msra.mxu0 0.0
        %1472 = vmatprep.subr.mxu0 0.0
        %1473 = vmatpush1.msra.mxu0 0.0
        %1474 = vmatprep.subr.mxu0 0.0
        %1475 = vmatpush1.msra.mxu0 0.0
        %1476 = vmatprep.subr.mxu0 0.0
        %1477 = vmatpush1.msra.mxu0 0.0
        %1478 = vmatprep.subr.mxu0 0.0
        %1479 = vmatpush1.msra.mxu0 0.0
        %1480 = vmatprep.subr.mxu0 0.0
        %1481 = vmatpush1.msra.mxu0 0.0
        %1482 = vmatprep.subr.mxu0 0.0
        %1483 = vmatpush1.msra.mxu0 0.0
        %1484 = vmatprep.subr.mxu0 0.0
        %1485 = vmatpush1.msra.mxu0 0.0
        %1486 = vmatprep.subr.mxu0 0.0
        %1487 = vmatpush1.msra.mxu0 0.0
        %1488 = vmatprep.subr.mxu0 0.0
        %1489 = vmatpush1.msra.mxu0 0.0
        %1490 = vmatprep.subr.mxu0 0.0
        %1491 = vmatpush1.msra.mxu0 0.0
        %1492 = vmatprep.subr.mxu0 0.0
        %1493 = vmatpush1.msra.mxu0 %v729
        %1494 = vmatprep.subr.mxu0 0.0
        %1495 = vmatpush2.msra.mxu0 0.0
        %1496 = vmatprep.subr.mxu0 0.0
        %1497 = vmatpush2.msra.mxu0 0.0
        %1498 = vmatprep.subr.mxu0 0.0
        %1499 = vmatpush2.msra.mxu0 0.0
        %1500 = vmatprep.subr.mxu0 0.0
        %1501 = vmatpush2.msra.mxu0 0.0
        %1502 = vmatprep.subr.mxu0 0.0
        %1503 = vmatpush2.msra.mxu0 0.0
        %1504 = vmatprep.subr.mxu0 0.0
        %1505 = vmatpush2.msra.mxu0 0.0
        %1506 = vmatprep.subr.mxu0 0.0
        %1507 = vmatpush2.msra.mxu0 0.0
        %1508 = vmatprep.subr.mxu0 0.0
        %1509 = vmatpush2.msra.mxu0 0.0
        %1510 = vmatprep.subr.mxu0 0.0
        %1511 = vmatpush2.msra.mxu0 0.0
        %1512 = vmatprep.subr.mxu0 0.0
        %1513 = vmatpush2.msra.mxu0 0.0
        %1514 = vmatprep.subr.mxu0 0.0
        %1515 = vmatpush2.msra.mxu0 0.0
        %1516 = vmatprep.subr.mxu0 0.0
        %1517 = vmatpush2.msra.mxu0 0.0
        %1518 = vmatprep.subr.mxu0 0.0
        %1519 = vmatpush2.msra.mxu0 0.0
        %1520 = vmatprep.subr.mxu0 0.0
        %1521 = vmatpush2.msra.mxu0 0.0
        %1522 = vmatprep.subr.mxu0 0.0
        %1523 = vmatpush2.msra.mxu0 0.0
        %1524 = vmatprep.subr.mxu0 0.0
        %1525 = vmatpush2.msra.mxu0 0.0
        %1526 = vmatprep.mubr.f32.mxu0 0.0
        %1527 = vmatmul.mubr.f32.gmra.mxu0 %v1460
        %v1528 = vpop.f32.mrf.mxu0
        %v1529 = vadd.f32 0.0, %v1528
        %v1530 = vpop.f32.mrf.mxu0
        %1531 = vdwg.mxu0
        %1532 = vst.msk [vmem:[#allocation2] sm:$0xff] %vm1458, %v1529
        %v1533 = vsel %vm1440, %v1436, %v1420
        %v1534 = vsel %vm1443, %v1439, %v1533
        %v1535 = vsel %vm1446, %v1442, %v1534
        %v1536 = vsel %vm1449, %v1445, %v1535
        %v1537 = vsel %vm1452, %v1448, %v1536
        %v1538 = vsel %vm1455, %v1451, %v1537
        %s1541 = scalar_lea.vmem %s574, 8 [#allocation13]
        %vm1542 = vcmask 64513
        %1543 = vst.msk [vmem:[%s1541 - $0x1] sm:$0xfe] %vm1542, %v1538
        %vm1544 = vcmask 57344
        %1545 = vst.msk [vmem:[%s1541 + $0x7] sm:$0x1] %vm1544, %v1454
        %v1546 = vrot.slane %v1420, 1
        %v1547 = vsel %vm1437, %v1421, %v1546
        %v1548 = vrot.slane %v1422, 7
        %v1549 = vsel %vm1440, %v1548, %v1547
        %v1550 = vrot.slane %v1423, 6
        %v1551 = vsel %vm1443, %v1550, %v1549
        %v1552 = vrot.slane %v1424, 5
        %v1553 = vsel %vm1446, %v1552, %v1551
        %v1554 = vrot.slane %v1425, 4
        %v1555 = vsel %vm1449, %v1554, %v1553
        %v1556 = vrot.slane %v1426, 3
        %v1557 = vsel %vm1452, %v1556, %v1555
        %v1558 = vrot.slane %v1427, 2
        %v1559 = vsel %vm1455, %v1558, %v1557
        %1561 = vrot.lane.b32.xlu0 %v729, 120
        %v1562 = vpop.permute.xlu0 %1561
        %v1564 = vsel %vm1458, %v1559, 0
        %1566 = vmatprep.subr.mxu0 0.0
        %1567 = vmatpush1.msra.mxu0 0.0
        %1568 = vmatprep.subr.mxu0 0.0
        %1569 = vmatpush1.msra.mxu0 0.0
        %1570 = vmatprep.subr.mxu0 0.0
        %1571 = vmatpush1.msra.mxu0 0.0
        %1572 = vmatprep.subr.mxu0 0.0
        %1573 = vmatpush1.msra.mxu0 0.0
        %1574 = vmatprep.subr.mxu0 0.0
        %1575 = vmatpush1.msra.mxu0 0.0
        %1576 = vmatprep.subr.mxu0 0.0
        %1577 = vmatpush1.msra.mxu0 0.0
        %1578 = vmatprep.subr.mxu0 0.0
        %1579 = vmatpush1.msra.mxu0 0.0
        %1580 = vmatprep.subr.mxu0 0.0
        %1581 = vmatpush1.msra.mxu0 0.0
        %1582 = vmatprep.subr.mxu0 0.0
        %1583 = vmatpush1.msra.mxu0 0.0
        %1584 = vmatprep.subr.mxu0 0.0
        %1585 = vmatpush1.msra.mxu0 0.0
        %1586 = vmatprep.subr.mxu0 0.0
        %1587 = vmatpush1.msra.mxu0 0.0
        %1588 = vmatprep.subr.mxu0 0.0
        %1589 = vmatpush1.msra.mxu0 0.0
        %1590 = vmatprep.subr.mxu0 0.0
        %1591 = vmatpush1.msra.mxu0 0.0
        %1592 = vmatprep.subr.mxu0 0.0
        %1593 = vmatpush1.msra.mxu0 0.0
        %1594 = vmatprep.subr.mxu0 0.0
        %1595 = vmatpush1.msra.mxu0 0.0
        %1596 = vmatprep.subr.mxu0 0.0
        %1597 = vmatpush1.msra.mxu0 %v1562
        %1598 = vmatprep.subr.mxu0 0.0
        %1599 = vmatpush2.msra.mxu0 0.0
        %1600 = vmatprep.subr.mxu0 0.0
        %1601 = vmatpush2.msra.mxu0 0.0
        %1602 = vmatprep.subr.mxu0 0.0
        %1603 = vmatpush2.msra.mxu0 0.0
        %1604 = vmatprep.subr.mxu0 0.0
        %1605 = vmatpush2.msra.mxu0 0.0
        %1606 = vmatprep.subr.mxu0 0.0
        %1607 = vmatpush2.msra.mxu0 0.0
        %1608 = vmatprep.subr.mxu0 0.0
        %1609 = vmatpush2.msra.mxu0 0.0
        %1610 = vmatprep.subr.mxu0 0.0
        %1611 = vmatpush2.msra.mxu0 0.0
        %1612 = vmatprep.subr.mxu0 0.0
        %1613 = vmatpush2.msra.mxu0 0.0
        %1614 = vmatprep.subr.mxu0 0.0
        %1615 = vmatpush2.msra.mxu0 0.0
        %1616 = vmatprep.subr.mxu0 0.0
        %1617 = vmatpush2.msra.mxu0 0.0
        %1618 = vmatprep.subr.mxu0 0.0
        %1619 = vmatpush2.msra.mxu0 0.0
        %1620 = vmatprep.subr.mxu0 0.0
        %1621 = vmatpush2.msra.mxu0 0.0
        %1622 = vmatprep.subr.mxu0 0.0
        %1623 = vmatpush2.msra.mxu0 0.0
        %1624 = vmatprep.subr.mxu0 0.0
        %1625 = vmatpush2.msra.mxu0 0.0
        %1626 = vmatprep.subr.mxu0 0.0
        %1627 = vmatpush2.msra.mxu0 0.0
        %1628 = vmatprep.subr.mxu0 0.0
        %1629 = vmatpush2.msra.mxu0 0.0
        %1630 = vmatprep.mubr.f32.mxu0 0.0
        %1631 = vmatmul.mubr.f32.gmra.mxu0 %v1564
        %v1632 = vpop.f32.mrf.mxu0
        %v1633 = vadd.f32 0.0, %v1632
        %v1634 = vpop.f32.mrf.mxu0
        %1635 = vdwg.mxu0
        %1637 = vrot.lane.b32.xlu0 %v1633, 8
        %v1638 = vpop.permute.xlu0 %1637
        %vm1640 = vcmask 130112
        %1641 = vst.msk [vmem:[#allocation2] sm:$0xff] %vm1640, %v1638
        %v1642 = vsel %vm1443, %v1436, %v1420
        %v1643 = vsel %vm1446, %v1439, %v1642
        %v1644 = vsel %vm1449, %v1442, %v1643
        %v1645 = vsel %vm1452, %v1445, %v1644
        %v1646 = vsel %vm1455, %v1448, %v1645
        %v1647 = vsel %vm1437, %v1454, %v1451
        %s1650 = scalar_lea.vmem %s574, 16 [#allocation13]
        %vm1651 = vcmask 64514
        %1652 = vst.msk [vmem:[%s1650 - $0x2] sm:$0xfc] %vm1651, %v1646
        %vm1653 = vcmask 58368
        %1654 = vst.msk [vmem:[%s1650 + $0x6] sm:$0x3] %vm1653, %v1647
        %v1655 = vrot.slane %v1420, 2
        %v1656 = vrot.slane %v1421, 1
        %v1657 = vsel %vm1437, %v1656, %v1655
        %v1658 = vsel %vm1440, %v1422, %v1657
        %v1659 = vrot.slane %v1423, 7
        %v1660 = vsel %vm1443, %v1659, %v1658
        %v1661 = vrot.slane %v1424, 6
        %v1662 = vsel %vm1446, %v1661, %v1660
        %v1663 = vrot.slane %v1425, 5
        %v1664 = vsel %vm1449, %v1663, %v1662
        %v1665 = vrot.slane %v1426, 4
        %v1666 = vsel %vm1452, %v1665, %v1664
        %v1667 = vrot.slane %v1427, 3
        %v1668 = vsel %vm1455, %v1667, %v1666
        %1669 = vrot.lane.b32.xlu0 %v729, 112
        %v1670 = vpop.permute.xlu0 %1669
        %v1672 = vsel %vm1458, %v1668, 0
        %1674 = vmatprep.subr.mxu0 0.0
        %1675 = vmatpush1.msra.mxu0 0.0
        %1676 = vmatprep.subr.mxu0 0.0
        %1677 = vmatpush1.msra.mxu0 0.0
        %1678 = vmatprep.subr.mxu0 0.0
        %1679 = vmatpush1.msra.mxu0 0.0
        %1680 = vmatprep.subr.mxu0 0.0
        %1681 = vmatpush1.msra.mxu0 0.0
        %1682 = vmatprep.subr.mxu0 0.0
        %1683 = vmatpush1.msra.mxu0 0.0
        %1684 = vmatprep.subr.mxu0 0.0
        %1685 = vmatpush1.msra.mxu0 0.0
        %1686 = vmatprep.subr.mxu0 0.0
        %1687 = vmatpush1.msra.mxu0 0.0
        %1688 = vmatprep.subr.mxu0 0.0
        %1689 = vmatpush1.msra.mxu0 0.0
        %1690 = vmatprep.subr.mxu0 0.0
        %1691 = vmatpush1.msra.mxu0 0.0
        %1692 = vmatprep.subr.mxu0 0.0
        %1693 = vmatpush1.msra.mxu0 0.0
        %1694 = vmatprep.subr.mxu0 0.0
        %1695 = vmatpush1.msra.mxu0 0.0
        %1696 = vmatprep.subr.mxu0 0.0
        %1697 = vmatpush1.msra.mxu0 0.0
        %1698 = vmatprep.subr.mxu0 0.0
        %1699 = vmatpush1.msra.mxu0 0.0
        %1700 = vmatprep.subr.mxu0 0.0
        %1701 = vmatpush1.msra.mxu0 0.0
        %1702 = vmatprep.subr.mxu0 0.0
        %1703 = vmatpush1.msra.mxu0 0.0
        %1704 = vmatprep.subr.mxu0 0.0
        %1705 = vmatpush1.msra.mxu0 %v1670
        %1706 = vmatprep.subr.mxu0 0.0
        %1707 = vmatpush2.msra.mxu0 0.0
        %1708 = vmatprep.subr.mxu0 0.0
        %1709 = vmatpush2.msra.mxu0 0.0
        %1710 = vmatprep.subr.mxu0 0.0
        %1711 = vmatpush2.msra.mxu0 0.0
        %1712 = vmatprep.subr.mxu0 0.0
        %1713 = vmatpush2.msra.mxu0 0.0
        %1714 = vmatprep.subr.mxu0 0.0
        %1715 = vmatpush2.msra.mxu0 0.0
        %1716 = vmatprep.subr.mxu0 0.0
        %1717 = vmatpush2.msra.mxu0 0.0
        %1718 = vmatprep.subr.mxu0 0.0
        %1719 = vmatpush2.msra.mxu0 0.0
        %1720 = vmatprep.subr.mxu0 0.0
        %1721 = vmatpush2.msra.mxu0 0.0
        %1722 = vmatprep.subr.mxu0 0.0
        %1723 = vmatpush2.msra.mxu0 0.0
        %1724 = vmatprep.subr.mxu0 0.0
        %1725 = vmatpush2.msra.mxu0 0.0
        %1726 = vmatprep.subr.mxu0 0.0
        %1727 = vmatpush2.msra.mxu0 0.0
        %1728 = vmatprep.subr.mxu0 0.0
        %1729 = vmatpush2.msra.mxu0 0.0
        %1730 = vmatprep.subr.mxu0 0.0
        %1731 = vmatpush2.msra.mxu0 0.0
        %1732 = vmatprep.subr.mxu0 0.0
        %1733 = vmatpush2.msra.mxu0 0.0
        %1734 = vmatprep.subr.mxu0 0.0
        %1735 = vmatpush2.msra.mxu0 0.0
        %1736 = vmatprep.subr.mxu0 0.0
        %1737 = vmatpush2.msra.mxu0 0.0
        %1738 = vmatprep.mubr.f32.mxu0 0.0
        %1739 = vmatmul.mubr.f32.gmra.mxu0 %v1672
        %v1740 = vpop.f32.mrf.mxu0
        %v1741 = vadd.f32 0.0, %v1740
        %v1742 = vpop.f32.mrf.mxu0
        %1743 = vdwg.mxu0
        %1745 = vrot.lane.b32.xlu0 %v1741, 16
        %v1746 = vpop.permute.xlu0 %1745
        %vm1748 = vcmask 195712
        %1749 = vst.msk [vmem:[#allocation2] sm:$0xff] %vm1748, %v1746
        %v1750 = vsel %vm1446, %v1436, %v1420
        %v1751 = vsel %vm1449, %v1439, %v1750
        %v1752 = vsel %vm1452, %v1442, %v1751
        %v1753 = vsel %vm1455, %v1445, %v1752
        %v1754 = vsel %vm1437, %v1451, %v1448
        %v1755 = vsel %vm1440, %v1454, %v1754
        %s1758 = scalar_lea.vmem %s574, 24 [#allocation13]
        %vm1759 = vcmask 64515
        %1760 = vst.msk [vmem:[%s1758 - $0x3] sm:$0xf8] %vm1759, %v1753
        %vm1761 = vcmask 59392
        %1762 = vst.msk [vmem:[%s1758 + $0x5] sm:$0x7] %vm1761, %v1755
        %v1763 = vrot.slane %v1420, 3
        %v1764 = vrot.slane %v1421, 2
        %v1765 = vsel %vm1437, %v1764, %v1763
        %v1766 = vrot.slane %v1422, 1
        %v1767 = vsel %vm1440, %v1766, %v1765
        %v1768 = vsel %vm1443, %v1423, %v1767
        %v1769 = vrot.slane %v1424, 7
        %v1770 = vsel %vm1446, %v1769, %v1768
        %v1771 = vrot.slane %v1425, 6
        %v1772 = vsel %vm1449, %v1771, %v1770
        %v1773 = vrot.slane %v1426, 5
        %v1774 = vsel %vm1452, %v1773, %v1772
        %v1775 = vrot.slane %v1427, 4
        %v1776 = vsel %vm1455, %v1775, %v1774
        %1777 = vrot.lane.b32.xlu0 %v729, 104
        %v1778 = vpop.permute.xlu0 %1777
        %v1780 = vsel %vm1458, %v1776, 0
        %1782 = vmatprep.subr.mxu0 0.0
        %1783 = vmatpush1.msra.mxu0 0.0
        %1784 = vmatprep.subr.mxu0 0.0
        %1785 = vmatpush1.msra.mxu0 0.0
        %1786 = vmatprep.subr.mxu0 0.0
        %1787 = vmatpush1.msra.mxu0 0.0
        %1788 = vmatprep.subr.mxu0 0.0
        %1789 = vmatpush1.msra.mxu0 0.0
        %1790 = vmatprep.subr.mxu0 0.0
        %1791 = vmatpush1.msra.mxu0 0.0
        %1792 = vmatprep.subr.mxu0 0.0
        %1793 = vmatpush1.msra.mxu0 0.0
        %1794 = vmatprep.subr.mxu0 0.0
        %1795 = vmatpush1.msra.mxu0 0.0
        %1796 = vmatprep.subr.mxu0 0.0
        %1797 = vmatpush1.msra.mxu0 0.0
        %1798 = vmatprep.subr.mxu0 0.0
        %1799 = vmatpush1.msra.mxu0 0.0
        %1800 = vmatprep.subr.mxu0 0.0
        %1801 = vmatpush1.msra.mxu0 0.0
        %1802 = vmatprep.subr.mxu0 0.0
        %1803 = vmatpush1.msra.mxu0 0.0
        %1804 = vmatprep.subr.mxu0 0.0
        %1805 = vmatpush1.msra.mxu0 0.0
        %1806 = vmatprep.subr.mxu0 0.0
        %1807 = vmatpush1.msra.mxu0 0.0
        %1808 = vmatprep.subr.mxu0 0.0
        %1809 = vmatpush1.msra.mxu0 0.0
        %1810 = vmatprep.subr.mxu0 0.0
        %1811 = vmatpush1.msra.mxu0 0.0
        %1812 = vmatprep.subr.mxu0 0.0
        %1813 = vmatpush1.msra.mxu0 %v1778
        %1814 = vmatprep.subr.mxu0 0.0
        %1815 = vmatpush2.msra.mxu0 0.0
        %1816 = vmatprep.subr.mxu0 0.0
        %1817 = vmatpush2.msra.mxu0 0.0
        %1818 = vmatprep.subr.mxu0 0.0
        %1819 = vmatpush2.msra.mxu0 0.0
        %1820 = vmatprep.subr.mxu0 0.0
        %1821 = vmatpush2.msra.mxu0 0.0
        %1822 = vmatprep.subr.mxu0 0.0
        %1823 = vmatpush2.msra.mxu0 0.0
        %1824 = vmatprep.subr.mxu0 0.0
        %1825 = vmatpush2.msra.mxu0 0.0
        %1826 = vmatprep.subr.mxu0 0.0
        %1827 = vmatpush2.msra.mxu0 0.0
        %1828 = vmatprep.subr.mxu0 0.0
        %1829 = vmatpush2.msra.mxu0 0.0
        %1830 = vmatprep.subr.mxu0 0.0
        %1831 = vmatpush2.msra.mxu0 0.0
        %1832 = vmatprep.subr.mxu0 0.0
        %1833 = vmatpush2.msra.mxu0 0.0
        %1834 = vmatprep.subr.mxu0 0.0
        %1835 = vmatpush2.msra.mxu0 0.0
        %1836 = vmatprep.subr.mxu0 0.0
        %1837 = vmatpush2.msra.mxu0 0.0
        %1838 = vmatprep.subr.mxu0 0.0
        %1839 = vmatpush2.msra.mxu0 0.0
        %1840 = vmatprep.subr.mxu0 0.0
        %1841 = vmatpush2.msra.mxu0 0.0
        %1842 = vmatprep.subr.mxu0 0.0
        %1843 = vmatpush2.msra.mxu0 0.0
        %1844 = vmatprep.subr.mxu0 0.0
        %1845 = vmatpush2.msra.mxu0 0.0
        %1846 = vmatprep.mubr.f32.mxu0 0.0
        %1847 = vmatmul.mubr.f32.gmra.mxu0 %v1780
        %v1848 = vpop.f32.mrf.mxu0
        %v1849 = vadd.f32 0.0, %v1848
        %v1850 = vpop.f32.mrf.mxu0
        %1851 = vdwg.mxu0
        %1853 = vrot.lane.b32.xlu0 %v1849, 24
        %v1854 = vpop.permute.xlu0 %1853
        %vm1856 = vcmask 261312
        %1857 = vst.msk [vmem:[#allocation2] sm:$0xff] %vm1856, %v1854
        %v1858 = vld [vmem:[#allocation2] sm:$0xff]
        %v1859 = vld [vmem:[#allocation11] sm:$0xff]
        %v1860 = vld [vmem:[#allocation11 + $0x8] sm:$0xff]
        %v1861 = vld [vmem:[#allocation11 + $0x10] sm:$0xff]
        %v1862 = vld [vmem:[#allocation11 + $0x18] sm:$0xff]
        %v1863 = vld [vmem:[%s9] sm:$0x1]
        %v1865 = vlaneseq
        %v1866 = vshrl.u32 %v1865, 7
        %v1867 = vsub.s32 0, %v1866
        %v1868 = vrot.slane %v1863, %v1867
        %v1871 = vsel %vm598, %v1858, 0
        %1873 = vmatprep.subr.mxu0 0.0
        %1874 = vmatpush1.msra.mxu0 0.0
        %1875 = vmatprep.subr.mxu0 0.0
        %1876 = vmatpush1.msra.mxu0 0.0
        %1877 = vmatprep.subr.mxu0 0.0
        %1878 = vmatpush1.msra.mxu0 0.0
        %1879 = vmatprep.subr.mxu0 0.0
        %1880 = vmatpush1.msra.mxu0 0.0
        %1881 = vmatprep.subr.mxu0 0.0
        %1882 = vmatpush1.msra.mxu0 0.0
        %1883 = vmatprep.subr.mxu0 0.0
        %1884 = vmatpush1.msra.mxu0 0.0
        %1885 = vmatprep.subr.mxu0 0.0
        %1886 = vmatpush1.msra.mxu0 0.0
        %1887 = vmatprep.subr.mxu0 0.0
        %1888 = vmatpush1.msra.mxu0 0.0
        %1889 = vmatprep.subr.mxu0 0.0
        %1890 = vmatpush1.msra.mxu0 0.0
        %1891 = vmatprep.subr.mxu0 0.0
        %1892 = vmatpush1.msra.mxu0 0.0
        %1893 = vmatprep.subr.mxu0 0.0
        %1894 = vmatpush1.msra.mxu0 0.0
        %1895 = vmatprep.subr.mxu0 0.0
        %1896 = vmatpush1.msra.mxu0 0.0
        %1897 = vmatprep.subr.mxu0 0.0
        %1898 = vmatpush1.msra.mxu0 %v1862
        %1899 = vmatprep.subr.mxu0 0.0
        %1900 = vmatpush1.msra.mxu0 %v1861
        %1901 = vmatprep.subr.mxu0 0.0
        %1902 = vmatpush1.msra.mxu0 %v1860
        %1903 = vmatprep.subr.mxu0 0.0
        %1904 = vmatpush1.msra.mxu0 %v1859
        %1905 = vmatprep.subr.mxu0 0.0
        %1906 = vmatpush2.msra.mxu0 0.0
        %1907 = vmatprep.subr.mxu0 0.0
        %1908 = vmatpush2.msra.mxu0 0.0
        %1909 = vmatprep.subr.mxu0 0.0
        %1910 = vmatpush2.msra.mxu0 0.0
        %1911 = vmatprep.subr.mxu0 0.0
        %1912 = vmatpush2.msra.mxu0 0.0
        %1913 = vmatprep.subr.mxu0 0.0
        %1914 = vmatpush2.msra.mxu0 0.0
        %1915 = vmatprep.subr.mxu0 0.0
        %1916 = vmatpush2.msra.mxu0 0.0
        %1917 = vmatprep.subr.mxu0 0.0
        %1918 = vmatpush2.msra.mxu0 0.0
        %1919 = vmatprep.subr.mxu0 0.0
        %1920 = vmatpush2.msra.mxu0 0.0
        %1921 = vmatprep.subr.mxu0 0.0
        %1922 = vmatpush2.msra.mxu0 0.0
        %1923 = vmatprep.subr.mxu0 0.0
        %1924 = vmatpush2.msra.mxu0 0.0
        %1925 = vmatprep.subr.mxu0 0.0
        %1926 = vmatpush2.msra.mxu0 0.0
        %1927 = vmatprep.subr.mxu0 0.0
        %1928 = vmatpush2.msra.mxu0 0.0
        %1929 = vmatprep.subr.mxu0 0.0
        %1930 = vmatpush2.msra.mxu0 0.0
        %1931 = vmatprep.subr.mxu0 0.0
        %1932 = vmatpush2.msra.mxu0 0.0
        %1933 = vmatprep.subr.mxu0 0.0
        %1934 = vmatpush2.msra.mxu0 0.0
        %1935 = vmatprep.subr.mxu0 0.0
        %1936 = vmatpush2.msra.mxu0 0.0
        %1937 = vmatprep.mubr.f32.mxu0 0.0
        %1938 = vmatmul.mubr.f32.gmra.mxu0 %v1871
        %v1939 = vpop.f32.mrf.mxu0
        %v1940 = vadd.f32 %v1868, %v1939
        %v1941 = vpop.f32.mrf.mxu0
        %1942 = vdwg.mxu0
        %1943 = vst.msk [vmem:[%s567] sm:$0xff] %vm598, %v1940
        %s1944 = sand.u32 %s301, 1
        %s1945 = scalar_lea.sflag [#allocation5], %s1944
        %s1946 = sand.u32 %s301, 1
        %s1947 = smul.addr %s1946, 8
        %s1948 = scalar_lea.vmem [#allocation12], %s1947
        %s1949 = sand.u32 %s329, 1
        %s1950 = scalar_lea.sflag [#allocation14], %s1949
        %s1951 = sand.u32 %s329, 1
        %s1952 = smul.addr %s1951, 32
        %s1953 = scalar_lea.vmem [#allocation13], %s1952
        // Predicated region
        $region81: #{tpu_custom_call.1} parent=59 // pred_check
          %p1954 = pneg %p311
        $region82: #{tpu_custom_call.1} parent=59 // pred_check_branch
          %1956 = sbr.rel (%p1954) target = $region84
        $region83: #{tpu_custom_call.1} parent=59 // pred_region
          %s1958 = ssub.s32 128, 128
          %1959 = vsyncadd %s1945, %s1958
          %s1960 = sadd.s32 %s43, %s42
          %s1961 = smul.addr %s1960, 128
          %s1962 = scalar_lea.hbm %s10, %s1961
          %s1964 = sshll.u32 %s1948, 4
          %s1965 = int_to_ptr.vmem [resolvable:$true] %s1964
          %1967 = dma.vmem_to_hbm [thread:$0]  %s1965, 128, %s1962, %s1945
        $region84: #{tpu_custom_call.1} parent=59 // pred_fallthru
          _
        // Predicated region
        $region85: #{tpu_custom_call.1} parent=59 // pred_check
          %p1968 = pneg %p339
        $region86: #{tpu_custom_call.1} parent=59 // pred_check_branch
          %1970 = sbr.rel (%p1968) target = $region88
        $region87: #{tpu_custom_call.1} parent=59 // pred_region
          %s1972 = ssub.s32 512, 512
          %1973 = vsyncadd %s1950, %s1972
          %s1974 = smul.addr %s42, 4
          %s1975 = sadd.s32 %s43, %s1974
          %s1976 = smul.addr %s1975, 128
          %s1977 = scalar_lea.hbm %s11, %s1976
          %s1978 = sshll.u32 %s1953, 4
          %s1979 = int_to_ptr.vmem [resolvable:$true] %s1978
          %1984 = dma.vmem_to_hbm [thread:$0]  %s1979, 512, %s1977, %s1950, 128, 128, 8
        $region88: #{tpu_custom_call.1} parent=59 // pred_fallthru
          _
      $region60: #{tpu_custom_call.1} parent=5 // pred_fallthru
        _
      %p1985 = scmp.le.s32.totalorder 2, %s33
      // Predicated region
      $region89: #{tpu_custom_call.1} parent=5 // pred_check
        %p1986 = pneg %p1985
      $region90: #{tpu_custom_call.1} parent=5 // pred_check_branch
        %1988 = sbr.rel (%p1986) target = $region92
      $region91: #{tpu_custom_call.1} parent=5 // pred_region
        %s1989 = ssub.s32 %s33, 2
        // Predicated region
        $region93: #{tpu_custom_call.1} parent=91 // pred_check
          %p1990 = pneg %p317
        $region94: #{tpu_custom_call.1} parent=91 // pred_check_branch
          %1992 = sbr.rel (%p1990) target = $region96
        $region95: #{tpu_custom_call.1} parent=91 // pred_region
          %s1993 = sand.u32 %s302, 1
          %s1994 = scalar_lea.sflag [#allocation5], %s1993
          %s1995 = sand.u32 %s302, 1
          %s1996 = smul.addr %s1995, 8
          %s1997 = scalar_lea.vmem [#allocation12], %s1996
          %1998 = dma.done %s1994, 128
        $region96: #{tpu_custom_call.1} parent=91 // pred_fallthru
          _
        // Predicated region
        $region97: #{tpu_custom_call.1} parent=91 // pred_check
          %p1999 = pneg %p345
        $region98: #{tpu_custom_call.1} parent=91 // pred_check_branch
          %2001 = sbr.rel (%p1999) target = $region100
        $region99: #{tpu_custom_call.1} parent=91 // pred_region
          %s2002 = sand.u32 %s330, 1
          %s2003 = scalar_lea.sflag [#allocation14], %s2002
          %s2004 = sand.u32 %s330, 1
          %s2005 = smul.addr %s2004, 32
          %s2006 = scalar_lea.vmem [#allocation13], %s2005
          %2007 = dma.done %s2003, 512
        $region100: #{tpu_custom_call.1} parent=91 // pred_fallthru
          _
      $region92: #{tpu_custom_call.1} parent=5 // pred_fallthru
        _
    $region6: #{tpu_custom_call.1} parent=1 // loop_footer
      %s37 = sadd.s32 1, %s33
    $region7: #{tpu_custom_call.1} parent=1 // loop_footer_branch
      %32 = sbr.rel target = $region3
    $region8: #{tpu_custom_call.1} parent=1 // loop_exit
      _
    %2008 = vsyncpa [#allocation4], 1
    %s2009 = scalar_lea.sflag [#allocation4], 1
    %2010 = vsyncpa %s2009, 1
    %2011 = vsyncpa [#allocation7], 1
    %s2012 = scalar_lea.sflag [#allocation7], 1
    %2013 = vsyncpa %s2012, 1
    %2014 = vsyncpa [#allocation10], 1
    %s2015 = scalar_lea.sflag [#allocation10], 1
    %2016 = vsyncpa %s2015, 1
    %2017 = vsyncpa [#allocation5], 1
    %s2018 = scalar_lea.sflag [#allocation5], 1
    %2019 = vsyncpa %s2018, 1
    %2020 = vsyncpa [#allocation14], 1
    %s2021 = scalar_lea.sflag [#allocation14], 1
    %2022 = vsyncpa %s2021, 1

// kernel: tpu_custom_call.1
$region0: #{tpu_custom_call.1}
  #allocation0 [shape = 'u32[]', space=smem, size = 0x4, offset = 0x4, fixed_abs, tag = 'smem constant byte address 0x4 - core index']
  #allocation1 [shape = 'u32[144,128]{1,0:T(1,128)}', space=vmem, size = 0x12000, scoped, tag = 'internal scratch']
  #allocation2 [shape = 'f32[8,32]{1,0:T(8,128)}', space=vmem, size = 0x1000, scoped, tag = 'scratch operand']
  %s0 = inlined_call_operand.hbm [shape: f32[2,8,32], index: 0, kind: input, shape index: {}]
  %s1 = inlined_call_operand.hbm [shape: f32[2,8,32], index: 1, kind: input, shape index: {}]
  %s2 = inlined_call_operand.hbm [shape: f32[2,8,8,32], index: 2, kind: input, shape index: {}]
  %s3 = inlined_call_operand.hbm [shape: f32[2,1,8,8], index: 3, kind: input, shape index: {}]
  %s4 = inlined_call_operand.vmem [shape: f32[2,1,1,8], index: 4, kind: input, shape index: {}]
  %s5 = inlined_call_operand.vmem [shape: f32[32,32], index: 5, kind: input, shape index: {}]
  %s6 = inlined_call_operand.vmem [shape: f32[1,32], index: 6, kind: input, shape index: {}]
  %s7 = inlined_call_operand.vmem [shape: f32[32,4], index: 7, kind: input, shape index: {}]
  %s8 = inlined_call_operand.hbm [shape: f32[32,32], index: 8, kind: input, shape index: {}]
  %s9 = inlined_call_operand.vmem [shape: f32[1,32], index: 9, kind: input, shape index: {}]
  %s10 = inlined_call_operand.hbm [shape: f32[2,8,32], index: 10, kind: output, shape index: {0}]
  %s11 = inlined_call_operand.hbm [shape: f32[2,4,8,8], index: 11, kind: output, shape index: {1}]
  %12 = xla_tuple %s10, %s11
  %s13 = sld [smem:[#allocation0]]
  $region101: #{tpu_custom_call.1} parent=0
    _
  %s15 = ssub.s32 1, %s13
  %s16 = scalar_select 0, %s15, %s13
  $region1: #{tpu_custom_call.1} parent=0
    #allocation3 [shape = 'u8[8192]{0}', space=vmem, size = 0x2000, scoped, tag = 'input window, operand 0']
    #allocation4 [shape = 's32[2]{0}', space=sflag, size = 0x8, scoped, tag = 'scoped memory for tpu_custom_call.1']
    #allocation5 [shape = 's32[2]{0}', space=sflag, size = 0x8, scoped, tag = 'scoped memory for tpu_custom_call.1']
    #allocation6 [shape = 'u8[8192]{0}', space=vmem, size = 0x2000, scoped, tag = 'input window, operand 1']
    #allocation7 [shape = 's32[2]{0}', space=sflag, size = 0x8, scoped, tag = 'scoped memory for tpu_custom_call.1']
    #allocation8 [shape = 'u8[65536]{0}', space=vmem, size = 0x10000, scoped, tag = 'input window, operand 2']
    #allocation9 [shape = 'u8[8192]{0}', space=vmem, size = 0x2000, scoped, tag = 'input window, operand 3']
    #allocation10 [shape = 's32[2]{0}', space=sflag, size = 0x8, scoped, tag = 'scoped memory for tpu_custom_call.1']
    #allocation11 [shape = 'u8[16384]{0}', space=vmem, size = 0x4000, scoped, tag = 'input window, operand 8, single buffered']
    #allocation12 [shape = 'u8[8192]{0}', space=vmem, size = 0x2000, scoped, tag = 'output window, operand 0']
    #allocation13 [shape = 'u8[32768]{0}', space=vmem, size = 0x8000, scoped, tag = 'output window, operand 1']
    #allocation14 [shape = 's32[2]{0}', space=sflag, size = 0x8, scoped, tag = 'scoped memory for tpu_custom_call.1']
    %17 = vsyncpa [#allocation4], 0
    %s18 = scalar_lea.sflag [#allocation4], 1
    %19 = vsyncpa %s18, 0
    %20 = vsyncpa [#allocation7], 0
    %s21 = scalar_lea.sflag [#allocation7], 1
    %22 = vsyncpa %s21, 0
    %23 = vsyncpa [#allocation10], 0
    %s24 = scalar_lea.sflag [#allocation10], 1
    %25 = vsyncpa %s24, 0
    %26 = vsyncpa [#allocation5], 0
    %s27 = scalar_lea.sflag [#allocation5], 1
    %28 = vsyncpa %s27, 0
    %29 = vsyncpa [#allocation14], 0
    %s30 = scalar_lea.sflag [#allocation14], 1
    %31 = vsyncpa %s30, 0
    loop: start=0, step=1, limit=4
    $region2: #{tpu_custom_call.1} parent=1 // loop_pre_header
      _
    $region3: #{tpu_custom_call.1} parent=1 // loop_header
      %s33 = sphi 0, %s37
      %p34 = scmp.ge.s32.totalorder %s33, 4
      %s40 = sphi 0, %s52
      %s41 = sphi 0, %s48
      %s42 = sphi 0, %s40
      %s43 = sphi 0, %s41
      %s44 = sphi 0, %s42
      %s45 = sphi 0, %s43
      %s57 = sphi 0, %s59
      %s60 = sphi 0, %s57
      %s61 = sphi 0, %s60
      %s77 = sphi 0, %s61
      %s83 = sphi 0, %s85
      %s86 = sphi 0, %s83
      %s87 = sphi 0, %s86
      %s103 = sphi 0, %s87
      %s111 = sphi 0, %s113
      %s114 = sphi 0, %s111
      %s115 = sphi 0, %s114
      %s131 = sphi 0, %s115
      %s139 = sphi 0, %s141
      %s142 = sphi 0, %s139
      %s143 = sphi 0, %s142
      %s159 = sphi 0, %s143
      %s165 = sphi 0, %s167
      %s168 = sphi 0, %s165
      %s169 = sphi 0, %s168
      %s185 = sphi 0, %s169
      %s189 = sphi 0, %s189
      %s191 = sphi 0, %s189
      %s192 = sphi 0, %s191
      %s206 = sphi 0, %s192
      %s210 = sphi 0, %s210
      %s212 = sphi 0, %s210
      %s213 = sphi 0, %s212
      %s227 = sphi 0, %s213
      %s231 = sphi 0, %s231
      %s233 = sphi 0, %s231
      %s234 = sphi 0, %s233
      %s248 = sphi 0, %s234
      %s252 = sphi 0, %s252
      %s254 = sphi 0, %s252
      %s255 = sphi 0, %s254
      %s269 = sphi 0, %s255
      %s273 = sphi 0, %s273
      %s275 = sphi 0, %s273
      %s276 = sphi 0, %s275
      %s290 = sphi 0, %s276
      %s298 = sphi 0, %s300
      %s301 = sphi 0, %s298
      %s302 = sphi 0, %s301
      %s318 = sphi 0, %s302
      %s326 = sphi 0, %s328
      %s329 = sphi 0, %s326
      %s330 = sphi 0, %s329
      %s346 = sphi 0, %s330
    $region4: #{tpu_custom_call.1} parent=1 // loop_header_branch
      %36 = sbr.rel (%p34) target = $region8
    $region5: #{tpu_custom_call.1} parent=1 // loop_body
      %s38 = ssub.s32 %s33, 1
      %s39 = ssub.s32 %s33, 2
      %s46 = sadd.s32 1, %s41
      %p47 = scmp.ge.s32.totalorder %s46, 1
      %s48 = scalar_select %p47, 0, %s46
      %s49 = sadd.s32 1, %s40
      %s50 = scalar_select %p47, %s49, %s40
      %p51 = scmp.ge.s32.totalorder %s50, 2
      %s52 = scalar_select %p51, 0, %s50
      %s53 = ssub.s32 %s40, %s52
      %s54 = ssub.s32 %s41, %s48
      %s55 = sor.u32 %s53, %s54
      %p56 = scmp.eq.s32.totalorder %s55, 0
      %s58 = sadd.s32 %s57, 1
      %s59 = scalar_select %p56, %s57, %s58
      %p62 = pneg %p56
      %p63 = scmp.eq.s32.totalorder %s33, 1
      %p64 = por %p62, %p63
      %p65 = scmp.ne.s32.totalorder %s57, %s60
      %p66 = scmp.eq.s32.totalorder %s33, 0
      %p67 = por %p65, %p66
      %p68 = scmp.ne.s32.totalorder %s57, %s60
      %p69 = scmp.eq.s32.totalorder %s38, 1
      %p70 = por %p68, %p69
      %p71 = scmp.ne.s32.totalorder %s60, %s61
      %p72 = scmp.eq.s32.totalorder %s38, 0
      %p73 = por %p71, %p72
      %p74 = scmp.ne.s32.totalorder %s60, %s61
      %p75 = scmp.eq.s32.totalorder %s39, 1
      %p76 = por %p74, %p75
      %p78 = scmp.ne.s32.totalorder %s61, %s77
      %p79 = scmp.eq.s32.totalorder %s39, 0
      %p80 = por %p78, %p79
      %s81 = ssub.s32 %s40, %s52
      %p82 = scmp.eq.s32.totalorder %s81, 0
      %s84 = sadd.s32 %s83, 1
      %s85 = scalar_select %p82, %s83, %s84
      %p88 = pneg %p82
      %p89 = scmp.eq.s32.totalorder %s33, 1
      %p90 = por %p88, %p89
      %p91 = scmp.ne.s32.totalorder %s83, %s86
      %p92 = scmp.eq.s32.totalorder %s33, 0
      %p93 = por %p91, %p92
      %p94 = scmp.ne.s32.totalorder %s83, %s86
      %p95 = scmp.eq.s32.totalorder %s38, 1
      %p96 = por %p94, %p95
      %p97 = scmp.ne.s32.totalorder %s86, %s87
      %p98 = scmp.eq.s32.totalorder %s38, 0
      %p99 = por %p97, %p98
      %p100 = scmp.ne.s32.totalorder %s86, %s87
      %p101 = scmp.eq.s32.totalorder %s39, 1
      %p102 = por %p100, %p101
      %p104 = scmp.ne.s32.totalorder %s87, %s103
      %p105 = scmp.eq.s32.totalorder %s39, 0
      %p106 = por %p104, %p105
      %s107 = ssub.s32 %s40, %s52
      %s108 = ssub.s32 %s41, %s48
      %s109 = sor.u32 %s107, %s108
      %p110 = scmp.eq.s32.totalorder %s109, 0
      %s112 = sadd.s32 %s111, 1
      %s113 = scalar_select %p110, %s111, %s112
      %p116 = pneg %p110
      %p117 = scmp.eq.s32.totalorder %s33, 1
      %p118 = por %p116, %p117
      %p119 = scmp.ne.s32.totalorder %s111, %s114
      %p120 = scmp.eq.s32.totalorder %s33, 0
      %p121 = por %p119, %p120
      %p122 = scmp.ne.s32.totalorder %s111, %s114
      %p123 = scmp.eq.s32.totalorder %s38, 1
      %p124 = por %p122, %p123
      %p125 = scmp.ne.s32.totalorder %s114, %s115
      %p126 = scmp.eq.s32.totalorder %s38, 0
      %p127 = por %p125, %p126
      %p128 = scmp.ne.s32.totalorder %s114, %s115
      %p129 = scmp.eq.s32.totalorder %s39, 1
      %p130 = por %p128, %p129
      %p132 = scmp.ne.s32.totalorder %s115, %s131
      %p133 = scmp.eq.s32.totalorder %s39, 0
      %p134 = por %p132, %p133
      %s135 = ssub.s32 %s40, %s52
      %s136 = ssub.s32 %s41, %s48
      %s137 = sor.u32 %s135, %s136
      %p138 = scmp.eq.s32.totalorder %s137, 0
      %s140 = sadd.s32 %s139, 1
      %s141 = scalar_select %p138, %s139, %s140
      %p144 = pneg %p138
      %p145 = scmp.eq.s32.totalorder %s33, 1
      %p146 = por %p144, %p145
      %p147 = scmp.ne.s32.totalorder %s139, %s142
      %p148 = scmp.eq.s32.totalorder %s33, 0
      %p149 = por %p147, %p148
      %p150 = scmp.ne.s32.totalorder %s139, %s142
      %p151 = scmp.eq.s32.totalorder %s38, 1
      %p152 = por %p150, %p151
      %p153 = scmp.ne.s32.totalorder %s142, %s143
      %p154 = scmp.eq.s32.totalorder %s38, 0
      %p155 = por %p153, %p154
      %p156 = scmp.ne.s32.totalorder %s142, %s143
      %p157 = scmp.eq.s32.totalorder %s39, 1
      %p158 = por %p156, %p157
      %p160 = scmp.ne.s32.totalorder %s143, %s159
      %p161 = scmp.eq.s32.totalorder %s39, 0
      %p162 = por %p160, %p161
      %s163 = ssub.s32 %s40, %s52
      %p164 = scmp.eq.s32.totalorder %s163, 0
      %s166 = sadd.s32 %s165, 1
      %s167 = scalar_select %p164, %s165, %s166
      %p170 = pneg %p164
      %p171 = scmp.eq.s32.totalorder %s33, 1
      %p172 = por %p170, %p171
      %p173 = scmp.ne.s32.totalorder %s165, %s168
      %p174 = scmp.eq.s32.totalorder %s33, 0
      %p175 = por %p173, %p174
      %p176 = scmp.ne.s32.totalorder %s165, %s168
      %p177 = scmp.eq.s32.totalorder %s38, 1
      %p178 = por %p176, %p177
      %p179 = scmp.ne.s32.totalorder %s168, %s169
      %p180 = scmp.eq.s32.totalorder %s38, 0
      %p181 = por %p179, %p180
      %p182 = scmp.ne.s32.totalorder %s168, %s169
      %p183 = scmp.eq.s32.totalorder %s39, 1
      %p184 = por %p182, %p183
      %p186 = scmp.ne.s32.totalorder %s169, %s185
      %p187 = scmp.eq.s32.totalorder %s39, 0
      %p188 = por %p186, %p187
      %s190 = sadd.s32 %s189, 1
      %p193 = scmp.eq.s32.totalorder %s33, 1
      %p194 = scmp.ne.s32.totalorder %s189, %s191
      %p195 = scmp.eq.s32.totalorder %s33, 0
      %p196 = por %p194, %p195
      %p197 = scmp.ne.s32.totalorder %s189, %s191
      %p198 = scmp.eq.s32.totalorder %s38, 1
      %p199 = por %p197, %p198
      %p200 = scmp.ne.s32.totalorder %s191, %s192
      %p201 = scmp.eq.s32.totalorder %s38, 0
      %p202 = por %p200, %p201
      %p203 = scmp.ne.s32.totalorder %s191, %s192
      %p204 = scmp.eq.s32.totalorder %s39, 1
      %p205 = por %p203, %p204
      %p207 = scmp.ne.s32.totalorder %s192, %s206
      %p208 = scmp.eq.s32.totalorder %s39, 0
      %p209 = por %p207, %p208
      %s211 = sadd.s32 %s210, 1
      %p214 = scmp.eq.s32.totalorder %s33, 1
      %p215 = scmp.ne.s32.totalorder %s210, %s212
      %p216 = scmp.eq.s32.totalorder %s33, 0
      %p217 = por %p215, %p216
      %p218 = scmp.ne.s32.totalorder %s210, %s212
      %p219 = scmp.eq.s32.totalorder %s38, 1
      %p220 = por %p218, %p219
      %p221 = scmp.ne.s32.totalorder %s212, %s213
      %p222 = scmp.eq.s32.totalorder %s38, 0
      %p223 = por %p221, %p222
      %p224 = scmp.ne.s32.totalorder %s212, %s213
      %p225 = scmp.eq.s32.totalorder %s39, 1
      %p226 = por %p224, %p225
      %p228 = scmp.ne.s32.totalorder %s213, %s227
      %p229 = scmp.eq.s32.totalorder %s39, 0
      %p230 = por %p228, %p229
      %s232 = sadd.s32 %s231, 1
      %p235 = scmp.eq.s32.totalorder %s33, 1
      %p236 = scmp.ne.s32.totalorder %s231, %s233
      %p237 = scmp.eq.s32.totalorder %s33, 0
      %p238 = por %p236, %p237
      %p239 = scmp.ne.s32.totalorder %s231, %s233
      %p240 = scmp.eq.s32.totalorder %s38, 1
      %p241 = por %p239, %p240
      %p242 = scmp.ne.s32.totalorder %s233, %s234
      %p243 = scmp.eq.s32.totalorder %s38, 0
      %p244 = por %p242, %p243
      %p245 = scmp.ne.s32.totalorder %s233, %s234
      %p246 = scmp.eq.s32.totalorder %s39, 1
      %p247 = por %p245, %p246
      %p249 = scmp.ne.s32.totalorder %s234, %s248
      %p250 = scmp.eq.s32.totalorder %s39, 0
      %p251 = por %p249, %p250
      %s253 = sadd.s32 %s252, 1
      %p256 = scmp.eq.s32.totalorder %s33, 1
      %p257 = scmp.ne.s32.totalorder %s252, %s254
      %p258 = scmp.eq.s32.totalorder %s33, 0
      %p259 = por %p257, %p258
      %p260 = scmp.ne.s32.totalorder %s252, %s254
      %p261 = scmp.eq.s32.totalorder %s38, 1
      %p262 = por %p260, %p261
      %p263 = scmp.ne.s32.totalorder %s254, %s255
      %p264 = scmp.eq.s32.totalorder %s38, 0
      %p265 = por %p263, %p264
      %p266 = scmp.ne.s32.totalorder %s254, %s255
      %p267 = scmp.eq.s32.totalorder %s39, 1
      %p268 = por %p266, %p267
      %p270 = scmp.ne.s32.totalorder %s255, %s269
      %p271 = scmp.eq.s32.totalorder %s39, 0
      %p272 = por %p270, %p271
      %s274 = sadd.s32 %s273, 1
      %p277 = scmp.eq.s32.totalorder %s33, 1
      %p278 = scmp.ne.s32.totalorder %s273, %s275
      %p279 = scmp.eq.s32.totalorder %s33, 0
      %p280 = por %p278, %p279
      %p281 = scmp.ne.s32.totalorder %s273, %s275
      %p282 = scmp.eq.s32.totalorder %s38, 1
      %p283 = por %p281, %p282
      %p284 = scmp.ne.s32.totalorder %s275, %s276
      %p285 = scmp.eq.s32.totalorder %s38, 0
      %p286 = por %p284, %p285
      %p287 = scmp.ne.s32.totalorder %s275, %s276
      %p288 = scmp.eq.s32.totalorder %s39, 1
      %p289 = por %p287, %p288
      %p291 = scmp.ne.s32.totalorder %s276, %s290
      %p292 = scmp.eq.s32.totalorder %s39, 0
      %p293 = por %p291, %p292
      %s294 = ssub.s32 %s40, %s52
      %s295 = ssub.s32 %s41, %s48
      %s296 = sor.u32 %s294, %s295
      %p297 = scmp.eq.s32.totalorder %s296, 0
      %s299 = sadd.s32 %s298, 1
      %s300 = scalar_select %p297, %s298, %s299
      %p303 = pneg %p297
      %p304 = scmp.eq.s32.totalorder %s33, 1
      %p305 = por %p303, %p304
      %p306 = scmp.ne.s32.totalorder %s298, %s301
      %p307 = scmp.eq.s32.totalorder %s33, 0
      %p308 = por %p306, %p307
      %p309 = scmp.ne.s32.totalorder %s298, %s301
      %p310 = scmp.eq.s32.totalorder %s38, 1
      %p311 = por %p309, %p310
      %p312 = scmp.ne.s32.totalorder %s301, %s302
      %p313 = scmp.eq.s32.totalorder %s38, 0
      %p314 = por %p312, %p313
      %p315 = scmp.ne.s32.totalorder %s301, %s302
      %p316 = scmp.eq.s32.totalorder %s39, 1
      %p317 = por %p315, %p316
      %p319 = scmp.ne.s32.totalorder %s302, %s318
      %p320 = scmp.eq.s32.totalorder %s39, 0
      %p321 = por %p319, %p320
      %s322 = ssub.s32 %s40, %s52
      %s323 = ssub.s32 %s41, %s48
      %s324 = sor.u32 %s322, %s323
      %p325 = scmp.eq.s32.totalorder %s324, 0
      %s327 = sadd.s32 %s326, 1
      %s328 = scalar_select %p325, %s326, %s327
      %p331 = pneg %p325
      %p332 = scmp.eq.s32.totalorder %s33, 1
      %p333 = por %p331, %p332
      %p334 = scmp.ne.s32.totalorder %s326, %s329
      %p335 = scmp.eq.s32.totalorder %s33, 0
      %p336 = por %p334, %p335
      %p337 = scmp.ne.s32.totalorder %s326, %s329
      %p338 = scmp.eq.s32.totalorder %s38, 1
      %p339 = por %p337, %p338
      %p340 = scmp.ne.s32.totalorder %s329, %s330
      %p341 = scmp.eq.s32.totalorder %s38, 0
      %p342 = por %p340, %p341
      %p343 = scmp.ne.s32.totalorder %s329, %s330
      %p344 = scmp.eq.s32.totalorder %s39, 1
      %p345 = por %p343, %p344
      %p347 = scmp.ne.s32.totalorder %s330, %s346
      %p348 = scmp.eq.s32.totalorder %s39, 0
      %p349 = por %p347, %p348
      %p350 = scmp.le.s32.totalorder 1, %s33
      %p351 = scmp.lt.s32.totalorder %s33, 3
      %p352 = pnand %p350, %p351
      %p353 = pneg %p352
      // Predicated region
      $region9: #{tpu_custom_call.1} parent=5 // pred_check
        _
      $region10: #{tpu_custom_call.1} parent=5 // pred_check_branch
        %355 = sbr.rel (%p352) target = $region12
      $region11: #{tpu_custom_call.1} parent=5 // pred_region
        %s356 = ssub.s32 %s33, 1
        // Predicated region
        $region13: #{tpu_custom_call.1} parent=11 // pred_check
          %p357 = pneg %p202
        $region14: #{tpu_custom_call.1} parent=11 // pred_check_branch
          %359 = sbr.rel (%p357) target = $region16
        $region15: #{tpu_custom_call.1} parent=11 // pred_region
          _
        $region16: #{tpu_custom_call.1} parent=11 // pred_fallthru
          _
        // Predicated region
        $region17: #{tpu_custom_call.1} parent=11 // pred_check
          %p360 = pneg %p223
        $region18: #{tpu_custom_call.1} parent=11 // pred_check_branch
          %362 = sbr.rel (%p360) target = $region20
        $region19: #{tpu_custom_call.1} parent=11 // pred_region
          _
        $region20: #{tpu_custom_call.1} parent=11 // pred_fallthru
          _
        // Predicated region
        $region21: #{tpu_custom_call.1} parent=11 // pred_check
          %p363 = pneg %p244
        $region22: #{tpu_custom_call.1} parent=11 // pred_check_branch
          %365 = sbr.rel (%p363) target = $region24
        $region23: #{tpu_custom_call.1} parent=11 // pred_region
          _
        $region24: #{tpu_custom_call.1} parent=11 // pred_fallthru
          _
        // Predicated region
        $region25: #{tpu_custom_call.1} parent=11 // pred_check
          %p366 = pneg %p265
        $region26: #{tpu_custom_call.1} parent=11 // pred_check_branch
          %368 = sbr.rel (%p366) target = $region28
        $region27: #{tpu_custom_call.1} parent=11 // pred_region
          %s370 = ssub.s32 512, 512
          %371 = vsyncadd [#allocation10], %s370
          %s372 = sshll.u32 [#allocation11], 4
          %s373 = int_to_ptr.vmem [resolvable:$true] %s372
          %378 = dma.hbm_to_vmem [thread:$0]  %s8, 512, %s373, [#allocation10], 128, 128, 8
        $region28: #{tpu_custom_call.1} parent=11 // pred_fallthru
          _
        // Predicated region
        $region29: #{tpu_custom_call.1} parent=11 // pred_check
          %p379 = pneg %p286
        $region30: #{tpu_custom_call.1} parent=11 // pred_check_branch
          %381 = sbr.rel (%p379) target = $region32
        $region31: #{tpu_custom_call.1} parent=11 // pred_region
          _
        $region32: #{tpu_custom_call.1} parent=11 // pred_fallthru
          _
      $region12: #{tpu_custom_call.1} parent=5 // pred_fallthru
        _
      %p382 = scmp.lt.s32.totalorder %s33, 2
      // Predicated region
      $region33: #{tpu_custom_call.1} parent=5 // pred_check
        %p383 = pneg %p382
      $region34: #{tpu_custom_call.1} parent=5 // pred_check_branch
        %385 = sbr.rel (%p383) target = $region36
      $region35: #{tpu_custom_call.1} parent=5 // pred_region
        // Predicated region
        $region37: #{tpu_custom_call.1} parent=35 // pred_check
          %p386 = pneg %p67
        $region38: #{tpu_custom_call.1} parent=35 // pred_check_branch
          %388 = sbr.rel (%p386) target = $region40
        $region39: #{tpu_custom_call.1} parent=35 // pred_region
          %s389 = sand.u32 %s57, 1
          %s390 = scalar_lea.sflag [#allocation4], %s389
          %s391 = sand.u32 %s57, 1
          %s392 = smul.addr %s391, 8
          %s393 = scalar_lea.vmem [#allocation3], %s392
          %s395 = ssub.s32 128, 128
          %396 = vsyncadd %s390, %s395
          %s397 = sadd.s32 %s41, %s40
          %s398 = smul.addr %s397, 128
          %s399 = scalar_lea.hbm %s0, %s398
          %s401 = sshll.u32 %s393, 4
          %s402 = int_to_ptr.vmem [resolvable:$true] %s401
          %404 = dma.hbm_to_vmem [thread:$0]  %s399, 128, %s402, %s390
        $region40: #{tpu_custom_call.1} parent=35 // pred_fallthru
          _
        // Predicated region
        $region41: #{tpu_custom_call.1} parent=35 // pred_check
          %p405 = pneg %p93
        $region42: #{tpu_custom_call.1} parent=35 // pred_check_branch
          %407 = sbr.rel (%p405) target = $region44
        $region43: #{tpu_custom_call.1} parent=35 // pred_region
          %s408 = sand.u32 %s33, 1
          %s409 = scalar_lea.sflag [#allocation7], %s408
          %s410 = sand.u32 %s83, 1
          %s411 = smul.addr %s410, 8
          %s412 = scalar_lea.vmem [#allocation6], %s411
          %s414 = ssub.s32 128, 128
          %415 = vsyncadd %s409, %s414
          %s416 = smul.addr %s40, 128
          %s417 = scalar_lea.hbm %s1, %s416
          %s419 = sshll.u32 %s412, 4
          %s420 = int_to_ptr.vmem [resolvable:$true] %s419
          %422 = dma.hbm_to_vmem [thread:$0]  %s417, 128, %s420, %s409
        $region44: #{tpu_custom_call.1} parent=35 // pred_fallthru
          _
        // Predicated region
        $region45: #{tpu_custom_call.1} parent=35 // pred_check
          %p423 = pneg %p121
        $region46: #{tpu_custom_call.1} parent=35 // pred_check_branch
          %425 = sbr.rel (%p423) target = $region48
        $region47: #{tpu_custom_call.1} parent=35 // pred_region
          %s426 = sand.u32 %s33, 1
          %s427 = scalar_lea.sflag [#allocation7], %s426
          %s428 = sand.u32 %s111, 1
          %s429 = smul.addr %s428, 64
          %s430 = scalar_lea.vmem [#allocation8], %s429
          %s431 = smul.u32 8, %s41
          %s433 = ssub.s32 1024, 1024
          %434 = vsyncadd %s427, %s433
          %s435 = smul.addr %s40, 8
          %s436 = sadd.s32 %s431, %s435
          %s437 = smul.addr %s436, 128
          %s438 = scalar_lea.hbm %s2, %s437
          %s439 = sshll.u32 %s430, 4
          %s440 = int_to_ptr.vmem [resolvable:$true] %s439
          %445 = dma.hbm_to_vmem [thread:$0]  %s438, 1024, %s440, %s427, 128, 128, 8
        $region48: #{tpu_custom_call.1} parent=35 // pred_fallthru
          _
        // Predicated region
        $region49: #{tpu_custom_call.1} parent=35 // pred_check
          %p446 = pneg %p149
        $region50: #{tpu_custom_call.1} parent=35 // pred_check_branch
          %448 = sbr.rel (%p446) target = $region52
        $region51: #{tpu_custom_call.1} parent=35 // pred_region
          %s449 = sand.u32 %s33, 1
          %s450 = scalar_lea.sflag [#allocation10], %s449
          %s451 = sand.u32 %s139, 1
          %s452 = smul.addr %s451, 8
          %s453 = scalar_lea.vmem [#allocation9], %s452
          %s455 = ssub.s32 128, 128
          %456 = vsyncadd %s450, %s455
          %s457 = sadd.s32 %s41, %s40
          %s458 = smul.addr %s457, 128
          %s459 = scalar_lea.hbm %s3, %s458
          %s461 = sshll.u32 %s453, 4
          %s462 = int_to_ptr.vmem [resolvable:$true] %s461
          %464 = dma.hbm_to_vmem [thread:$0]  %s459, 128, %s462, %s450
        $region52: #{tpu_custom_call.1} parent=35 // pred_fallthru
          _
        // Predicated region
        $region53: #{tpu_custom_call.1} parent=35 // pred_check
          %p465 = pneg %p175
        $region54: #{tpu_custom_call.1} parent=35 // pred_check_branch
          %467 = sbr.rel (%p465) target = $region56
        $region55: #{tpu_custom_call.1} parent=35 // pred_region
          %p468 = scmp.lt.s32.totalorder %s40, 1
          %s469 = scalar_select %p468, %s40, 1
          %s470 = scalar_lea.vmem %s4, %s469
        $region56: #{tpu_custom_call.1} parent=35 // pred_fallthru
          _
      $region36: #{tpu_custom_call.1} parent=5 // pred_fallthru
        _
      %p471 = scmp.le.s32.totalorder 1, %s33
      %p472 = scmp.lt.s32.totalorder %s33, 3
      %p473 = pnand %p471, %p472
      %p474 = pneg %p473
      // Predicated region
      $region57: #{tpu_custom_call.1} parent=5 // pred_check
        _
      $region58: #{tpu_custom_call.1} parent=5 // pred_check_branch
        %476 = sbr.rel (%p473) target = $region60
      $region59: #{tpu_custom_call.1} parent=5 // pred_region
        %s477 = ssub.s32 %s33, 1
        %s478 = sand.u32 %s60, 1
        %s479 = scalar_lea.sflag [#allocation4], %s478
        %s480 = sand.u32 %s60, 1
        %s481 = smul.addr %s480, 8
        %s482 = scalar_lea.vmem [#allocation3], %s481
        // Predicated region
        $region61: #{tpu_custom_call.1} parent=59 // pred_check
          %p483 = pneg %p73
        $region62: #{tpu_custom_call.1} parent=59 // pred_check_branch
          %485 = sbr.rel (%p483) target = $region64
        $region63: #{tpu_custom_call.1} parent=59 // pred_region
          %486 = dma.done %s479, 128
        $region64: #{tpu_custom_call.1} parent=59 // pred_fallthru
          _
        %s487 = sand.u32 %s38, 1
        %s488 = scalar_lea.sflag [#allocation7], %s487
        %s489 = sand.u32 %s86, 1
        %s490 = smul.addr %s489, 8
        %s491 = scalar_lea.vmem [#allocation6], %s490
        // Predicated region
        $region65: #{tpu_custom_call.1} parent=59 // pred_check
          %p492 = pneg %p99
        $region66: #{tpu_custom_call.1} parent=59 // pred_check_branch
          %494 = sbr.rel (%p492) target = $region68
        $region67: #{tpu_custom_call.1} parent=59 // pred_region
          %495 = dma.done %s488, 128
        $region68: #{tpu_custom_call.1} parent=59 // pred_fallthru
          _
        %s496 = sand.u32 %s38, 1
        %s497 = scalar_lea.sflag [#allocation7], %s496
        %s498 = sand.u32 %s114, 1
        %s499 = smul.addr %s498, 64
        %s500 = scalar_lea.vmem [#allocation8], %s499
        // Predicated region
        $region69: #{tpu_custom_call.1} parent=59 // pred_check
          %p501 = pneg %p127
        $region70: #{tpu_custom_call.1} parent=59 // pred_check_branch
          %503 = sbr.rel (%p501) target = $region72
        $region71: #{tpu_custom_call.1} parent=59 // pred_region
          %504 = dma.done %s497, 1024
        $region72: #{tpu_custom_call.1} parent=59 // pred_fallthru
          _
        %s505 = sand.u32 %s38, 1
        %s506 = scalar_lea.sflag [#allocation10], %s505
        %s507 = sand.u32 %s142, 1
        %s508 = smul.addr %s507, 8
        %s509 = scalar_lea.vmem [#allocation9], %s508
        // Predicated region
        $region73: #{tpu_custom_call.1} parent=59 // pred_check
          %p510 = pneg %p155
        $region74: #{tpu_custom_call.1} parent=59 // pred_check_branch
          %512 = sbr.rel (%p510) target = $region76
        $region75: #{tpu_custom_call.1} parent=59 // pred_region
          %513 = dma.done %s506, 128
        $region76: #{tpu_custom_call.1} parent=59 // pred_fallthru
          _
        // Predicated region
        $region77: #{tpu_custom_call.1} parent=59 // pred_check
          %p514 = pneg %p265
        $region78: #{tpu_custom_call.1} parent=59 // pred_check_branch
          %516 = sbr.rel (%p514) target = $region80
        $region79: #{tpu_custom_call.1} parent=59 // pred_region
          %517 = dma.done [#allocation10], 512
        $region80: #{tpu_custom_call.1} parent=59 // pred_fallthru
          _
        %s518 = sand.u32 %s60, 1
        %s519 = scalar_lea.sflag [#allocation4], %s518
        %s520 = sand.u32 %s60, 1
        %s521 = smul.addr %s520, 8
        %s522 = scalar_lea.vmem [#allocation3], %s521
        %p523 = pneg %p73
        %p524 = pneg %p70
        %s525 = sand.u32 %s38, 1
        %s526 = scalar_lea.sflag [#allocation7], %s525
        %s527 = sand.u32 %s86, 1
        %s528 = smul.addr %s527, 8
        %s529 = scalar_lea.vmem [#allocation6], %s528
        %p530 = pneg %p99
        %p531 = pneg %p96
        %s532 = sand.u32 %s38, 1
        %s533 = scalar_lea.sflag [#allocation7], %s532
        %s534 = sand.u32 %s114, 1
        %s535 = smul.addr %s534, 64
        %s536 = scalar_lea.vmem [#allocation8], %s535
        %p537 = pneg %p127
        %p538 = pneg %p124
        %s539 = sand.u32 %s38, 1
        %s540 = scalar_lea.sflag [#allocation10], %s539
        %s541 = sand.u32 %s142, 1
        %s542 = smul.addr %s541, 8
        %s543 = scalar_lea.vmem [#allocation9], %s542
        %p544 = pneg %p155
        %p545 = pneg %p152
        %p546 = scmp.lt.s32.totalorder %s42, 1
        %s547 = scalar_select %p546, %s42, 1
        %s548 = scalar_lea.vmem %s4, %s547
        %p549 = pneg %p181
        %p550 = pneg %p178
        %p551 = pneg %p202
        %p552 = pneg %p199
        %p553 = pneg %p223
        %p554 = pneg %p220
        %p555 = pneg %p244
        %p556 = pneg %p241
        %p557 = pneg %p265
        %p558 = pneg %p262
        %p559 = pneg %p286
        %p560 = pneg %p283
        %p561 = pneg %p314
        %p562 = pneg %p311
        %s563 = sand.u32 %s301, 1
        %s564 = scalar_lea.sflag [#allocation5], %s563
        %s565 = sand.u32 %s301, 1
        %s566 = smul.addr %s565, 8
        %s567 = scalar_lea.vmem [#allocation12], %s566
        %p568 = pneg %p342
        %p569 = pneg %p339
        %s570 = sand.u32 %s329, 1
        %s571 = scalar_lea.sflag [#allocation14], %s570
        %s572 = sand.u32 %s329, 1
        %s573 = smul.addr %s572, 32
        %s574 = scalar_lea.vmem [#allocation13], %s573
        %s575 = smul.u32 8, %s43
        %p576 = scmp.lt.s32.totalorder %s42, 1
        %s577 = scalar_select %p576, %s42, 1
        %s578 = scalar_lea.vmem %s4, %s577
        %v579 = vld [vmem:[%s500] sm:$0xff]
        %v580 = vld [vmem:[%s500 + $0x8] sm:$0xff]
        %v581 = vld [vmem:[%s500 + $0x10] sm:$0xff]
        %v582 = vld [vmem:[%s500 + $0x18] sm:$0xff]
        %v583 = vld [vmem:[%s500 + $0x20] sm:$0xff]
        %v584 = vld [vmem:[%s500 + $0x28] sm:$0xff]
        %v585 = vld [vmem:[%s500 + $0x30] sm:$0xff]
        %v586 = vld [vmem:[%s500 + $0x38] sm:$0xff]
        %v587 = vld [vmem:[%s5] sm:$0xff]
        %v588 = vld [vmem:[%s5 + $0x8] sm:$0xff]
        %v589 = vld [vmem:[%s5 + $0x10] sm:$0xff]
        %v590 = vld [vmem:[%s5 + $0x18] sm:$0xff]
        %v591 = vld [vmem:[%s6] sm:$0x1]
        %v593 = vlaneseq
        %v594 = vshrl.u32 %v593, 7
        %v595 = vsub.s32 0, %v594
        %v596 = vrot.slane %v591, %v595
        %vm598 = vcmask 261120
        %v600 = vsel %vm598, %v579, 0
        %v603 = vsel %vm598, %v580, 0
        %v606 = vsel %vm598, %v581, 0
        %v609 = vsel %vm598, %v582, 0
        %v612 = vsel %vm598, %v583, 0
        %v615 = vsel %vm598, %v584, 0
        %v618 = vsel %vm598, %v585, 0
        %v621 = vsel %vm598, %v586, 0
        %623 = vmatprep.subr.mxu0 0.0
        %624 = vmatpush1.msra.mxu0 0.0
        %625 = vmatprep.subr.mxu0 0.0
        %626 = vmatpush1.msra.mxu0 0.0
        %627 = vmatprep.subr.mxu0 0.0
        %628 = vmatpush1.msra.mxu0 0.0
        %629 = vmatprep.subr.mxu0 0.0
        %630 = vmatpush1.msra.mxu0 0.0
        %631 = vmatprep.subr.mxu0 0.0
        %632 = vmatpush1.msra.mxu0 0.0
        %633 = vmatprep.subr.mxu0 0.0
        %634 = vmatpush1.msra.mxu0 0.0
        %635 = vmatprep.subr.mxu0 0.0
        %636 = vmatpush1.msra.mxu0 0.0
        %637 = vmatprep.subr.mxu0 0.0
        %638 = vmatpush1.msra.mxu0 0.0
        %639 = vmatprep.subr.mxu0 0.0
        %640 = vmatpush1.msra.mxu0 0.0
        %641 = vmatprep.subr.mxu0 0.0
        %642 = vmatpush1.msra.mxu0 0.0
        %643 = vmatprep.subr.mxu0 0.0
        %644 = vmatpush1.msra.mxu0 0.0
        %645 = vmatprep.subr.mxu0 0.0
        %646 = vmatpush1.msra.mxu0 0.0
        %647 = vmatprep.subr.mxu0 0.0
        %648 = vmatpush1.msra.mxu0 %v590
        %649 = vmatprep.subr.mxu0 0.0
        %650 = vmatpush1.msra.mxu0 %v589
        %651 = vmatprep.subr.mxu0 0.0
        %652 = vmatpush1.msra.mxu0 %v588
        %653 = vmatprep.subr.mxu0 0.0
        %654 = vmatpush1.msra.mxu0 %v587
        %655 = vmatprep.subr.mxu0 0.0
        %656 = vmatpush2.msra.mxu0 0.0
        %657 = vmatprep.subr.mxu0 0.0
        %658 = vmatpush2.msra.mxu0 0.0
        %659 = vmatprep.subr.mxu0 0.0
        %660 = vmatpush2.msra.mxu0 0.0
        %661 = vmatprep.subr.mxu0 0.0
        %662 = vmatpush2.msra.mxu0 0.0
        %663 = vmatprep.subr.mxu0 0.0
        %664 = vmatpush2.msra.mxu0 0.0
        %665 = vmatprep.subr.mxu0 0.0
        %666 = vmatpush2.msra.mxu0 0.0
        %667 = vmatprep.subr.mxu0 0.0
        %668 = vmatpush2.msra.mxu0 0.0
        %669 = vmatprep.subr.mxu0 0.0
        %670 = vmatpush2.msra.mxu0 0.0
        %671 = vmatprep.subr.mxu0 0.0
        %672 = vmatpush2.msra.mxu0 0.0
        %673 = vmatprep.subr.mxu0 0.0
        %674 = vmatpush2.msra.mxu0 0.0
        %675 = vmatprep.subr.mxu0 0.0
        %676 = vmatpush2.msra.mxu0 0.0
        %677 = vmatprep.subr.mxu0 0.0
        %678 = vmatpush2.msra.mxu0 0.0
        %679 = vmatprep.subr.mxu0 0.0
        %680 = vmatpush2.msra.mxu0 0.0
        %681 = vmatprep.subr.mxu0 0.0
        %682 = vmatpush2.msra.mxu0 0.0
        %683 = vmatprep.subr.mxu0 0.0
        %684 = vmatpush2.msra.mxu0 0.0
        %685 = vmatprep.subr.mxu0 0.0
        %686 = vmatpush2.msra.mxu0 0.0
        %687 = vmatprep.mubr.f32.mxu0 0.0
        %688 = vmatmul.mubr.f32.gmra.mxu0 %v600
        %v689 = vpop.f32.mrf.mxu0
        %v690 = vadd.f32 %v596, %v689
        %v691 = vpop.f32.mrf.mxu0
        %692 = vmatprep.mubr.f32.mxu0 0.0
        %693 = vmatmul.mubr.f32.gmra.mxu0 %v603
        %v694 = vpop.f32.mrf.mxu0
        %v695 = vadd.f32 %v596, %v694
        %v696 = vpop.f32.mrf.mxu0
        %697 = vmatprep.mubr.f32.mxu0 0.0
        %698 = vmatmul.mubr.f32.gmra.mxu0 %v606
        %v699 = vpop.f32.mrf.mxu0
        %v700 = vadd.f32 %v596, %v699
        %v701 = vpop.f32.mrf.mxu0
        %702 = vmatprep.mubr.f32.mxu0 0.0
        %703 = vmatmul.mubr.f32.gmra.mxu0 %v609
        %v704 = vpop.f32.mrf.mxu0
        %v705 = vadd.f32 %v596, %v704
        %v706 = vpop.f32.mrf.mxu0
        %707 = vmatprep.mubr.f32.mxu0 0.0
        %708 = vmatmul.mubr.f32.gmra.mxu0 %v612
        %v709 = vpop.f32.mrf.mxu0
        %v710 = vadd.f32 %v596, %v709
        %v711 = vpop.f32.mrf.mxu0
        %712 = vmatprep.mubr.f32.mxu0 0.0
        %713 = vmatmul.mubr.f32.gmra.mxu0 %v615
        %v714 = vpop.f32.mrf.mxu0
        %v715 = vadd.f32 %v596, %v714
        %v716 = vpop.f32.mrf.mxu0
        %717 = vmatprep.mubr.f32.mxu0 0.0
        %718 = vmatmul.mubr.f32.gmra.mxu0 %v618
        %v719 = vpop.f32.mrf.mxu0
        %v720 = vadd.f32 %v596, %v719
        %v721 = vpop.f32.mrf.mxu0
        %722 = vmatprep.mubr.f32.mxu0 0.0
        %723 = vmatmul.mubr.f32.gmra.mxu0 %v621
        %v724 = vpop.f32.mrf.mxu0
        %v725 = vadd.f32 %v596, %v724
        %v726 = vpop.f32.mrf.mxu0
        %727 = vdwg.mxu0
        %v728 = vld [vmem:[%s482] sm:$0xff]
        %v729 = vld [vmem:[%s491] sm:$0xff]
        %v730 = vld [vmem:[%s509] sm:$0xff]
        %v731 = vld [vmem:[%s578] sm:$0x1]
        %v733 = vcombine.high %v728, %v728
        %v735 = vunpack.c.l.s4 1966171168
        %v736 = vunpack.c.0.s8 %v735
        %v737 = vlaneseq
        %v738 = vshrl.u32 %v737, 7
        %v739 = vsub.s32 %v736, %v738
        %v740 = vrot.slane %v728, %v739
        %v742 = vunpack.c.l.s4 1966171168
        %v743 = vunpack.c.0.s8 %v742
        %v744 = vlaneseq
        %v745 = vshrl.u32 %v744, 7
        %v746 = vsub.s32 %v743, %v745
        %v747 = vrot.slane %v733, %v746
        %v748 = vcombine.high %v740, %v740
        %v749 = vcombine.high %v747, %v747
        %v751 = vunpack.c.l.s4 1966171168
        %v752 = vunpack.c.0.s8 %v751
        %v753 = vlaneseq
        %v754 = vshrl.u32 %v753, 7
        %v755 = vsub.s32 %v752, %v754
        %v756 = vrot.slane %v740, %v755
        %v758 = vunpack.c.l.s4 1966171168
        %v759 = vunpack.c.0.s8 %v758
        %v760 = vlaneseq
        %v761 = vshrl.u32 %v760, 7
        %v762 = vsub.s32 %v759, %v761
        %v763 = vrot.slane %v747, %v762
        %v765 = vunpack.c.l.s4 1966171168
        %v766 = vunpack.c.0.s8 %v765
        %v767 = vlaneseq
        %v768 = vshrl.u32 %v767, 7
        %v769 = vsub.s32 %v766, %v768
        %v770 = vrot.slane %v748, %v769
        %v772 = vunpack.c.l.s4 1966171168
        %v773 = vunpack.c.0.s8 %v772
        %v774 = vlaneseq
        %v775 = vshrl.u32 %v774, 7
        %v776 = vsub.s32 %v773, %v775
        %v777 = vrot.slane %v749, %v776
        %v778 = vcombine.high %v756, %v756
        %v779 = vcombine.high %v763, %v763
        %v780 = vcombine.high %v770, %v770
        %v781 = vcombine.high %v777, %v777
        %v782 = vlaneseq
        %v783 = vshrl.u32 %v782, 7
        %v784 = vsub.s32 0, %v783
        %v785 = vrot.slane %v756, %v784
        %v786 = vlaneseq
        %v787 = vshrl.u32 %v786, 7
        %v788 = vsub.s32 0, %v787
        %v789 = vrot.slane %v770, %v788
        %v790 = vlaneseq
        %v791 = vshrl.u32 %v790, 7
        %v792 = vsub.s32 0, %v791
        %v793 = vrot.slane %v778, %v792
        %v794 = vlaneseq
        %v795 = vshrl.u32 %v794, 7
        %v796 = vsub.s32 0, %v795
        %v797 = vrot.slane %v780, %v796
        %v798 = vlaneseq
        %v799 = vshrl.u32 %v798, 7
        %v800 = vsub.s32 0, %v799
        %v801 = vrot.slane %v763, %v800
        %v802 = vlaneseq
        %v803 = vshrl.u32 %v802, 7
        %v804 = vsub.s32 0, %v803
        %v805 = vrot.slane %v777, %v804
        %v806 = vlaneseq
        %v807 = vshrl.u32 %v806, 7
        %v808 = vsub.s32 0, %v807
        %v809 = vrot.slane %v779, %v808
        %v810 = vlaneseq
        %v811 = vshrl.u32 %v810, 7
        %v812 = vsub.s32 0, %v811
        %v813 = vrot.slane %v781, %v812
        %v822 = vmul.f32 %v785, %v729
        %v823 = vmul.f32 %v789, %v729
        %v824 = vmul.f32 %v793, %v729
        %v825 = vmul.f32 %v797, %v729
        %v826 = vmul.f32 %v801, %v729
        %v827 = vmul.f32 %v805, %v729
        %v828 = vmul.f32 %v809, %v729
        %v829 = vmul.f32 %v813, %v729
        %v830 = vmul.f32 %v822, %v690
        %v831 = vmul.f32 %v823, %v695
        %v832 = vmul.f32 %v824, %v700
        %v833 = vmul.f32 %v825, %v705
        %v834 = vmul.f32 %v826, %v710
        %v835 = vmul.f32 %v827, %v715
        %v836 = vmul.f32 %v828, %v720
        %v837 = vmul.f32 %v829, %v725
        %vm838 = vcmask 64512
        %v839 = vsel %vm838, %v830, 0.0
        %840 = vadd.xlane.f32.xlu0 %v839
        %v841 = vpop.xlane.xlu0 %840
        %v842 = vsel %vm838, %v831, 0.0
        %843 = vadd.xlane.f32.xlu0 %v842
        %v844 = vpop.xlane.xlu0 %843
        %v845 = vsel %vm838, %v832, 0.0
        %846 = vadd.xlane.f32.xlu0 %v845
        %v847 = vpop.xlane.xlu0 %846
        %v848 = vsel %vm838, %v833, 0.0
        %849 = vadd.xlane.f32.xlu0 %v848
        %v850 = vpop.xlane.xlu0 %849
        %v851 = vsel %vm838, %v834, 0.0
        %852 = vadd.xlane.f32.xlu0 %v851
        %v853 = vpop.xlane.xlu0 %852
        %v854 = vsel %vm838, %v835, 0.0
        %855 = vadd.xlane.f32.xlu0 %v854
        %v856 = vpop.xlane.xlu0 %855
        %v857 = vsel %vm838, %v836, 0.0
        %858 = vadd.xlane.f32.xlu0 %v857
        %v859 = vpop.xlane.xlu0 %858
        %v860 = vsel %vm838, %v837, 0.0
        %861 = vadd.xlane.f32.xlu0 %v860
        %v862 = vpop.xlane.xlu0 %861
        %v871 = vlaneseq
        %v872 = vand.u32 %v871, 127
        %v873 = vlaneseq
        %v874 = vshrl.u32 %v873, 7
        %v875 = vsub.s32 %v872, %v874
        %v876 = vrot.slane %v841, %v875
        %v877 = vlaneseq
        %v878 = vshrl.u32 %v877, 7
        %v879 = vsub.s32 %v872, %v878
        %v880 = vrot.slane %v844, %v879
        %v881 = vlaneseq
        %v882 = vshrl.u32 %v881, 7
        %v883 = vsub.s32 %v872, %v882
        %v884 = vrot.slane %v847, %v883
        %v885 = vlaneseq
        %v886 = vshrl.u32 %v885, 7
        %v887 = vsub.s32 %v872, %v886
        %v888 = vrot.slane %v850, %v887
        %v889 = vlaneseq
        %v890 = vshrl.u32 %v889, 7
        %v891 = vsub.s32 %v872, %v890
        %v892 = vrot.slane %v853, %v891
        %v893 = vlaneseq
        %v894 = vshrl.u32 %v893, 7
        %v895 = vsub.s32 %v872, %v894
        %v896 = vrot.slane %v856, %v895
        %v897 = vlaneseq
        %v898 = vshrl.u32 %v897, 7
        %v899 = vsub.s32 %v872, %v898
        %v900 = vrot.slane %v859, %v899
        %v901 = vlaneseq
        %v902 = vshrl.u32 %v901, 7
        %v903 = vsub.s32 %v872, %v902
        %v904 = vrot.slane %v862, %v903
        %vm905 = vcmask 1041409
        %v906 = vsel %vm905, %v880, %v876
        %vm907 = vcmask 1042434
        %v908 = vsel %vm907, %v884, %v906
        %vm909 = vcmask 1043459
        %v910 = vsel %vm909, %v888, %v908
        %vm911 = vcmask 1044484
        %v912 = vsel %vm911, %v892, %v910
        %vm913 = vcmask 1045509
        %v914 = vsel %vm913, %v896, %v912
        %vm915 = vcmask 1046534
        %v916 = vsel %vm915, %v900, %v914
        %vm917 = vcmask 1047559
        %v918 = vsel %vm917, %v904, %v916
        %v920 = vadd.f32 %v730, %v918
        %v921 = vsel %vm838, %v920, -inf
        %922 = vmax.xlane.f32.xlu0 %v921
        %v923 = vpop.xlane.xlu0 %922
        %v924 = vsub.f32 %v920, %v923
        %v925 = vmul.f32 %v924, 1.442695
        %v926 = vpow.pop %v925
        %v927 = vsel %vm838, %v926, 0.0
        %928 = vadd.xlane.f32.xlu0 %v927
        %v929 = vpop.xlane.xlu0 %928
        %v930 = vrcp.pop %v929
        %v932 = vlaneseq
        %v933 = vshrl.u32 %v932, 7
        %v934 = vsub.s32 0, %v933
        %v935 = vrot.slane %v731, %v934
        %v937 = vmul.f32 %v930, %v935
        %v938 = vmul.f32 %v926, %v937
        %939 = vst.msk [vmem:[%s574] sm:$0xff] %vm838, %v938
        %v941 = vsel %vm838, %v938, 0
        %943 = vmatprep.subr.mxu0 0.0
        %944 = vmatpush1.msra.mxu0 0.0
        %945 = vmatprep.subr.mxu0 0.0
        %946 = vmatpush1.msra.mxu0 0.0
        %947 = vmatprep.subr.mxu0 0.0
        %948 = vmatpush1.msra.mxu0 0.0
        %949 = vmatprep.subr.mxu0 0.0
        %950 = vmatpush1.msra.mxu0 0.0
        %951 = vmatprep.subr.mxu0 0.0
        %952 = vmatpush1.msra.mxu0 0.0
        %953 = vmatprep.subr.mxu0 0.0
        %954 = vmatpush1.msra.mxu0 0.0
        %955 = vmatprep.subr.mxu0 0.0
        %956 = vmatpush1.msra.mxu0 0.0
        %957 = vmatprep.subr.mxu0 0.0
        %958 = vmatpush1.msra.mxu0 0.0
        %959 = vmatprep.subr.mxu0 0.0
        %960 = vmatpush1.msra.mxu0 0.0
        %961 = vmatprep.subr.mxu0 0.0
        %962 = vmatpush1.msra.mxu0 0.0
        %963 = vmatprep.subr.mxu0 0.0
        %964 = vmatpush1.msra.mxu0 0.0
        %965 = vmatprep.subr.mxu0 0.0
        %966 = vmatpush1.msra.mxu0 0.0
        %967 = vmatprep.subr.mxu0 0.0
        %968 = vmatpush1.msra.mxu0 0.0
        %969 = vmatprep.subr.mxu0 0.0
        %970 = vmatpush1.msra.mxu0 0.0
        %971 = vmatprep.subr.mxu0 0.0
        %972 = vmatpush1.msra.mxu0 0.0
        %973 = vmatprep.subr.mxu0 0.0
        %974 = vmatpush1.msra.mxu0 %v729
        %975 = vmatprep.subr.mxu0 0.0
        %976 = vmatpush2.msra.mxu0 0.0
        %977 = vmatprep.subr.mxu0 0.0
        %978 = vmatpush2.msra.mxu0 0.0
        %979 = vmatprep.subr.mxu0 0.0
        %980 = vmatpush2.msra.mxu0 0.0
        %981 = vmatprep.subr.mxu0 0.0
        %982 = vmatpush2.msra.mxu0 0.0
        %983 = vmatprep.subr.mxu0 0.0
        %984 = vmatpush2.msra.mxu0 0.0
        %985 = vmatprep.subr.mxu0 0.0
        %986 = vmatpush2.msra.mxu0 0.0
        %987 = vmatprep.subr.mxu0 0.0
        %988 = vmatpush2.msra.mxu0 0.0
        %989 = vmatprep.subr.mxu0 0.0
        %990 = vmatpush2.msra.mxu0 0.0
        %991 = vmatprep.subr.mxu0 0.0
        %992 = vmatpush2.msra.mxu0 0.0
        %993 = vmatprep.subr.mxu0 0.0
        %994 = vmatpush2.msra.mxu0 0.0
        %995 = vmatprep.subr.mxu0 0.0
        %996 = vmatpush2.msra.mxu0 0.0
        %997 = vmatprep.subr.mxu0 0.0
        %998 = vmatpush2.msra.mxu0 0.0
        %999 = vmatprep.subr.mxu0 0.0
        %1000 = vmatpush2.msra.mxu0 0.0
        %1001 = vmatprep.subr.mxu0 0.0
        %1002 = vmatpush2.msra.mxu0 0.0
        %1003 = vmatprep.subr.mxu0 0.0
        %1004 = vmatpush2.msra.mxu0 0.0
        %1005 = vmatprep.subr.mxu0 0.0
        %1006 = vmatpush2.msra.mxu0 0.0
        %1007 = vmatprep.mubr.f32.mxu0 0.0
        %1008 = vmatmul.mubr.f32.gmra.mxu0 %v941
        %v1009 = vpop.f32.mrf.mxu0
        %v1010 = vadd.f32 0.0, %v1009
        %v1011 = vpop.f32.mrf.mxu0
        %1012 = vdwg.mxu0
        %1013 = vst.msk [vmem:[#allocation2] sm:$0xff] %vm838, %v1010
        %1022 = vrot.lane.b32.xlu0 %v830, 120
        %v1023 = vpop.permute.xlu0 %1022
        %1024 = vrot.lane.b32.xlu0 %v831, 120
        %v1025 = vpop.permute.xlu0 %1024
        %1026 = vrot.lane.b32.xlu0 %v832, 120
        %v1027 = vpop.permute.xlu0 %1026
        %1028 = vrot.lane.b32.xlu0 %v833, 120
        %v1029 = vpop.permute.xlu0 %1028
        %1030 = vrot.lane.b32.xlu0 %v834, 120
        %v1031 = vpop.permute.xlu0 %1030
        %1032 = vrot.lane.b32.xlu0 %v835, 120
        %v1033 = vpop.permute.xlu0 %1032
        %1034 = vrot.lane.b32.xlu0 %v836, 120
        %v1035 = vpop.permute.xlu0 %1034
        %1036 = vrot.lane.b32.xlu0 %v837, 120
        %v1037 = vpop.permute.xlu0 %1036
        %v1046 = vsel %vm838, %v1023, 0.0
        %1047 = vadd.xlane.f32.xlu0 %v1046
        %v1048 = vpop.xlane.xlu0 %1047
        %v1049 = vsel %vm838, %v1025, 0.0
        %1050 = vadd.xlane.f32.xlu0 %v1049
        %v1051 = vpop.xlane.xlu0 %1050
        %v1052 = vsel %vm838, %v1027, 0.0
        %1053 = vadd.xlane.f32.xlu0 %v1052
        %v1054 = vpop.xlane.xlu0 %1053
        %v1055 = vsel %vm838, %v1029, 0.0
        %1056 = vadd.xlane.f32.xlu0 %v1055
        %v1057 = vpop.xlane.xlu0 %1056
        %v1058 = vsel %vm838, %v1031, 0.0
        %1059 = vadd.xlane.f32.xlu0 %v1058
        %v1060 = vpop.xlane.xlu0 %1059
        %v1061 = vsel %vm838, %v1033, 0.0
        %1062 = vadd.xlane.f32.xlu0 %v1061
        %v1063 = vpop.xlane.xlu0 %1062
        %v1064 = vsel %vm838, %v1035, 0.0
        %1065 = vadd.xlane.f32.xlu0 %v1064
        %v1066 = vpop.xlane.xlu0 %1065
        %v1067 = vsel %vm838, %v1037, 0.0
        %1068 = vadd.xlane.f32.xlu0 %v1067
        %v1069 = vpop.xlane.xlu0 %1068
        %v1078 = vlaneseq
        %v1079 = vshrl.u32 %v1078, 7
        %v1080 = vsub.s32 %v872, %v1079
        %v1081 = vrot.slane %v1048, %v1080
        %v1082 = vlaneseq
        %v1083 = vshrl.u32 %v1082, 7
        %v1084 = vsub.s32 %v872, %v1083
        %v1085 = vrot.slane %v1051, %v1084
        %v1086 = vlaneseq
        %v1087 = vshrl.u32 %v1086, 7
        %v1088 = vsub.s32 %v872, %v1087
        %v1089 = vrot.slane %v1054, %v1088
        %v1090 = vlaneseq
        %v1091 = vshrl.u32 %v1090, 7
        %v1092 = vsub.s32 %v872, %v1091
        %v1093 = vrot.slane %v1057, %v1092
        %v1094 = vlaneseq
        %v1095 = vshrl.u32 %v1094, 7
        %v1096 = vsub.s32 %v872, %v1095
        %v1097 = vrot.slane %v1060, %v1096
        %v1098 = vlaneseq
        %v1099 = vshrl.u32 %v1098, 7
        %v1100 = vsub.s32 %v872, %v1099
        %v1101 = vrot.slane %v1063, %v1100
        %v1102 = vlaneseq
        %v1103 = vshrl.u32 %v1102, 7
        %v1104 = vsub.s32 %v872, %v1103
        %v1105 = vrot.slane %v1066, %v1104
        %v1106 = vlaneseq
        %v1107 = vshrl.u32 %v1106, 7
        %v1108 = vsub.s32 %v872, %v1107
        %v1109 = vrot.slane %v1069, %v1108
        %v1110 = vsel %vm905, %v1085, %v1081
        %v1111 = vsel %vm907, %v1089, %v1110
        %v1112 = vsel %vm909, %v1093, %v1111
        %v1113 = vsel %vm911, %v1097, %v1112
        %v1114 = vsel %vm913, %v1101, %v1113
        %v1115 = vsel %vm915, %v1105, %v1114
        %v1116 = vsel %vm917, %v1109, %v1115
        %v1118 = vadd.f32 %v730, %v1116
        %v1119 = vsel %vm838, %v1118, -inf
        %1120 = vmax.xlane.f32.xlu0 %v1119
        %v1121 = vpop.xlane.xlu0 %1120
        %v1122 = vsub.f32 %v1118, %v1121
        %v1123 = vmul.f32 %v1122, 1.442695
        %v1124 = vpow.pop %v1123
        %v1125 = vsel %vm838, %v1124, 0.0
        %1126 = vadd.xlane.f32.xlu0 %v1125
        %v1127 = vpop.xlane.xlu0 %1126
        %v1128 = vrcp.pop %v1127
        %v1129 = vmul.f32 %v1128, %v935
        %v1130 = vmul.f32 %v1124, %v1129
        %s1131 = scalar_lea.vmem %s574, 8 [#allocation13]
        %1132 = vst.msk [vmem:[%s1131] sm:$0xff] %vm838, %v1130
        %1134 = vrot.lane.b32.xlu0 %v729, 120
        %v1135 = vpop.permute.xlu0 %1134
        %v1138 = vsel %vm838, %v1130, 0
        %1140 = vmatprep.subr.mxu0 0.0
        %1141 = vmatpush1.msra.mxu0 0.0
        %1142 = vmatprep.subr.mxu0 0.0
        %1143 = vmatpush1.msra.mxu0 0.0
        %1144 = vmatprep.subr.mxu0 0.0
        %1145 = vmatpush1.msra.mxu0 0.0
        %1146 = vmatprep.subr.mxu0 0.0
        %1147 = vmatpush1.msra.mxu0 0.0
        %1148 = vmatprep.subr.mxu0 0.0
        %1149 = vmatpush1.msra.mxu0 0.0
        %1150 = vmatprep.subr.mxu0 0.0
        %1151 = vmatpush1.msra.mxu0 0.0
        %1152 = vmatprep.subr.mxu0 0.0
        %1153 = vmatpush1.msra.mxu0 0.0
        %1154 = vmatprep.subr.mxu0 0.0
        %1155 = vmatpush1.msra.mxu0 0.0
        %1156 = vmatprep.subr.mxu0 0.0
        %1157 = vmatpush1.msra.mxu0 0.0
        %1158 = vmatprep.subr.mxu0 0.0
        %1159 = vmatpush1.msra.mxu0 0.0
        %1160 = vmatprep.subr.mxu0 0.0
        %1161 = vmatpush1.msra.mxu0 0.0
        %1162 = vmatprep.subr.mxu0 0.0
        %1163 = vmatpush1.msra.mxu0 0.0
        %1164 = vmatprep.subr.mxu0 0.0
        %1165 = vmatpush1.msra.mxu0 0.0
        %1166 = vmatprep.subr.mxu0 0.0
        %1167 = vmatpush1.msra.mxu0 0.0
        %1168 = vmatprep.subr.mxu0 0.0
        %1169 = vmatpush1.msra.mxu0 0.0
        %1170 = vmatprep.subr.mxu0 0.0
        %1171 = vmatpush1.msra.mxu0 %v1135
        %1172 = vmatprep.subr.mxu0 0.0
        %1173 = vmatpush2.msra.mxu0 0.0
        %1174 = vmatprep.subr.mxu0 0.0
        %1175 = vmatpush2.msra.mxu0 0.0
        %1176 = vmatprep.subr.mxu0 0.0
        %1177 = vmatpush2.msra.mxu0 0.0
        %1178 = vmatprep.subr.mxu0 0.0
        %1179 = vmatpush2.msra.mxu0 0.0
        %1180 = vmatprep.subr.mxu0 0.0
        %1181 = vmatpush2.msra.mxu0 0.0
        %1182 = vmatprep.subr.mxu0 0.0
        %1183 = vmatpush2.msra.mxu0 0.0
        %1184 = vmatprep.subr.mxu0 0.0
        %1185 = vmatpush2.msra.mxu0 0.0
        %1186 = vmatprep.subr.mxu0 0.0
        %1187 = vmatpush2.msra.mxu0 0.0
        %1188 = vmatprep.subr.mxu0 0.0
        %1189 = vmatpush2.msra.mxu0 0.0
        %1190 = vmatprep.subr.mxu0 0.0
        %1191 = vmatpush2.msra.mxu0 0.0
        %1192 = vmatprep.subr.mxu0 0.0
        %1193 = vmatpush2.msra.mxu0 0.0
        %1194 = vmatprep.subr.mxu0 0.0
        %1195 = vmatpush2.msra.mxu0 0.0
        %1196 = vmatprep.subr.mxu0 0.0
        %1197 = vmatpush2.msra.mxu0 0.0
        %1198 = vmatprep.subr.mxu0 0.0
        %1199 = vmatpush2.msra.mxu0 0.0
        %1200 = vmatprep.subr.mxu0 0.0
        %1201 = vmatpush2.msra.mxu0 0.0
        %1202 = vmatprep.subr.mxu0 0.0
        %1203 = vmatpush2.msra.mxu0 0.0
        %1204 = vmatprep.mubr.f32.mxu0 0.0
        %1205 = vmatmul.mubr.f32.gmra.mxu0 %v1138
        %v1206 = vpop.f32.mrf.mxu0
        %v1207 = vadd.f32 0.0, %v1206
        %v1208 = vpop.f32.mrf.mxu0
        %1209 = vdwg.mxu0
        %1211 = vrot.lane.b32.xlu0 %v1207, 8
        %v1212 = vpop.permute.xlu0 %1211
        %vm1214 = vcmask 130112
        %1215 = vst.msk [vmem:[#allocation2] sm:$0xff] %vm1214, %v1212
        %1216 = vrot.lane.b32.xlu0 %v830, 112
        %v1217 = vpop.permute.xlu0 %1216
        %1218 = vrot.lane.b32.xlu0 %v831, 112
        %v1219 = vpop.permute.xlu0 %1218
        %1220 = vrot.lane.b32.xlu0 %v832, 112
        %v1221 = vpop.permute.xlu0 %1220
        %1222 = vrot.lane.b32.xlu0 %v833, 112
        %v1223 = vpop.permute.xlu0 %1222
        %1224 = vrot.lane.b32.xlu0 %v834, 112
        %v1225 = vpop.permute.xlu0 %1224
        %1226 = vrot.lane.b32.xlu0 %v835, 112
        %v1227 = vpop.permute.xlu0 %1226
        %1228 = vrot.lane.b32.xlu0 %v836, 112
        %v1229 = vpop.permute.xlu0 %1228
        %1230 = vrot.lane.b32.xlu0 %v837, 112
        %v1231 = vpop.permute.xlu0 %1230
        %v1240 = vsel %vm838, %v1217, 0.0
        %1241 = vadd.xlane.f32.xlu0 %v1240
        %v1242 = vpop.xlane.xlu0 %1241
        %v1243 = vsel %vm838, %v1219, 0.0
        %1244 = vadd.xlane.f32.xlu0 %v1243
        %v1245 = vpop.xlane.xlu0 %1244
        %v1246 = vsel %vm838, %v1221, 0.0
        %1247 = vadd.xlane.f32.xlu0 %v1246
        %v1248 = vpop.xlane.xlu0 %1247
        %v1249 = vsel %vm838, %v1223, 0.0
        %1250 = vadd.xlane.f32.xlu0 %v1249
        %v1251 = vpop.xlane.xlu0 %1250
        %v1252 = vsel %vm838, %v1225, 0.0
        %1253 = vadd.xlane.f32.xlu0 %v1252
        %v1254 = vpop.xlane.xlu0 %1253
        %v1255 = vsel %vm838, %v1227, 0.0
        %1256 = vadd.xlane.f32.xlu0 %v1255
        %v1257 = vpop.xlane.xlu0 %1256
        %v1258 = vsel %vm838, %v1229, 0.0
        %1259 = vadd.xlane.f32.xlu0 %v1258
        %v1260 = vpop.xlane.xlu0 %1259
        %v1261 = vsel %vm838, %v1231, 0.0
        %1262 = vadd.xlane.f32.xlu0 %v1261
        %v1263 = vpop.xlane.xlu0 %1262
        %v1272 = vlaneseq
        %v1273 = vshrl.u32 %v1272, 7
        %v1274 = vsub.s32 %v872, %v1273
        %v1275 = vrot.slane %v1242, %v1274
        %v1276 = vlaneseq
        %v1277 = vshrl.u32 %v1276, 7
        %v1278 = vsub.s32 %v872, %v1277
        %v1279 = vrot.slane %v1245, %v1278
        %v1280 = vlaneseq
        %v1281 = vshrl.u32 %v1280, 7
        %v1282 = vsub.s32 %v872, %v1281
        %v1283 = vrot.slane %v1248, %v1282
        %v1284 = vlaneseq
        %v1285 = vshrl.u32 %v1284, 7
        %v1286 = vsub.s32 %v872, %v1285
        %v1287 = vrot.slane %v1251, %v1286
        %v1288 = vlaneseq
        %v1289 = vshrl.u32 %v1288, 7
        %v1290 = vsub.s32 %v872, %v1289
        %v1291 = vrot.slane %v1254, %v1290
        %v1292 = vlaneseq
        %v1293 = vshrl.u32 %v1292, 7
        %v1294 = vsub.s32 %v872, %v1293
        %v1295 = vrot.slane %v1257, %v1294
        %v1296 = vlaneseq
        %v1297 = vshrl.u32 %v1296, 7
        %v1298 = vsub.s32 %v872, %v1297
        %v1299 = vrot.slane %v1260, %v1298
        %v1300 = vlaneseq
        %v1301 = vshrl.u32 %v1300, 7
        %v1302 = vsub.s32 %v872, %v1301
        %v1303 = vrot.slane %v1263, %v1302
        %v1304 = vsel %vm905, %v1279, %v1275
        %v1305 = vsel %vm907, %v1283, %v1304
        %v1306 = vsel %vm909, %v1287, %v1305
        %v1307 = vsel %vm911, %v1291, %v1306
        %v1308 = vsel %vm913, %v1295, %v1307
        %v1309 = vsel %vm915, %v1299, %v1308
        %v1310 = vsel %vm917, %v1303, %v1309
        %v1312 = vadd.f32 %v730, %v1310
        %v1313 = vsel %vm838, %v1312, -inf
        %1314 = vmax.xlane.f32.xlu0 %v1313
        %v1315 = vpop.xlane.xlu0 %1314
        %v1316 = vsub.f32 %v1312, %v1315
        %v1317 = vmul.f32 %v1316, 1.442695
        %v1318 = vpow.pop %v1317
        %v1319 = vsel %vm838, %v1318, 0.0
        %1320 = vadd.xlane.f32.xlu0 %v1319
        %v1321 = vpop.xlane.xlu0 %1320
        %v1322 = vrcp.pop %v1321
        %v1323 = vmul.f32 %v1322, %v935
        %v1324 = vmul.f32 %v1318, %v1323
        %s1325 = scalar_lea.vmem %s574, 16 [#allocation13]
        %1326 = vst.msk [vmem:[%s1325] sm:$0xff] %vm838, %v1324
        %1327 = vrot.lane.b32.xlu0 %v729, 112
        %v1328 = vpop.permute.xlu0 %1327
        %v1331 = vsel %vm838, %v1324, 0
        %1333 = vmatprep.subr.mxu0 0.0
        %1334 = vmatpush1.msra.mxu0 0.0
        %1335 = vmatprep.subr.mxu0 0.0
        %1336 = vmatpush1.msra.mxu0 0.0
        %1337 = vmatprep.subr.mxu0 0.0
        %1338 = vmatpush1.msra.mxu0 0.0
        %1339 = vmatprep.subr.mxu0 0.0
        %1340 = vmatpush1.msra.mxu0 0.0
        %1341 = vmatprep.subr.mxu0 0.0
        %1342 = vmatpush1.msra.mxu0 0.0
        %1343 = vmatprep.subr.mxu0 0.0
        %1344 = vmatpush1.msra.mxu0 0.0
        %1345 = vmatprep.subr.mxu0 0.0
        %1346 = vmatpush1.msra.mxu0 0.0
        %1347 = vmatprep.subr.mxu0 0.0
        %1348 = vmatpush1.msra.mxu0 0.0
        %1349 = vmatprep.subr.mxu0 0.0
        %1350 = vmatpush1.msra.mxu0 0.0
        %1351 = vmatprep.subr.mxu0 0.0
        %1352 = vmatpush1.msra.mxu0 0.0
        %1353 = vmatprep.subr.mxu0 0.0
        %1354 = vmatpush1.msra.mxu0 0.0
        %1355 = vmatprep.subr.mxu0 0.0
        %1356 = vmatpush1.msra.mxu0 0.0
        %1357 = vmatprep.subr.mxu0 0.0
        %1358 = vmatpush1.msra.mxu0 0.0
        %1359 = vmatprep.subr.mxu0 0.0
        %1360 = vmatpush1.msra.mxu0 0.0
        %1361 = vmatprep.subr.mxu0 0.0
        %1362 = vmatpush1.msra.mxu0 0.0
        %1363 = vmatprep.subr.mxu0 0.0
        %1364 = vmatpush1.msra.mxu0 %v1328
        %1365 = vmatprep.subr.mxu0 0.0
        %1366 = vmatpush2.msra.mxu0 0.0
        %1367 = vmatprep.subr.mxu0 0.0
        %1368 = vmatpush2.msra.mxu0 0.0
        %1369 = vmatprep.subr.mxu0 0.0
        %1370 = vmatpush2.msra.mxu0 0.0
        %1371 = vmatprep.subr.mxu0 0.0
        %1372 = vmatpush2.msra.mxu0 0.0
        %1373 = vmatprep.subr.mxu0 0.0
        %1374 = vmatpush2.msra.mxu0 0.0
        %1375 = vmatprep.subr.mxu0 0.0
        %1376 = vmatpush2.msra.mxu0 0.0
        %1377 = vmatprep.subr.mxu0 0.0
        %1378 = vmatpush2.msra.mxu0 0.0
        %1379 = vmatprep.subr.mxu0 0.0
        %1380 = vmatpush2.msra.mxu0 0.0
        %1381 = vmatprep.subr.mxu0 0.0
        %1382 = vmatpush2.msra.mxu0 0.0
        %1383 = vmatprep.subr.mxu0 0.0
        %1384 = vmatpush2.msra.mxu0 0.0
        %1385 = vmatprep.subr.mxu0 0.0
        %1386 = vmatpush2.msra.mxu0 0.0
        %1387 = vmatprep.subr.mxu0 0.0
        %1388 = vmatpush2.msra.mxu0 0.0
        %1389 = vmatprep.subr.mxu0 0.0
        %1390 = vmatpush2.msra.mxu0 0.0
        %1391 = vmatprep.subr.mxu0 0.0
        %1392 = vmatpush2.msra.mxu0 0.0
        %1393 = vmatprep.subr.mxu0 0.0
        %1394 = vmatpush2.msra.mxu0 0.0
        %1395 = vmatprep.subr.mxu0 0.0
        %1396 = vmatpush2.msra.mxu0 0.0
        %1397 = vmatprep.mubr.f32.mxu0 0.0
        %1398 = vmatmul.mubr.f32.gmra.mxu0 %v1331
        %v1399 = vpop.f32.mrf.mxu0
        %v1400 = vadd.f32 0.0, %v1399
        %v1401 = vpop.f32.mrf.mxu0
        %1402 = vdwg.mxu0
        %1404 = vrot.lane.b32.xlu0 %v1400, 16
        %v1405 = vpop.permute.xlu0 %1404
        %vm1407 = vcmask 195712
        %1408 = vst.msk [vmem:[#allocation2] sm:$0xff] %vm1407, %v1405
        %1409 = vrot.lane.b32.xlu0 %v830, 104
        %v1410 = vpop.permute.xlu0 %1409
        %1411 = vrot.lane.b32.xlu0 %v831, 104
        %v1412 = vpop.permute.xlu0 %1411
        %1413 = vrot.lane.b32.xlu0 %v832, 104
        %v1414 = vpop.permute.xlu0 %1413
        %1415 = vrot.lane.b32.xlu0 %v833, 104
        %v1416 = vpop.permute.xlu0 %1415
        %1417 = vrot.lane.b32.xlu0 %v834, 104
        %v1418 = vpop.permute.xlu0 %1417
        %1419 = vrot.lane.b32.xlu0 %v835, 104
        %v1420 = vpop.permute.xlu0 %1419
        %1421 = vrot.lane.b32.xlu0 %v836, 104
        %v1422 = vpop.permute.xlu0 %1421
        %1423 = vrot.lane.b32.xlu0 %v837, 104
        %v1424 = vpop.permute.xlu0 %1423
        %v1433 = vsel %vm838, %v1410, 0.0
        %1434 = vadd.xlane.f32.xlu0 %v1433
        %v1435 = vpop.xlane.xlu0 %1434
        %v1436 = vsel %vm838, %v1412, 0.0
        %1437 = vadd.xlane.f32.xlu0 %v1436
        %v1438 = vpop.xlane.xlu0 %1437
        %v1439 = vsel %vm838, %v1414, 0.0
        %1440 = vadd.xlane.f32.xlu0 %v1439
        %v1441 = vpop.xlane.xlu0 %1440
        %v1442 = vsel %vm838, %v1416, 0.0
        %1443 = vadd.xlane.f32.xlu0 %v1442
        %v1444 = vpop.xlane.xlu0 %1443
        %v1445 = vsel %vm838, %v1418, 0.0
        %1446 = vadd.xlane.f32.xlu0 %v1445
        %v1447 = vpop.xlane.xlu0 %1446
        %v1448 = vsel %vm838, %v1420, 0.0
        %1449 = vadd.xlane.f32.xlu0 %v1448
        %v1450 = vpop.xlane.xlu0 %1449
        %v1451 = vsel %vm838, %v1422, 0.0
        %1452 = vadd.xlane.f32.xlu0 %v1451
        %v1453 = vpop.xlane.xlu0 %1452
        %v1454 = vsel %vm838, %v1424, 0.0
        %1455 = vadd.xlane.f32.xlu0 %v1454
        %v1456 = vpop.xlane.xlu0 %1455
        %v1465 = vlaneseq
        %v1466 = vshrl.u32 %v1465, 7
        %v1467 = vsub.s32 %v872, %v1466
        %v1468 = vrot.slane %v1435, %v1467
        %v1469 = vlaneseq
        %v1470 = vshrl.u32 %v1469, 7
        %v1471 = vsub.s32 %v872, %v1470
        %v1472 = vrot.slane %v1438, %v1471
        %v1473 = vlaneseq
        %v1474 = vshrl.u32 %v1473, 7
        %v1475 = vsub.s32 %v872, %v1474
        %v1476 = vrot.slane %v1441, %v1475
        %v1477 = vlaneseq
        %v1478 = vshrl.u32 %v1477, 7
        %v1479 = vsub.s32 %v872, %v1478
        %v1480 = vrot.slane %v1444, %v1479
        %v1481 = vlaneseq
        %v1482 = vshrl.u32 %v1481, 7
        %v1483 = vsub.s32 %v872, %v1482
        %v1484 = vrot.slane %v1447, %v1483
        %v1485 = vlaneseq
        %v1486 = vshrl.u32 %v1485, 7
        %v1487 = vsub.s32 %v872, %v1486
        %v1488 = vrot.slane %v1450, %v1487
        %v1489 = vlaneseq
        %v1490 = vshrl.u32 %v1489, 7
        %v1491 = vsub.s32 %v872, %v1490
        %v1492 = vrot.slane %v1453, %v1491
        %v1493 = vlaneseq
        %v1494 = vshrl.u32 %v1493, 7
        %v1495 = vsub.s32 %v872, %v1494
        %v1496 = vrot.slane %v1456, %v1495
        %v1497 = vsel %vm905, %v1472, %v1468
        %v1498 = vsel %vm907, %v1476, %v1497
        %v1499 = vsel %vm909, %v1480, %v1498
        %v1500 = vsel %vm911, %v1484, %v1499
        %v1501 = vsel %vm913, %v1488, %v1500
        %v1502 = vsel %vm915, %v1492, %v1501
        %v1503 = vsel %vm917, %v1496, %v1502
        %v1505 = vadd.f32 %v730, %v1503
        %v1506 = vsel %vm838, %v1505, -inf
        %1507 = vmax.xlane.f32.xlu0 %v1506
        %v1508 = vpop.xlane.xlu0 %1507
        %v1509 = vsub.f32 %v1505, %v1508
        %v1510 = vmul.f32 %v1509, 1.442695
        %v1511 = vpow.pop %v1510
        %v1512 = vsel %vm838, %v1511, 0.0
        %1513 = vadd.xlane.f32.xlu0 %v1512
        %v1514 = vpop.xlane.xlu0 %1513
        %v1515 = vrcp.pop %v1514
        %v1516 = vmul.f32 %v1515, %v935
        %v1517 = vmul.f32 %v1511, %v1516
        %s1518 = scalar_lea.vmem %s574, 24 [#allocation13]
        %1519 = vst.msk [vmem:[%s1518] sm:$0xff] %vm838, %v1517
        %1520 = vrot.lane.b32.xlu0 %v729, 104
        %v1521 = vpop.permute.xlu0 %1520
        %v1524 = vsel %vm838, %v1517, 0
        %1526 = vmatprep.subr.mxu0 0.0
        %1527 = vmatpush1.msra.mxu0 0.0
        %1528 = vmatprep.subr.mxu0 0.0
        %1529 = vmatpush1.msra.mxu0 0.0
        %1530 = vmatprep.subr.mxu0 0.0
        %1531 = vmatpush1.msra.mxu0 0.0
        %1532 = vmatprep.subr.mxu0 0.0
        %1533 = vmatpush1.msra.mxu0 0.0
        %1534 = vmatprep.subr.mxu0 0.0
        %1535 = vmatpush1.msra.mxu0 0.0
        %1536 = vmatprep.subr.mxu0 0.0
        %1537 = vmatpush1.msra.mxu0 0.0
        %1538 = vmatprep.subr.mxu0 0.0
        %1539 = vmatpush1.msra.mxu0 0.0
        %1540 = vmatprep.subr.mxu0 0.0
        %1541 = vmatpush1.msra.mxu0 0.0
        %1542 = vmatprep.subr.mxu0 0.0
        %1543 = vmatpush1.msra.mxu0 0.0
        %1544 = vmatprep.subr.mxu0 0.0
        %1545 = vmatpush1.msra.mxu0 0.0
        %1546 = vmatprep.subr.mxu0 0.0
        %1547 = vmatpush1.msra.mxu0 0.0
        %1548 = vmatprep.subr.mxu0 0.0
        %1549 = vmatpush1.msra.mxu0 0.0
        %1550 = vmatprep.subr.mxu0 0.0
        %1551 = vmatpush1.msra.mxu0 0.0
        %1552 = vmatprep.subr.mxu0 0.0
        %1553 = vmatpush1.msra.mxu0 0.0
        %1554 = vmatprep.subr.mxu0 0.0
        %1555 = vmatpush1.msra.mxu0 0.0
        %1556 = vmatprep.subr.mxu0 0.0
        %1557 = vmatpush1.msra.mxu0 %v1521
        %1558 = vmatprep.subr.mxu0 0.0
        %1559 = vmatpush2.msra.mxu0 0.0
        %1560 = vmatprep.subr.mxu0 0.0
        %1561 = vmatpush2.msra.mxu0 0.0
        %1562 = vmatprep.subr.mxu0 0.0
        %1563 = vmatpush2.msra.mxu0 0.0
        %1564 = vmatprep.subr.mxu0 0.0
        %1565 = vmatpush2.msra.mxu0 0.0
        %1566 = vmatprep.subr.mxu0 0.0
        %1567 = vmatpush2.msra.mxu0 0.0
        %1568 = vmatprep.subr.mxu0 0.0
        %1569 = vmatpush2.msra.mxu0 0.0
        %1570 = vmatprep.subr.mxu0 0.0
        %1571 = vmatpush2.msra.mxu0 0.0
        %1572 = vmatprep.subr.mxu0 0.0
        %1573 = vmatpush2.msra.mxu0 0.0
        %1574 = vmatprep.subr.mxu0 0.0
        %1575 = vmatpush2.msra.mxu0 0.0
        %1576 = vmatprep.subr.mxu0 0.0
        %1577 = vmatpush2.msra.mxu0 0.0
        %1578 = vmatprep.subr.mxu0 0.0
        %1579 = vmatpush2.msra.mxu0 0.0
        %1580 = vmatprep.subr.mxu0 0.0
        %1581 = vmatpush2.msra.mxu0 0.0
        %1582 = vmatprep.subr.mxu0 0.0
        %1583 = vmatpush2.msra.mxu0 0.0
        %1584 = vmatprep.subr.mxu0 0.0
        %1585 = vmatpush2.msra.mxu0 0.0
        %1586 = vmatprep.subr.mxu0 0.0
        %1587 = vmatpush2.msra.mxu0 0.0
        %1588 = vmatprep.subr.mxu0 0.0
        %1589 = vmatpush2.msra.mxu0 0.0
        %1590 = vmatprep.mubr.f32.mxu0 0.0
        %1591 = vmatmul.mubr.f32.gmra.mxu0 %v1524
        %v1592 = vpop.f32.mrf.mxu0
        %v1593 = vadd.f32 0.0, %v1592
        %v1594 = vpop.f32.mrf.mxu0
        %1595 = vdwg.mxu0
        %1597 = vrot.lane.b32.xlu0 %v1593, 24
        %v1598 = vpop.permute.xlu0 %1597
        %vm1600 = vcmask 261312
        %1601 = vst.msk [vmem:[#allocation2] sm:$0xff] %vm1600, %v1598
        %v1602 = vld [vmem:[#allocation2] sm:$0xff]
        %v1603 = vld [vmem:[#allocation11] sm:$0xff]
        %v1604 = vld [vmem:[#allocation11 + $0x8] sm:$0xff]
        %v1605 = vld [vmem:[#allocation11 + $0x10] sm:$0xff]
        %v1606 = vld [vmem:[#allocation11 + $0x18] sm:$0xff]
        %v1607 = vld [vmem:[%s9] sm:$0x1]
        %v1609 = vlaneseq
        %v1610 = vshrl.u32 %v1609, 7
        %v1611 = vsub.s32 0, %v1610
        %v1612 = vrot.slane %v1607, %v1611
        %v1615 = vsel %vm598, %v1602, 0
        %1617 = vmatprep.subr.mxu0 0.0
        %1618 = vmatpush1.msra.mxu0 0.0
        %1619 = vmatprep.subr.mxu0 0.0
        %1620 = vmatpush1.msra.mxu0 0.0
        %1621 = vmatprep.subr.mxu0 0.0
        %1622 = vmatpush1.msra.mxu0 0.0
        %1623 = vmatprep.subr.mxu0 0.0
        %1624 = vmatpush1.msra.mxu0 0.0
        %1625 = vmatprep.subr.mxu0 0.0
        %1626 = vmatpush1.msra.mxu0 0.0
        %1627 = vmatprep.subr.mxu0 0.0
        %1628 = vmatpush1.msra.mxu0 0.0
        %1629 = vmatprep.subr.mxu0 0.0
        %1630 = vmatpush1.msra.mxu0 0.0
        %1631 = vmatprep.subr.mxu0 0.0
        %1632 = vmatpush1.msra.mxu0 0.0
        %1633 = vmatprep.subr.mxu0 0.0
        %1634 = vmatpush1.msra.mxu0 0.0
        %1635 = vmatprep.subr.mxu0 0.0
        %1636 = vmatpush1.msra.mxu0 0.0
        %1637 = vmatprep.subr.mxu0 0.0
        %1638 = vmatpush1.msra.mxu0 0.0
        %1639 = vmatprep.subr.mxu0 0.0
        %1640 = vmatpush1.msra.mxu0 0.0
        %1641 = vmatprep.subr.mxu0 0.0
        %1642 = vmatpush1.msra.mxu0 %v1606
        %1643 = vmatprep.subr.mxu0 0.0
        %1644 = vmatpush1.msra.mxu0 %v1605
        %1645 = vmatprep.subr.mxu0 0.0
        %1646 = vmatpush1.msra.mxu0 %v1604
        %1647 = vmatprep.subr.mxu0 0.0
        %1648 = vmatpush1.msra.mxu0 %v1603
        %1649 = vmatprep.subr.mxu0 0.0
        %1650 = vmatpush2.msra.mxu0 0.0
        %1651 = vmatprep.subr.mxu0 0.0
        %1652 = vmatpush2.msra.mxu0 0.0
        %1653 = vmatprep.subr.mxu0 0.0
        %1654 = vmatpush2.msra.mxu0 0.0
        %1655 = vmatprep.subr.mxu0 0.0
        %1656 = vmatpush2.msra.mxu0 0.0
        %1657 = vmatprep.subr.mxu0 0.0
        %1658 = vmatpush2.msra.mxu0 0.0
        %1659 = vmatprep.subr.mxu0 0.0
        %1660 = vmatpush2.msra.mxu0 0.0
        %1661 = vmatprep.subr.mxu0 0.0
        %1662 = vmatpush2.msra.mxu0 0.0
        %1663 = vmatprep.subr.mxu0 0.0
        %1664 = vmatpush2.msra.mxu0 0.0
        %1665 = vmatprep.subr.mxu0 0.0
        %1666 = vmatpush2.msra.mxu0 0.0
        %1667 = vmatprep.subr.mxu0 0.0
        %1668 = vmatpush2.msra.mxu0 0.0
        %1669 = vmatprep.subr.mxu0 0.0
        %1670 = vmatpush2.msra.mxu0 0.0
        %1671 = vmatprep.subr.mxu0 0.0
        %1672 = vmatpush2.msra.mxu0 0.0
        %1673 = vmatprep.subr.mxu0 0.0
        %1674 = vmatpush2.msra.mxu0 0.0
        %1675 = vmatprep.subr.mxu0 0.0
        %1676 = vmatpush2.msra.mxu0 0.0
        %1677 = vmatprep.subr.mxu0 0.0
        %1678 = vmatpush2.msra.mxu0 0.0
        %1679 = vmatprep.subr.mxu0 0.0
        %1680 = vmatpush2.msra.mxu0 0.0
        %1681 = vmatprep.mubr.f32.mxu0 0.0
        %1682 = vmatmul.mubr.f32.gmra.mxu0 %v1615
        %v1683 = vpop.f32.mrf.mxu0
        %v1684 = vadd.f32 %v1612, %v1683
        %v1685 = vpop.f32.mrf.mxu0
        %1686 = vdwg.mxu0
        %1687 = vst.msk [vmem:[%s567] sm:$0xff] %vm598, %v1684
        %s1688 = sand.u32 %s301, 1
        %s1689 = scalar_lea.sflag [#allocation5], %s1688
        %s1690 = sand.u32 %s301, 1
        %s1691 = smul.addr %s1690, 8
        %s1692 = scalar_lea.vmem [#allocation12], %s1691
        %s1693 = sand.u32 %s329, 1
        %s1694 = scalar_lea.sflag [#allocation14], %s1693
        %s1695 = sand.u32 %s329, 1
        %s1696 = smul.addr %s1695, 32
        %s1697 = scalar_lea.vmem [#allocation13], %s1696
        // Predicated region
        $region81: #{tpu_custom_call.1} parent=59 // pred_check
          %p1698 = pneg %p311
        $region82: #{tpu_custom_call.1} parent=59 // pred_check_branch
          %1700 = sbr.rel (%p1698) target = $region84
        $region83: #{tpu_custom_call.1} parent=59 // pred_region
          %s1702 = ssub.s32 128, 128
          %1703 = vsyncadd %s1689, %s1702
          %s1704 = sadd.s32 %s43, %s42
          %s1705 = smul.addr %s1704, 128
          %s1706 = scalar_lea.hbm %s10, %s1705
          %s1708 = sshll.u32 %s1692, 4
          %s1709 = int_to_ptr.vmem [resolvable:$true] %s1708
          %1711 = dma.vmem_to_hbm [thread:$0]  %s1709, 128, %s1706, %s1689
        $region84: #{tpu_custom_call.1} parent=59 // pred_fallthru
          _
        // Predicated region
        $region85: #{tpu_custom_call.1} parent=59 // pred_check
          %p1712 = pneg %p339
        $region86: #{tpu_custom_call.1} parent=59 // pred_check_branch
          %1714 = sbr.rel (%p1712) target = $region88
        $region87: #{tpu_custom_call.1} parent=59 // pred_region
          %s1716 = ssub.s32 512, 512
          %1717 = vsyncadd %s1694, %s1716
          %s1718 = smul.addr %s42, 4
          %s1719 = sadd.s32 %s43, %s1718
          %s1720 = smul.addr %s1719, 128
          %s1721 = scalar_lea.hbm %s11, %s1720
          %s1722 = sshll.u32 %s1697, 4
          %s1723 = int_to_ptr.vmem [resolvable:$true] %s1722
          %1728 = dma.vmem_to_hbm [thread:$0]  %s1723, 512, %s1721, %s1694, 128, 128, 8
        $region88: #{tpu_custom_call.1} parent=59 // pred_fallthru
          _
      $region60: #{tpu_custom_call.1} parent=5 // pred_fallthru
        _
      %p1729 = scmp.le.s32.totalorder 2, %s33
      // Predicated region
      $region89: #{tpu_custom_call.1} parent=5 // pred_check
        %p1730 = pneg %p1729
      $region90: #{tpu_custom_call.1} parent=5 // pred_check_branch
        %1732 = sbr.rel (%p1730) target = $region92
      $region91: #{tpu_custom_call.1} parent=5 // pred_region
        %s1733 = ssub.s32 %s33, 2
        // Predicated region
        $region93: #{tpu_custom_call.1} parent=91 // pred_check
          %p1734 = pneg %p317
        $region94: #{tpu_custom_call.1} parent=91 // pred_check_branch
          %1736 = sbr.rel (%p1734) target = $region96
        $region95: #{tpu_custom_call.1} parent=91 // pred_region
          %s1737 = sand.u32 %s302, 1
          %s1738 = scalar_lea.sflag [#allocation5], %s1737
          %s1739 = sand.u32 %s302, 1
          %s1740 = smul.addr %s1739, 8
          %s1741 = scalar_lea.vmem [#allocation12], %s1740
          %1742 = dma.done %s1738, 128
        $region96: #{tpu_custom_call.1} parent=91 // pred_fallthru
          _
        // Predicated region
        $region97: #{tpu_custom_call.1} parent=91 // pred_check
          %p1743 = pneg %p345
        $region98: #{tpu_custom_call.1} parent=91 // pred_check_branch
          %1745 = sbr.rel (%p1743) target = $region100
        $region99: #{tpu_custom_call.1} parent=91 // pred_region
          %s1746 = sand.u32 %s330, 1
          %s1747 = scalar_lea.sflag [#allocation14], %s1746
          %s1748 = sand.u32 %s330, 1
          %s1749 = smul.addr %s1748, 32
          %s1750 = scalar_lea.vmem [#allocation13], %s1749
          %1751 = dma.done %s1747, 512
        $region100: #{tpu_custom_call.1} parent=91 // pred_fallthru
          _
      $region92: #{tpu_custom_call.1} parent=5 // pred_fallthru
        _
    $region6: #{tpu_custom_call.1} parent=1 // loop_footer
      %s37 = sadd.s32 1, %s33
    $region7: #{tpu_custom_call.1} parent=1 // loop_footer_branch
      %32 = sbr.rel target = $region3
    $region8: #{tpu_custom_call.1} parent=1 // loop_exit
      _
    %1752 = vsyncpa [#allocation4], 1
    %s1753 = scalar_lea.sflag [#allocation4], 1
    %1754 = vsyncpa %s1753, 1
    %1755 = vsyncpa [#allocation7], 1
    %s1756 = scalar_lea.sflag [#allocation7], 1
    %1757 = vsyncpa %s1756, 1
    %1758 = vsyncpa [#allocation10], 1
    %s1759 = scalar_lea.sflag [#allocation10], 1
    %1760 = vsyncpa %s1759, 1
    %1761 = vsyncpa [#allocation5], 1
    %s1762 = scalar_lea.sflag [#allocation5], 1
    %1763 = vsyncpa %s1762, 1
    %1764 = vsyncpa [#allocation14], 1
    %s1765 = scalar_lea.sflag [#allocation14], 1
    %1766 = vsyncpa %s1765, 1

</llo_original>
